<compile_context>
chip_gen: v5e
topology: v5e:2x2
jax: 0.10.0
libtpu: 0.0.40
codegen_flags: <defaults>
</compile_context>

<pallas_src>
import functools

import jax
import jax.numpy as jnp
from jax import lax
from jax.experimental import pallas as pl
from jax.experimental.pallas import tpu as pltpu


def _rcab_kernel(x_ref, mask_ref, w1_ref, b1_ref, w2_ref, b2_ref,
                 wd1_ref, bd1_ref, wd2_ref, bd2_ref,
                 o_ref,
                 col_ref, a1e_ref,
                 *, H, W, Wp, Sp, G, NB, C):
    """Fused RCAB forward for NB packed images.

    x_ref   : (NB, C, Sext) bf16  zero-padded, flattened (channels-on-sublanes,
                                  spatial-on-lanes) images with G zero guard
                                  lanes on both ends (Sext = Sp + 2G)
    mask_ref: (1, NB*Sp)  f32     1.0 at valid interior pixels, else 0.0
    w1_ref/w2_ref : (C, 9C) bf16  flattened 3x3 conv weights [co, k*C + ci]
    b1_ref/b2_ref : (C, 1)  f32
    wd1_ref : (C, Cr) f32   bd1_ref : (1, Cr) f32
    wd2_ref : (C, Cr) f32   bd2_ref : (C, 1)  f32
    o_ref   : (NB, C, Sp) f32     result in padded-flat coords (ring lanes = 0)
    col_ref : (9C, NB*Sp) bf16    im2col operand scratch
    a1e_ref : (NB, C, Sext) bf16  conv1 activation with zero guard lanes
    """
    mask = mask_ref[...]                                          # (1, NB*Sp)

    def build_im2col(src_ref):
        # For every 3x3 tap k, place a statically lane-shifted copy of each
        # image at sublane offset k*C.  col becomes the (9C, NB*Sp) im2col
        # operand -> one deep-K MXU matmul per conv.
        for i in range(NB):
            for k in range(9):
                dy, dx = divmod(k, 3)
                off = (dy - 1) * Wp + (dx - 1)                    # static int
                col_ref[pl.ds(k * C, C), pl.ds(i * Sp, Sp)] = (
                    src_ref[i, :, pl.ds(G + off, Sp)])

    # ---- conv1 + bias + ReLU (pad-ring / tail lanes zeroed by the mask) ----
    build_im2col(x_ref)
    a1 = jnp.dot(w1_ref[...], col_ref[...],
                 preferred_element_type=jnp.float32)              # (C, NB*Sp)
    a1 = jnp.maximum(a1 + b1_ref[...], 0.0) * mask

    # Stash conv1 activation into a guarded scratch so conv2 sees zero padding.
    # Only the small guard bands need (re)zeroing; the interior is overwritten.
    zg = jnp.zeros((NB, C, G), dtype=a1e_ref.dtype)
    a1e_ref[:, :, pl.ds(0, G)] = zg
    a1e_ref[:, :, pl.ds(G + Sp, G)] = zg
    for i in range(NB):
        a1e_ref[i, :, pl.ds(G, Sp)] = (
            a1[:, i * Sp:(i + 1) * Sp].astype(a1e_ref.dtype))

    # ---- conv2 + bias (ring/tail lanes zeroed by the mask) ----
    build_im2col(a1e_ref)
    a2 = jnp.dot(w2_ref[...], col_ref[...],
                 preferred_element_type=jnp.float32)              # (C, NB*Sp)
    a2 = (a2 + b2_ref[...]) * mask

    # ---- channel attention (tiny SE MLP on VPU/XLU/EUP) + residual ----
    inv_hw = 1.0 / float(H * W)
    for i in range(NB):
        a2i = a2[:, i * Sp:(i + 1) * Sp]                          # (C, Sp)
        pooled = jnp.sum(a2i, axis=1, keepdims=True) * inv_hw     # (C, 1)
        z = jnp.maximum(
            jnp.sum(wd1_ref[...] * pooled, axis=0, keepdims=True)
            + bd1_ref[...], 0.0)                                  # (1, Cr)
        t = (jnp.sum(wd2_ref[...] * z, axis=1, keepdims=True)
             + bd2_ref[...])                                      # (C, 1)
        gate = 1.0 / (1.0 + jnp.exp(-t))                          # sigmoid
        xres = x_ref[i, :, pl.ds(G, Sp)].astype(jnp.float32)      # residual
        o_ref[i] = (a2i * gate + xres).astype(o_ref.dtype)


def rcab_forward(x, w1, b1, w2, b2, w_du1, b_du1, w_du2, b_du2,
                 *, images_per_step=None, conv_dtype=jnp.bfloat16):
    """RCAB forward.  x: (N, C, H, W) NCHW; weights in PyTorch layouts."""
    N, C, H, W = x.shape
    Cr = w_du1.shape[0]
    assert C % 8 == 0 and Cr >= 1

    Hp, Wp = H + 2, W + 2
    S = Hp * Wp                               # padded-image flat size
    Sp = ((S + 127) // 128) * 128             # lane-dense per-image lane width
    G = Wp + 1                                # zero guards: every tap slice in-bounds
    Sext = Sp + 2 * G

    # Images packed per grid step: fill lanes / amortize per-step overhead but
    # keep >= 2 grid steps when the batch allows (megacore + pipeline overlap).
    if images_per_step is None:
        nb = max(1, min(N // 2, 4096 // Sp))
    else:
        nb = max(1, min(images_per_step, N))
    Ng = (N + nb - 1) // nb
    N_pad = Ng * nb

    cd = conv_dtype

    # ---- host prep: pads + tiny weight repacks only (no layout transposes) --
    xb = x.astype(cd)
    xp = jnp.pad(xb, ((0, N_pad - N), (0, 0), (1, 1), (1, 1)))    # batch + ring
    xe = jnp.pad(xp.reshape(N_pad, C, S),
                 ((0, 0), (0, 0), (G, Sext - G - S)))             # lane guards

    q = jnp.arange(Sp, dtype=jnp.int32)
    yy, xx = q // Wp, q % Wp
    m = ((q < S) & (yy >= 1) & (yy <= H) & (xx >= 1) & (xx <= W))
    mask = jnp.tile(m.astype(jnp.float32), (nb,)).reshape(1, nb * Sp)

    def flat_taps(w):      # (Cout, Cin, 3, 3) -> (Cout, 9*Cin), [co, k*C + ci]
        return jnp.transpose(w, (0, 2, 3, 1)).reshape(C, 9 * C).astype(cd)

    w1f, w2f = flat_taps(w1), flat_taps(w2)
    b1c = b1.reshape(C, 1).astype(jnp.float32)
    b2c = b2.reshape(C, 1).astype(jnp.float32)
    wd1t = jnp.transpose(w_du1.reshape(Cr, C)).astype(jnp.float32)   # (C, Cr)
    bd1r = b_du1.reshape(1, Cr).astype(jnp.float32)
    wd2m = w_du2.reshape(C, Cr).astype(jnp.float32)                  # (C, Cr)
    bd2c = b_du2.reshape(C, 1).astype(jnp.float32)

    kernel = functools.partial(_rcab_kernel, H=H, W=W, Wp=Wp, Sp=Sp, G=G,
                               NB=nb, C=C)

    out = pl.pallas_call(
        kernel,
        out_shape=jax.ShapeDtypeStruct((N_pad, C, Sp), jnp.float32),
        grid=(Ng,),
        in_specs=[
            pl.BlockSpec((nb, C, Sext), lambda n: (n, 0, 0)),   # packed images
            pl.BlockSpec((1, nb * Sp), lambda n: (0, 0)),       # interior mask
            pl.BlockSpec((C, 9 * C), lambda n: (0, 0)),         # conv1 weights
            pl.BlockSpec((C, 1), lambda n: (0, 0)),             # b1
            pl.BlockSpec((C, 9 * C), lambda n: (0, 0)),         # conv2 weights
            pl.BlockSpec((C, 1), lambda n: (0, 0)),             # b2
            pl.BlockSpec((C, Cr), lambda n: (0, 0)),            # SE down W^T
            pl.BlockSpec((1, Cr), lambda n: (0, 0)),            # SE down bias
            pl.BlockSpec((C, Cr), lambda n: (0, 0)),            # SE up W
            pl.BlockSpec((C, 1), lambda n: (0, 0)),             # SE up bias
        ],
        out_specs=pl.BlockSpec((nb, C, Sp), lambda n: (n, 0, 0)),
        scratch_shapes=[
            pltpu.VMEM((9 * C, nb * Sp), cd),     # im2col operand
            pltpu.VMEM((nb, C, Sext), cd),        # conv1 activation (guarded)
        ],
        compiler_params=pltpu.CompilerParams(
            dimension_semantics=("parallel",)),
    )(xe, mask, w1f, b1c, w2f, b2c, wd1t, bd1r, wd2m, bd2c)

    # padded-flat -> NCHW interior (one fused XLA slice, no transpose)
    out = out[:N, :, :S].reshape(N, C, Hp, Wp)[:, :, 1:H + 1, 1:W + 1]
    return out.astype(x.dtype)


def _rcab_ref(x, w1, b1, w2, b2, wd1, bd1, wd2, bd2):
    """Pure-JAX (f32, HIGHEST precision) reference matching the PyTorch RCAB."""
    hp = lax.Precision.HIGHEST

    def conv3x3(v, w, b):
        out = lax.conv_general_dilated(
            v, w, window_strides=(1, 1), padding="SAME",
            dimension_numbers=("NCHW", "OIHW", "NCHW"), precision=hp)
        return out + b.reshape(1, -1, 1, 1)

    a1 = jax.nn.relu(conv3x3(x, w1, b1))
    a2 = conv3x3(a1, w2, b2)
    pooled = jnp.mean(a2, axis=(2, 3))                                  # (N, C)
    z = jax.nn.relu(jnp.einsum("nc,jc->nj", pooled,
                               wd1.reshape(wd1.shape[0], -1), precision=hp) + bd1)
    s = jax.nn.sigmoid(jnp.einsum("nj,cj->nc", z,
                                  wd2.reshape(wd2.shape[0], -1), precision=hp) + bd2)
    return a2 * s[:, :, None, None] + x


if __name__ == "__main__":
    N, C, H, W = 4, 32, 16, 16          # N=4 exercises image packing (2/step)
    reduction = 16
    Cr = C // reduction

    key = jax.random.PRNGKey(0)
    ks = [jax.random.fold_in(key, i) for i in range(9)]
    wscale = 1.0 / (C * 9) ** 0.5
    x = jax.random.normal(ks[0], (N, C, H, W), jnp.float32)
    w1 = jax.random.normal(ks[1], (C, C, 3, 3), jnp.float32) * wscale
    b1 = jax.random.normal(ks[2], (C,), jnp.float32) * 0.1
    w2 = jax.random.normal(ks[3], (C, C, 3, 3), jnp.float32) * wscale
    b2 = jax.random.normal(ks[4], (C,), jnp.float32) * 0.1
    w_du1 = jax.random.normal(ks[5], (Cr, C, 1, 1), jnp.float32) * (1.0 / C ** 0.5)
    b_du1 = jax.random.normal(ks[6], (Cr,), jnp.float32) * 0.1
    w_du2 = jax.random.normal(ks[7], (C, Cr, 1, 1), jnp.float32) * (1.0 / Cr ** 0.5)
    b_du2 = jax.random.normal(ks[8], (C,), jnp.float32) * 0.1

    out = rcab_forward(x, w1, b1, w2, b2, w_du1, b_du1, w_du2, b_du2)
    out = jax.block_until_ready(out)

    ref = _rcab_ref(x, w1, b1, w2, b2, w_du1, b_du1, w_du2, b_du2)
    assert out.shape == ref.shape and out.dtype == ref.dtype
    err = float(jnp.max(jnp.abs(out - ref)))
    # bf16 conv operands (f32 accumulation) vs an f32/HIGHEST reference:
    # expected max-abs deviation is ~2-4e-2 at these magnitudes.
    assert err < 7e-2, f"mismatch vs reference RCAB: max_abs_err={err}"

    print("KERNEL_OK")
</pallas_src>

<mosaic_0001>
module attributes {stable_mosaic.version = 11 : i64} {
  func.func @_rcab_kernel(%arg0: i32, %arg1: memref<2x32x422xbf16, #tpu.memory_space<vmem>>, %arg2: memref<1x768xf32, #tpu.memory_space<vmem>>, %arg3: memref<32x288xbf16, #tpu.memory_space<vmem>>, %arg4: memref<32x1xf32, #tpu.memory_space<vmem>>, %arg5: memref<32x288xbf16, #tpu.memory_space<vmem>>, %arg6: memref<32x1xf32, #tpu.memory_space<vmem>>, %arg7: memref<32x2xf32, #tpu.memory_space<vmem>>, %arg8: memref<1x2xf32, #tpu.memory_space<vmem>>, %arg9: memref<32x2xf32, #tpu.memory_space<vmem>>, %arg10: memref<32x1xf32, #tpu.memory_space<vmem>>, %arg11: memref<2x32x384xf32, #tpu.memory_space<vmem>>, %arg12: memref<288x768xbf16, #tpu.memory_space<vmem>>, %arg13: memref<2x32x422xbf16, #tpu.memory_space<vmem>>) attributes {dimension_semantics = [#tpu.dimension_semantics<parallel>], iteration_bounds = array<i64: 2>, scalar_prefetch = 0 : i64, scratch_operands = 2 : i64, tpu.core_type = #tpu.core_type<tc>, window_params = [{transform_indices = @transform_0, window_bounds = array<i64: 2, 32, 422>}, {pipeline_mode = #tpu.pipeline_mode<synchronous>, transform_indices = @transform_1, window_bounds = array<i64: 1, 768>}, {pipeline_mode = #tpu.pipeline_mode<synchronous>, transform_indices = @transform_2, window_bounds = array<i64: 32, 288>}, {pipeline_mode = #tpu.pipeline_mode<synchronous>, transform_indices = @transform_3, window_bounds = array<i64: 32, 1>}, {pipeline_mode = #tpu.pipeline_mode<synchronous>, transform_indices = @transform_4, window_bounds = array<i64: 32, 288>}, {pipeline_mode = #tpu.pipeline_mode<synchronous>, transform_indices = @transform_5, window_bounds = array<i64: 32, 1>}, {pipeline_mode = #tpu.pipeline_mode<synchronous>, transform_indices = @transform_6, window_bounds = array<i64: 32, 2>}, {pipeline_mode = #tpu.pipeline_mode<synchronous>, transform_indices = @transform_7, window_bounds = array<i64: 1, 2>}, {pipeline_mode = #tpu.pipeline_mode<synchronous>, transform_indices = @transform_8, window_bounds = array<i64: 32, 2>}, {pipeline_mode = #tpu.pipeline_mode<synchronous>, transform_indices = @transform_9, window_bounds = array<i64: 32, 1>}, {transform_indices = @transform_10, window_bounds = array<i64: 2, 32, 384>}]} {
    %c0 = arith.constant 0 : index
    %c0_0 = arith.constant 0 : index
    %0 = vector.load %arg2[%c0, %c0_0] : memref<1x768xf32, #tpu.memory_space<vmem>>, vector<1x768xf32>
    %c0_1 = arith.constant 0 : index
    %c0_2 = arith.constant 0 : index
    %c0_3 = arith.constant 0 : index
    %1 = vector.load %arg1[%c0_1, %c0_2, %c0_3] : memref<2x32x422xbf16, #tpu.memory_space<vmem>>, vector<1x32x384xbf16>
    %2 = vector.shape_cast %1 : vector<1x32x384xbf16> to vector<32x384xbf16>
    %c0_4 = arith.constant 0 : index
    %c0_5 = arith.constant 0 : index
    %3 = vector.load %arg12[%c0_4, %c0_5] : memref<288x768xbf16, #tpu.memory_space<vmem>>, vector<32x384xbf16>
    tpu.vector_store %arg12[%c0_4, %c0_5], %2 {strides = array<i32>} : memref<288x768xbf16, #tpu.memory_space<vmem>>, vector<32x384xbf16>,
    %c0_6 = arith.constant 0 : index
    %c0_7 = arith.constant 0 : index
    %c1 = arith.constant 1 : index
    %4 = vector.load %arg1[%c0_6, %c0_7, %c1] : memref<2x32x422xbf16, #tpu.memory_space<vmem>>, vector<1x32x384xbf16>
    %5 = vector.shape_cast %4 : vector<1x32x384xbf16> to vector<32x384xbf16>
    %c32 = arith.constant 32 : index
    %c0_8 = arith.constant 0 : index
    %6 = vector.load %arg12[%c32, %c0_8] : memref<288x768xbf16, #tpu.memory_space<vmem>>, vector<32x384xbf16>
    tpu.vector_store %arg12[%c32, %c0_8], %5 {strides = array<i32>} : memref<288x768xbf16, #tpu.memory_space<vmem>>, vector<32x384xbf16>,
    %c0_9 = arith.constant 0 : index
    %c0_10 = arith.constant 0 : index
    %c2 = arith.constant 2 : index
    %7 = vector.load %arg1[%c0_9, %c0_10, %c2] : memref<2x32x422xbf16, #tpu.memory_space<vmem>>, vector<1x32x384xbf16>
    %8 = vector.shape_cast %7 : vector<1x32x384xbf16> to vector<32x384xbf16>
    %c64 = arith.constant 64 : index
    %c0_11 = arith.constant 0 : index
    %9 = vector.load %arg12[%c64, %c0_11] : memref<288x768xbf16, #tpu.memory_space<vmem>>, vector<32x384xbf16>
    tpu.vector_store %arg12[%c64, %c0_11], %8 {strides = array<i32>} : memref<288x768xbf16, #tpu.memory_space<vmem>>, vector<32x384xbf16>,
    %c0_12 = arith.constant 0 : index
    %c0_13 = arith.constant 0 : index
    %c18 = arith.constant 18 : index
    %10 = vector.load %arg1[%c0_12, %c0_13, %c18] : memref<2x32x422xbf16, #tpu.memory_space<vmem>>, vector<1x32x384xbf16>
    %11 = vector.shape_cast %10 : vector<1x32x384xbf16> to vector<32x384xbf16>
    %c96 = arith.constant 96 : index
    %c0_14 = arith.constant 0 : index
    %12 = vector.load %arg12[%c96, %c0_14] : memref<288x768xbf16, #tpu.memory_space<vmem>>, vector<32x384xbf16>
    tpu.vector_store %arg12[%c96, %c0_14], %11 {strides = array<i32>} : memref<288x768xbf16, #tpu.memory_space<vmem>>, vector<32x384xbf16>,
    %c0_15 = arith.constant 0 : index
    %c0_16 = arith.constant 0 : index
    %c19 = arith.constant 19 : index
    %13 = vector.load %arg1[%c0_15, %c0_16, %c19] : memref<2x32x422xbf16, #tpu.memory_space<vmem>>, vector<1x32x384xbf16>
    %14 = vector.shape_cast %13 : vector<1x32x384xbf16> to vector<32x384xbf16>
    %c128 = arith.constant 128 : index
    %c0_17 = arith.constant 0 : index
    %15 = vector.load %arg12[%c128, %c0_17] : memref<288x768xbf16, #tpu.memory_space<vmem>>, vector<32x384xbf16>
    tpu.vector_store %arg12[%c128, %c0_17], %14 {strides = array<i32>} : memref<288x768xbf16, #tpu.memory_space<vmem>>, vector<32x384xbf16>,
    %c0_18 = arith.constant 0 : index
    %c0_19 = arith.constant 0 : index
    %c20 = arith.constant 20 : index
    %16 = vector.load %arg1[%c0_18, %c0_19, %c20] : memref<2x32x422xbf16, #tpu.memory_space<vmem>>, vector<1x32x384xbf16>
    %17 = vector.shape_cast %16 : vector<1x32x384xbf16> to vector<32x384xbf16>
    %c160 = arith.constant 160 : index
    %c0_20 = arith.constant 0 : index
    %18 = vector.load %arg12[%c160, %c0_20] : memref<288x768xbf16, #tpu.memory_space<vmem>>, vector<32x384xbf16>
    tpu.vector_store %arg12[%c160, %c0_20], %17 {strides = array<i32>} : memref<288x768xbf16, #tpu.memory_space<vmem>>, vector<32x384xbf16>,
    %c0_21 = arith.constant 0 : index
    %c0_22 = arith.constant 0 : index
    %c36 = arith.constant 36 : index
    %19 = vector.load %arg1[%c0_21, %c0_22, %c36] : memref<2x32x422xbf16, #tpu.memory_space<vmem>>, vector<1x32x384xbf16>
    %20 = vector.shape_cast %19 : vector<1x32x384xbf16> to vector<32x384xbf16>
    %c192 = arith.constant 192 : index
    %c0_23 = arith.constant 0 : index
    %21 = vector.load %arg12[%c192, %c0_23] : memref<288x768xbf16, #tpu.memory_space<vmem>>, vector<32x384xbf16>
    tpu.vector_store %arg12[%c192, %c0_23], %20 {strides = array<i32>} : memref<288x768xbf16, #tpu.memory_space<vmem>>, vector<32x384xbf16>,
    %c0_24 = arith.constant 0 : index
    %c0_25 = arith.constant 0 : index
    %c37 = arith.constant 37 : index
    %22 = vector.load %arg1[%c0_24, %c0_25, %c37] : memref<2x32x422xbf16, #tpu.memory_space<vmem>>, vector<1x32x384xbf16>
    %23 = vector.shape_cast %22 : vector<1x32x384xbf16> to vector<32x384xbf16>
    %c224 = arith.constant 224 : index
    %c0_26 = arith.constant 0 : index
    %24 = vector.load %arg12[%c224, %c0_26] : memref<288x768xbf16, #tpu.memory_space<vmem>>, vector<32x384xbf16>
    tpu.vector_store %arg12[%c224, %c0_26], %23 {strides = array<i32>} : memref<288x768xbf16, #tpu.memory_space<vmem>>, vector<32x384xbf16>,
    %c0_27 = arith.constant 0 : index
    %c0_28 = arith.constant 0 : index
    %c38 = arith.constant 38 : index
    %25 = vector.load %arg1[%c0_27, %c0_28, %c38] : memref<2x32x422xbf16, #tpu.memory_space<vmem>>, vector<1x32x384xbf16>
    %26 = vector.shape_cast %25 : vector<1x32x384xbf16> to vector<32x384xbf16>
    %c256 = arith.constant 256 : index
    %c0_29 = arith.constant 0 : index
    %27 = vector.load %arg12[%c256, %c0_29] : memref<288x768xbf16, #tpu.memory_space<vmem>>, vector<32x384xbf16>
    tpu.vector_store %arg12[%c256, %c0_29], %26 {strides = array<i32>} : memref<288x768xbf16, #tpu.memory_space<vmem>>, vector<32x384xbf16>,
    %c1_30 = arith.constant 1 : index
    %c0_31 = arith.constant 0 : index
    %c0_32 = arith.constant 0 : index
    %28 = vector.load %arg1[%c1_30, %c0_31, %c0_32] : memref<2x32x422xbf16, #tpu.memory_space<vmem>>, vector<1x32x384xbf16>
    %29 = vector.shape_cast %28 : vector<1x32x384xbf16> to vector<32x384xbf16>
    %c0_33 = arith.constant 0 : index
    %c384 = arith.constant 384 : index
    %30 = vector.load %arg12[%c0_33, %c384] : memref<288x768xbf16, #tpu.memory_space<vmem>>, vector<32x384xbf16>
    tpu.vector_store %arg12[%c0_33, %c384], %29 {strides = array<i32>} : memref<288x768xbf16, #tpu.memory_space<vmem>>, vector<32x384xbf16>,
    %c1_34 = arith.constant 1 : index
    %c0_35 = arith.constant 0 : index
    %c1_36 = arith.constant 1 : index
    %31 = vector.load %arg1[%c1_34, %c0_35, %c1_36] : memref<2x32x422xbf16, #tpu.memory_space<vmem>>, vector<1x32x384xbf16>
    %32 = vector.shape_cast %31 : vector<1x32x384xbf16> to vector<32x384xbf16>
    %c32_37 = arith.constant 32 : index
    %c384_38 = arith.constant 384 : index
    %33 = vector.load %arg12[%c32_37, %c384_38] : memref<288x768xbf16, #tpu.memory_space<vmem>>, vector<32x384xbf16>
    tpu.vector_store %arg12[%c32_37, %c384_38], %32 {strides = array<i32>} : memref<288x768xbf16, #tpu.memory_space<vmem>>, vector<32x384xbf16>,
    %c1_39 = arith.constant 1 : index
    %c0_40 = arith.constant 0 : index
    %c2_41 = arith.constant 2 : index
    %34 = vector.load %arg1[%c1_39, %c0_40, %c2_41] : memref<2x32x422xbf16, #tpu.memory_space<vmem>>, vector<1x32x384xbf16>
    %35 = vector.shape_cast %34 : vector<1x32x384xbf16> to vector<32x384xbf16>
    %c64_42 = arith.constant 64 : index
    %c384_43 = arith.constant 384 : index
    %36 = vector.load %arg12[%c64_42, %c384_43] : memref<288x768xbf16, #tpu.memory_space<vmem>>, vector<32x384xbf16>
    tpu.vector_store %arg12[%c64_42, %c384_43], %35 {strides = array<i32>} : memref<288x768xbf16, #tpu.memory_space<vmem>>, vector<32x384xbf16>,
    %c1_44 = arith.constant 1 : index
    %c0_45 = arith.constant 0 : index
    %c18_46 = arith.constant 18 : index
    %37 = vector.load %arg1[%c1_44, %c0_45, %c18_46] : memref<2x32x422xbf16, #tpu.memory_space<vmem>>, vector<1x32x384xbf16>
    %38 = vector.shape_cast %37 : vector<1x32x384xbf16> to vector<32x384xbf16>
    %c96_47 = arith.constant 96 : index
    %c384_48 = arith.constant 384 : index
    %39 = vector.load %arg12[%c96_47, %c384_48] : memref<288x768xbf16, #tpu.memory_space<vmem>>, vector<32x384xbf16>
    tpu.vector_store %arg12[%c96_47, %c384_48], %38 {strides = array<i32>} : memref<288x768xbf16, #tpu.memory_space<vmem>>, vector<32x384xbf16>,
    %c1_49 = arith.constant 1 : index
    %c0_50 = arith.constant 0 : index
    %c19_51 = arith.constant 19 : index
    %40 = vector.load %arg1[%c1_49, %c0_50, %c19_51] : memref<2x32x422xbf16, #tpu.memory_space<vmem>>, vector<1x32x384xbf16>
    %41 = vector.shape_cast %40 : vector<1x32x384xbf16> to vector<32x384xbf16>
    %c128_52 = arith.constant 128 : index
    %c384_53 = arith.constant 384 : index
    %42 = vector.load %arg12[%c128_52, %c384_53] : memref<288x768xbf16, #tpu.memory_space<vmem>>, vector<32x384xbf16>
    tpu.vector_store %arg12[%c128_52, %c384_53], %41 {strides = array<i32>} : memref<288x768xbf16, #tpu.memory_space<vmem>>, vector<32x384xbf16>,
    %c1_54 = arith.constant 1 : index
    %c0_55 = arith.constant 0 : index
    %c20_56 = arith.constant 20 : index
    %43 = vector.load %arg1[%c1_54, %c0_55, %c20_56] : memref<2x32x422xbf16, #tpu.memory_space<vmem>>, vector<1x32x384xbf16>
    %44 = vector.shape_cast %43 : vector<1x32x384xbf16> to vector<32x384xbf16>
    %c160_57 = arith.constant 160 : index
    %c384_58 = arith.constant 384 : index
    %45 = vector.load %arg12[%c160_57, %c384_58] : memref<288x768xbf16, #tpu.memory_space<vmem>>, vector<32x384xbf16>
    tpu.vector_store %arg12[%c160_57, %c384_58], %44 {strides = array<i32>} : memref<288x768xbf16, #tpu.memory_space<vmem>>, vector<32x384xbf16>,
    %c1_59 = arith.constant 1 : index
    %c0_60 = arith.constant 0 : index
    %c36_61 = arith.constant 36 : index
    %46 = vector.load %arg1[%c1_59, %c0_60, %c36_61] : memref<2x32x422xbf16, #tpu.memory_space<vmem>>, vector<1x32x384xbf16>
    %47 = vector.shape_cast %46 : vector<1x32x384xbf16> to vector<32x384xbf16>
    %c192_62 = arith.constant 192 : index
    %c384_63 = arith.constant 384 : index
    %48 = vector.load %arg12[%c192_62, %c384_63] : memref<288x768xbf16, #tpu.memory_space<vmem>>, vector<32x384xbf16>
    tpu.vector_store %arg12[%c192_62, %c384_63], %47 {strides = array<i32>} : memref<288x768xbf16, #tpu.memory_space<vmem>>, vector<32x384xbf16>,
    %c1_64 = arith.constant 1 : index
    %c0_65 = arith.constant 0 : index
    %c37_66 = arith.constant 37 : index
    %49 = vector.load %arg1[%c1_64, %c0_65, %c37_66] : memref<2x32x422xbf16, #tpu.memory_space<vmem>>, vector<1x32x384xbf16>
    %50 = vector.shape_cast %49 : vector<1x32x384xbf16> to vector<32x384xbf16>
    %c224_67 = arith.constant 224 : index
    %c384_68 = arith.constant 384 : index
    %51 = vector.load %arg12[%c224_67, %c384_68] : memref<288x768xbf16, #tpu.memory_space<vmem>>, vector<32x384xbf16>
    tpu.vector_store %arg12[%c224_67, %c384_68], %50 {strides = array<i32>} : memref<288x768xbf16, #tpu.memory_space<vmem>>, vector<32x384xbf16>,
    %c1_69 = arith.constant 1 : index
    %c0_70 = arith.constant 0 : index
    %c38_71 = arith.constant 38 : index
    %52 = vector.load %arg1[%c1_69, %c0_70, %c38_71] : memref<2x32x422xbf16, #tpu.memory_space<vmem>>, vector<1x32x384xbf16>
    %53 = vector.shape_cast %52 : vector<1x32x384xbf16> to vector<32x384xbf16>
    %c256_72 = arith.constant 256 : index
    %c384_73 = arith.constant 384 : index
    %54 = vector.load %arg12[%c256_72, %c384_73] : memref<288x768xbf16, #tpu.memory_space<vmem>>, vector<32x384xbf16>
    tpu.vector_store %arg12[%c256_72, %c384_73], %53 {strides = array<i32>} : memref<288x768xbf16, #tpu.memory_space<vmem>>, vector<32x384xbf16>,
    %c0_74 = arith.constant 0 : index
    %c0_75 = arith.constant 0 : index
    %55 = vector.load %arg3[%c0_74, %c0_75] : memref<32x288xbf16, #tpu.memory_space<vmem>>, vector<32x288xbf16>
    %c0_76 = arith.constant 0 : index
    %c0_77 = arith.constant 0 : index
    %56 = vector.load %arg12[%c0_76, %c0_77] : memref<288x768xbf16, #tpu.memory_space<vmem>>, vector<288x768xbf16>
    %cst = arith.constant dense<0.000000e+00> : vector<32x768xf32>
    %57 = tpu.matmul %55, %56, %cst {dimension_numbers = #tpu.dot_dimension_numbers<[1], [0], [0], [1], [0, 0, 1, 1], [], []>} : vector<32x288xbf16>, vector<288x768xbf16>, vector<32x768xf32> -> vector<32x768xf32>
    %c0_78 = arith.constant 0 : index
    %c0_79 = arith.constant 0 : index
    %58 = vector.load %arg4[%c0_78, %c0_79] : memref<32x1xf32, #tpu.memory_space<vmem>>, vector<32x1xf32>
    %59 = vector.broadcast %58 : vector<32x1xf32> to vector<32x768xf32>
    %60 = arith.addf %57, %59 : vector<32x768xf32>
    %cst_80 = arith.constant 0.000000e+00 : f32
    %61 = vector.broadcast %cst_80 : f32 to vector<32x768xf32>
    %62 = arith.maximumf %60, %61 : vector<32x768xf32>
    %63 = vector.broadcast %0 : vector<1x768xf32> to vector<32x768xf32>
    %64 = arith.mulf %62, %63 : vector<32x768xf32>
    %cst_81 = arith.constant 0.000000e+00 : bf16
    %65 = vector.broadcast %cst_81 : bf16 to vector<2x32x19xbf16>
    %c0_82 = arith.constant 0 : index
    %c0_83 = arith.constant 0 : index
    %c0_84 = arith.constant 0 : index
    %66 = vector.load %arg13[%c0_82, %c0_83, %c0_84] : memref<2x32x422xbf16, #tpu.memory_space<vmem>>, vector<2x32x19xbf16>
    tpu.vector_store %arg13[%c0_82, %c0_83, %c0_84], %65 {strides = array<i32>} : memref<2x32x422xbf16, #tpu.memory_space<vmem>>, vector<2x32x19xbf16>,
    %c0_85 = arith.constant 0 : index
    %c0_86 = arith.constant 0 : index
    %c403 = arith.constant 403 : index
    %67 = vector.load %arg13[%c0_85, %c0_86, %c403] : memref<2x32x422xbf16, #tpu.memory_space<vmem>>, vector<2x32x19xbf16>
    tpu.vector_store %arg13[%c0_85, %c0_86, %c403], %65 {strides = array<i32>} : memref<2x32x422xbf16, #tpu.memory_space<vmem>>, vector<2x32x19xbf16>,
    %68 = vector.extract_strided_slice %64 {offsets = [0, 0], sizes = [32, 384], strides = [1, 1]} : vector<32x768xf32> to vector<32x384xf32>
    %69 = arith.truncf %68 : vector<32x384xf32> to vector<32x384xbf16>
    %c0_87 = arith.constant 0 : index
    %c0_88 = arith.constant 0 : index
    %c19_89 = arith.constant 19 : index
    %70 = vector.load %arg13[%c0_87, %c0_88, %c19_89] : memref<2x32x422xbf16, #tpu.memory_space<vmem>>, vector<1x32x384xbf16>
    %71 = vector.shape_cast %70 : vector<1x32x384xbf16> to vector<32x384xbf16>
    %72 = vector.shape_cast %69 : vector<32x384xbf16> to vector<1x32x384xbf16>
    tpu.vector_store %arg13[%c0_87, %c0_88, %c19_89], %72 {strides = array<i32>} : memref<2x32x422xbf16, #tpu.memory_space<vmem>>, vector<1x32x384xbf16>,
    %73 = vector.extract_strided_slice %64 {offsets = [0, 384], sizes = [32, 384], strides = [1, 1]} : vector<32x768xf32> to vector<32x384xf32>
    %74 = arith.truncf %73 : vector<32x384xf32> to vector<32x384xbf16>
    %c1_90 = arith.constant 1 : index
    %c0_91 = arith.constant 0 : index
    %c19_92 = arith.constant 19 : index
    %75 = vector.load %arg13[%c1_90, %c0_91, %c19_92] : memref<2x32x422xbf16, #tpu.memory_space<vmem>>, vector<1x32x384xbf16>
    %76 = vector.shape_cast %75 : vector<1x32x384xbf16> to vector<32x384xbf16>
    %77 = vector.shape_cast %74 : vector<32x384xbf16> to vector<1x32x384xbf16>
    tpu.vector_store %arg13[%c1_90, %c0_91, %c19_92], %77 {strides = array<i32>} : memref<2x32x422xbf16, #tpu.memory_space<vmem>>, vector<1x32x384xbf16>,
    %c0_93 = arith.constant 0 : index
    %c0_94 = arith.constant 0 : index
    %c0_95 = arith.constant 0 : index
    %78 = vector.load %arg13[%c0_93, %c0_94, %c0_95] : memref<2x32x422xbf16, #tpu.memory_space<vmem>>, vector<1x32x384xbf16>
    %79 = vector.shape_cast %78 : vector<1x32x384xbf16> to vector<32x384xbf16>
    %c0_96 = arith.constant 0 : index
    %c0_97 = arith.constant 0 : index
    %80 = vector.load %arg12[%c0_96, %c0_97] : memref<288x768xbf16, #tpu.memory_space<vmem>>, vector<32x384xbf16>
    tpu.vector_store %arg12[%c0_96, %c0_97], %79 {strides = array<i32>} : memref<288x768xbf16, #tpu.memory_space<vmem>>, vector<32x384xbf16>,
    %c0_98 = arith.constant 0 : index
    %c0_99 = arith.constant 0 : index
    %c1_100 = arith.constant 1 : index
    %81 = vector.load %arg13[%c0_98, %c0_99, %c1_100] : memref<2x32x422xbf16, #tpu.memory_space<vmem>>, vector<1x32x384xbf16>
    %82 = vector.shape_cast %81 : vector<1x32x384xbf16> to vector<32x384xbf16>
    %c32_101 = arith.constant 32 : index
    %c0_102 = arith.constant 0 : index
    %83 = vector.load %arg12[%c32_101, %c0_102] : memref<288x768xbf16, #tpu.memory_space<vmem>>, vector<32x384xbf16>
    tpu.vector_store %arg12[%c32_101, %c0_102], %82 {strides = array<i32>} : memref<288x768xbf16, #tpu.memory_space<vmem>>, vector<32x384xbf16>,
    %c0_103 = arith.constant 0 : index
    %c0_104 = arith.constant 0 : index
    %c2_105 = arith.constant 2 : index
    %84 = vector.load %arg13[%c0_103, %c0_104, %c2_105] : memref<2x32x422xbf16, #tpu.memory_space<vmem>>, vector<1x32x384xbf16>
    %85 = vector.shape_cast %84 : vector<1x32x384xbf16> to vector<32x384xbf16>
    %c64_106 = arith.constant 64 : index
    %c0_107 = arith.constant 0 : index
    %86 = vector.load %arg12[%c64_106, %c0_107] : memref<288x768xbf16, #tpu.memory_space<vmem>>, vector<32x384xbf16>
    tpu.vector_store %arg12[%c64_106, %c0_107], %85 {strides = array<i32>} : memref<288x768xbf16, #tpu.memory_space<vmem>>, vector<32x384xbf16>,
    %c0_108 = arith.constant 0 : index
    %c0_109 = arith.constant 0 : index
    %c18_110 = arith.constant 18 : index
    %87 = vector.load %arg13[%c0_108, %c0_109, %c18_110] : memref<2x32x422xbf16, #tpu.memory_space<vmem>>, vector<1x32x384xbf16>
    %88 = vector.shape_cast %87 : vector<1x32x384xbf16> to vector<32x384xbf16>
    %c96_111 = arith.constant 96 : index
    %c0_112 = arith.constant 0 : index
    %89 = vector.load %arg12[%c96_111, %c0_112] : memref<288x768xbf16, #tpu.memory_space<vmem>>, vector<32x384xbf16>
    tpu.vector_store %arg12[%c96_111, %c0_112], %88 {strides = array<i32>} : memref<288x768xbf16, #tpu.memory_space<vmem>>, vector<32x384xbf16>,
    %c0_113 = arith.constant 0 : index
    %c0_114 = arith.constant 0 : index
    %c19_115 = arith.constant 19 : index
    %90 = vector.load %arg13[%c0_113, %c0_114, %c19_115] : memref<2x32x422xbf16, #tpu.memory_space<vmem>>, vector<1x32x384xbf16>
    %91 = vector.shape_cast %90 : vector<1x32x384xbf16> to vector<32x384xbf16>
    %c128_116 = arith.constant 128 : index
    %c0_117 = arith.constant 0 : index
    %92 = vector.load %arg12[%c128_116, %c0_117] : memref<288x768xbf16, #tpu.memory_space<vmem>>, vector<32x384xbf16>
    tpu.vector_store %arg12[%c128_116, %c0_117], %91 {strides = array<i32>} : memref<288x768xbf16, #tpu.memory_space<vmem>>, vector<32x384xbf16>,
    %c0_118 = arith.constant 0 : index
    %c0_119 = arith.constant 0 : index
    %c20_120 = arith.constant 20 : index
    %93 = vector.load %arg13[%c0_118, %c0_119, %c20_120] : memref<2x32x422xbf16, #tpu.memory_space<vmem>>, vector<1x32x384xbf16>
    %94 = vector.shape_cast %93 : vector<1x32x384xbf16> to vector<32x384xbf16>
    %c160_121 = arith.constant 160 : index
    %c0_122 = arith.constant 0 : index
    %95 = vector.load %arg12[%c160_121, %c0_122] : memref<288x768xbf16, #tpu.memory_space<vmem>>, vector<32x384xbf16>
    tpu.vector_store %arg12[%c160_121, %c0_122], %94 {strides = array<i32>} : memref<288x768xbf16, #tpu.memory_space<vmem>>, vector<32x384xbf16>,
    %c0_123 = arith.constant 0 : index
    %c0_124 = arith.constant 0 : index
    %c36_125 = arith.constant 36 : index
    %96 = vector.load %arg13[%c0_123, %c0_124, %c36_125] : memref<2x32x422xbf16, #tpu.memory_space<vmem>>, vector<1x32x384xbf16>
    %97 = vector.shape_cast %96 : vector<1x32x384xbf16> to vector<32x384xbf16>
    %c192_126 = arith.constant 192 : index
    %c0_127 = arith.constant 0 : index
    %98 = vector.load %arg12[%c192_126, %c0_127] : memref<288x768xbf16, #tpu.memory_space<vmem>>, vector<32x384xbf16>
    tpu.vector_store %arg12[%c192_126, %c0_127], %97 {strides = array<i32>} : memref<288x768xbf16, #tpu.memory_space<vmem>>, vector<32x384xbf16>,
    %c0_128 = arith.constant 0 : index
    %c0_129 = arith.constant 0 : index
    %c37_130 = arith.constant 37 : index
    %99 = vector.load %arg13[%c0_128, %c0_129, %c37_130] : memref<2x32x422xbf16, #tpu.memory_space<vmem>>, vector<1x32x384xbf16>
    %100 = vector.shape_cast %99 : vector<1x32x384xbf16> to vector<32x384xbf16>
    %c224_131 = arith.constant 224 : index
    %c0_132 = arith.constant 0 : index
    %101 = vector.load %arg12[%c224_131, %c0_132] : memref<288x768xbf16, #tpu.memory_space<vmem>>, vector<32x384xbf16>
    tpu.vector_store %arg12[%c224_131, %c0_132], %100 {strides = array<i32>} : memref<288x768xbf16, #tpu.memory_space<vmem>>, vector<32x384xbf16>,
    %c0_133 = arith.constant 0 : index
    %c0_134 = arith.constant 0 : index
    %c38_135 = arith.constant 38 : index
    %102 = vector.load %arg13[%c0_133, %c0_134, %c38_135] : memref<2x32x422xbf16, #tpu.memory_space<vmem>>, vector<1x32x384xbf16>
    %103 = vector.shape_cast %102 : vector<1x32x384xbf16> to vector<32x384xbf16>
    %c256_136 = arith.constant 256 : index
    %c0_137 = arith.constant 0 : index
    %104 = vector.load %arg12[%c256_136, %c0_137] : memref<288x768xbf16, #tpu.memory_space<vmem>>, vector<32x384xbf16>
    tpu.vector_store %arg12[%c256_136, %c0_137], %103 {strides = array<i32>} : memref<288x768xbf16, #tpu.memory_space<vmem>>, vector<32x384xbf16>,
    %c1_138 = arith.constant 1 : index
    %c0_139 = arith.constant 0 : index
    %c0_140 = arith.constant 0 : index
    %105 = vector.load %arg13[%c1_138, %c0_139, %c0_140] : memref<2x32x422xbf16, #tpu.memory_space<vmem>>, vector<1x32x384xbf16>
    %106 = vector.shape_cast %105 : vector<1x32x384xbf16> to vector<32x384xbf16>
    %c0_141 = arith.constant 0 : index
    %c384_142 = arith.constant 384 : index
    %107 = vector.load %arg12[%c0_141, %c384_142] : memref<288x768xbf16, #tpu.memory_space<vmem>>, vector<32x384xbf16>
    tpu.vector_store %arg12[%c0_141, %c384_142], %106 {strides = array<i32>} : memref<288x768xbf16, #tpu.memory_space<vmem>>, vector<32x384xbf16>,
    %c1_143 = arith.constant 1 : index
    %c0_144 = arith.constant 0 : index
    %c1_145 = arith.constant 1 : index
    %108 = vector.load %arg13[%c1_143, %c0_144, %c1_145] : memref<2x32x422xbf16, #tpu.memory_space<vmem>>, vector<1x32x384xbf16>
    %109 = vector.shape_cast %108 : vector<1x32x384xbf16> to vector<32x384xbf16>
    %c32_146 = arith.constant 32 : index
    %c384_147 = arith.constant 384 : index
    %110 = vector.load %arg12[%c32_146, %c384_147] : memref<288x768xbf16, #tpu.memory_space<vmem>>, vector<32x384xbf16>
    tpu.vector_store %arg12[%c32_146, %c384_147], %109 {strides = array<i32>} : memref<288x768xbf16, #tpu.memory_space<vmem>>, vector<32x384xbf16>,
    %c1_148 = arith.constant 1 : index
    %c0_149 = arith.constant 0 : index
    %c2_150 = arith.constant 2 : index
    %111 = vector.load %arg13[%c1_148, %c0_149, %c2_150] : memref<2x32x422xbf16, #tpu.memory_space<vmem>>, vector<1x32x384xbf16>
    %112 = vector.shape_cast %111 : vector<1x32x384xbf16> to vector<32x384xbf16>
    %c64_151 = arith.constant 64 : index
    %c384_152 = arith.constant 384 : index
    %113 = vector.load %arg12[%c64_151, %c384_152] : memref<288x768xbf16, #tpu.memory_space<vmem>>, vector<32x384xbf16>
    tpu.vector_store %arg12[%c64_151, %c384_152], %112 {strides = array<i32>} : memref<288x768xbf16, #tpu.memory_space<vmem>>, vector<32x384xbf16>,
    %c1_153 = arith.constant 1 : index
    %c0_154 = arith.constant 0 : index
    %c18_155 = arith.constant 18 : index
    %114 = vector.load %arg13[%c1_153, %c0_154, %c18_155] : memref<2x32x422xbf16, #tpu.memory_space<vmem>>, vector<1x32x384xbf16>
    %115 = vector.shape_cast %114 : vector<1x32x384xbf16> to vector<32x384xbf16>
    %c96_156 = arith.constant 96 : index
    %c384_157 = arith.constant 384 : index
    %116 = vector.load %arg12[%c96_156, %c384_157] : memref<288x768xbf16, #tpu.memory_space<vmem>>, vector<32x384xbf16>
    tpu.vector_store %arg12[%c96_156, %c384_157], %115 {strides = array<i32>} : memref<288x768xbf16, #tpu.memory_space<vmem>>, vector<32x384xbf16>,
    %c1_158 = arith.constant 1 : index
    %c0_159 = arith.constant 0 : index
    %c19_160 = arith.constant 19 : index
    %117 = vector.load %arg13[%c1_158, %c0_159, %c19_160] : memref<2x32x422xbf16, #tpu.memory_space<vmem>>, vector<1x32x384xbf16>
    %118 = vector.shape_cast %117 : vector<1x32x384xbf16> to vector<32x384xbf16>
    %c128_161 = arith.constant 128 : index
    %c384_162 = arith.constant 384 : index
    %119 = vector.load %arg12[%c128_161, %c384_162] : memref<288x768xbf16, #tpu.memory_space<vmem>>, vector<32x384xbf16>
    tpu.vector_store %arg12[%c128_161, %c384_162], %118 {strides = array<i32>} : memref<288x768xbf16, #tpu.memory_space<vmem>>, vector<32x384xbf16>,
    %c1_163 = arith.constant 1 : index
    %c0_164 = arith.constant 0 : index
    %c20_165 = arith.constant 20 : index
    %120 = vector.load %arg13[%c1_163, %c0_164, %c20_165] : memref<2x32x422xbf16, #tpu.memory_space<vmem>>, vector<1x32x384xbf16>
    %121 = vector.shape_cast %120 : vector<1x32x384xbf16> to vector<32x384xbf16>
    %c160_166 = arith.constant 160 : index
    %c384_167 = arith.constant 384 : index
    %122 = vector.load %arg12[%c160_166, %c384_167] : memref<288x768xbf16, #tpu.memory_space<vmem>>, vector<32x384xbf16>
    tpu.vector_store %arg12[%c160_166, %c384_167], %121 {strides = array<i32>} : memref<288x768xbf16, #tpu.memory_space<vmem>>, vector<32x384xbf16>,
    %c1_168 = arith.constant 1 : index
    %c0_169 = arith.constant 0 : index
    %c36_170 = arith.constant 36 : index
    %123 = vector.load %arg13[%c1_168, %c0_169, %c36_170] : memref<2x32x422xbf16, #tpu.memory_space<vmem>>, vector<1x32x384xbf16>
    %124 = vector.shape_cast %123 : vector<1x32x384xbf16> to vector<32x384xbf16>
    %c192_171 = arith.constant 192 : index
    %c384_172 = arith.constant 384 : index
    %125 = vector.load %arg12[%c192_171, %c384_172] : memref<288x768xbf16, #tpu.memory_space<vmem>>, vector<32x384xbf16>
    tpu.vector_store %arg12[%c192_171, %c384_172], %124 {strides = array<i32>} : memref<288x768xbf16, #tpu.memory_space<vmem>>, vector<32x384xbf16>,
    %c1_173 = arith.constant 1 : index
    %c0_174 = arith.constant 0 : index
    %c37_175 = arith.constant 37 : index
    %126 = vector.load %arg13[%c1_173, %c0_174, %c37_175] : memref<2x32x422xbf16, #tpu.memory_space<vmem>>, vector<1x32x384xbf16>
    %127 = vector.shape_cast %126 : vector<1x32x384xbf16> to vector<32x384xbf16>
    %c224_176 = arith.constant 224 : index
    %c384_177 = arith.constant 384 : index
    %128 = vector.load %arg12[%c224_176, %c384_177] : memref<288x768xbf16, #tpu.memory_space<vmem>>, vector<32x384xbf16>
    tpu.vector_store %arg12[%c224_176, %c384_177], %127 {strides = array<i32>} : memref<288x768xbf16, #tpu.memory_space<vmem>>, vector<32x384xbf16>,
    %c1_178 = arith.constant 1 : index
    %c0_179 = arith.constant 0 : index
    %c38_180 = arith.constant 38 : index
    %129 = vector.load %arg13[%c1_178, %c0_179, %c38_180] : memref<2x32x422xbf16, #tpu.memory_space<vmem>>, vector<1x32x384xbf16>
    %130 = vector.shape_cast %129 : vector<1x32x384xbf16> to vector<32x384xbf16>
    %c256_181 = arith.constant 256 : index
    %c384_182 = arith.constant 384 : index
    %131 = vector.load %arg12[%c256_181, %c384_182] : memref<288x768xbf16, #tpu.memory_space<vmem>>, vector<32x384xbf16>
    tpu.vector_store %arg12[%c256_181, %c384_182], %130 {strides = array<i32>} : memref<288x768xbf16, #tpu.memory_space<vmem>>, vector<32x384xbf16>,
    %c0_183 = arith.constant 0 : index
    %c0_184 = arith.constant 0 : index
    %132 = vector.load %arg5[%c0_183, %c0_184] : memref<32x288xbf16, #tpu.memory_space<vmem>>, vector<32x288xbf16>
    %c0_185 = arith.constant 0 : index
    %c0_186 = arith.constant 0 : index
    %133 = vector.load %arg12[%c0_185, %c0_186] : memref<288x768xbf16, #tpu.memory_space<vmem>>, vector<288x768xbf16>
    %cst_187 = arith.constant dense<0.000000e+00> : vector<32x768xf32>
    %134 = tpu.matmul %132, %133, %cst_187 {dimension_numbers = #tpu.dot_dimension_numbers<[1], [0], [0], [1], [0, 0, 1, 1], [], []>} : vector<32x288xbf16>, vector<288x768xbf16>, vector<32x768xf32> -> vector<32x768xf32>
    %c0_188 = arith.constant 0 : index
    %c0_189 = arith.constant 0 : index
    %135 = vector.load %arg6[%c0_188, %c0_189] : memref<32x1xf32, #tpu.memory_space<vmem>>, vector<32x1xf32>
    %136 = vector.broadcast %135 : vector<32x1xf32> to vector<32x768xf32>
    %137 = arith.addf %134, %136 : vector<32x768xf32>
    %138 = vector.broadcast %0 : vector<1x768xf32> to vector<32x768xf32>
    %139 = arith.mulf %137, %138 : vector<32x768xf32>
    %140 = vector.extract_strided_slice %139 {offsets = [0, 0], sizes = [32, 384], strides = [1, 1]} : vector<32x768xf32> to vector<32x384xf32>
    %cst_190 = arith.constant dense<0.000000e+00> : vector<32xf32>
    %141 = vector.multi_reduction <add>, %140, %cst_190 [1] : vector<32x384xf32> to vector<32xf32>
    %142 = vector.shape_cast %141 : vector<32xf32> to vector<32x1xf32>
    %cst_191 = arith.constant 3.906250e-03 : f32
    %143 = vector.broadcast %cst_191 : f32 to vector<32x1xf32>
    %144 = arith.mulf %142, %143 : vector<32x1xf32>
    %c0_192 = arith.constant 0 : index
    %c0_193 = arith.constant 0 : index
    %145 = vector.load %arg7[%c0_192, %c0_193] : memref<32x2xf32, #tpu.memory_space<vmem>>, vector<32x2xf32>
    %146 = vector.broadcast %144 : vector<32x1xf32> to vector<32x2xf32>
    %147 = arith.mulf %145, %146 : vector<32x2xf32>
    %cst_194 = arith.constant dense<0.000000e+00> : vector<2xf32>
    %148 = vector.multi_reduction <add>, %147, %cst_194 [0] : vector<32x2xf32> to vector<2xf32>
    %149 = vector.shape_cast %148 : vector<2xf32> to vector<1x2xf32>
    %c0_195 = arith.constant 0 : index
    %c0_196 = arith.constant 0 : index
    %150 = vector.load %arg8[%c0_195, %c0_196] : memref<1x2xf32, #tpu.memory_space<vmem>>, vector<1x2xf32>
    %151 = arith.addf %149, %150 : vector<1x2xf32>
    %cst_197 = arith.constant 0.000000e+00 : f32
    %152 = vector.broadcast %cst_197 : f32 to vector<1x2xf32>
    %153 = arith.maximumf %151, %152 : vector<1x2xf32>
    %c0_198 = arith.constant 0 : index
    %c0_199 = arith.constant 0 : index
    %154 = vector.load %arg9[%c0_198, %c0_199] : memref<32x2xf32, #tpu.memory_space<vmem>>, vector<32x2xf32>
    %155 = vector.broadcast %153 : vector<1x2xf32> to vector<32x2xf32>
    %156 = arith.mulf %154, %155 : vector<32x2xf32>
    %cst_200 = arith.constant dense<0.000000e+00> : vector<32xf32>
    %157 = vector.multi_reduction <add>, %156, %cst_200 [1] : vector<32x2xf32> to vector<32xf32>
    %158 = vector.shape_cast %157 : vector<32xf32> to vector<32x1xf32>
    %c0_201 = arith.constant 0 : index
    %c0_202 = arith.constant 0 : index
    %159 = vector.load %arg10[%c0_201, %c0_202] : memref<32x1xf32, #tpu.memory_space<vmem>>, vector<32x1xf32>
    %160 = arith.addf %158, %159 : vector<32x1xf32>
    %cst_203 = arith.constant 0.000000e+00 : f32
    %161 = vector.broadcast %cst_203 : f32 to vector<32x1xf32>
    %162 = arith.subf %161, %160 : vector<32x1xf32>
    %163 = math.exp %162 : vector<32x1xf32>
    %cst_204 = arith.constant 1.000000e+00 : f32
    %164 = vector.broadcast %cst_204 : f32 to vector<32x1xf32>
    %165 = arith.addf %164, %163 : vector<32x1xf32>
    %cst_205 = arith.constant 1.000000e+00 : f32
    %166 = vector.broadcast %cst_205 : f32 to vector<32x1xf32>
    %167 = arith.divf %166, %165 : vector<32x1xf32>
    %c0_206 = arith.constant 0 : index
    %c0_207 = arith.constant 0 : index
    %c19_208 = arith.constant 19 : index
    %168 = vector.load %arg1[%c0_206, %c0_207, %c19_208] : memref<2x32x422xbf16, #tpu.memory_space<vmem>>, vector<1x32x384xbf16>
    %169 = vector.shape_cast %168 : vector<1x32x384xbf16> to vector<32x384xbf16>
    %170 = arith.extf %169 : vector<32x384xbf16> to vector<32x384xf32>
    %171 = vector.broadcast %167 : vector<32x1xf32> to vector<32x384xf32>
    %172 = arith.mulf %140, %171 : vector<32x384xf32>
    %173 = arith.addf %172, %170 : vector<32x384xf32>
    %c0_209 = arith.constant 0 : index
    %c0_210 = arith.constant 0 : index
    %c0_211 = arith.constant 0 : index
    %174 = vector.load %arg11[%c0_209, %c0_210, %c0_211] : memref<2x32x384xf32, #tpu.memory_space<vmem>>, vector<1x32x384xf32>
    %175 = vector.shape_cast %174 : vector<1x32x384xf32> to vector<32x384xf32>
    %176 = vector.shape_cast %173 : vector<32x384xf32> to vector<1x32x384xf32>
    tpu.vector_store %arg11[%c0_209, %c0_210, %c0_211], %176 {strides = array<i32>} : memref<2x32x384xf32, #tpu.memory_space<vmem>>, vector<1x32x384xf32>,
    %177 = vector.extract_strided_slice %139 {offsets = [0, 384], sizes = [32, 384], strides = [1, 1]} : vector<32x768xf32> to vector<32x384xf32>
    %cst_212 = arith.constant dense<0.000000e+00> : vector<32xf32>
    %178 = vector.multi_reduction <add>, %177, %cst_212 [1] : vector<32x384xf32> to vector<32xf32>
    %179 = vector.shape_cast %178 : vector<32xf32> to vector<32x1xf32>
    %cst_213 = arith.constant 3.906250e-03 : f32
    %180 = vector.broadcast %cst_213 : f32 to vector<32x1xf32>
    %181 = arith.mulf %179, %180 : vector<32x1xf32>
    %c0_214 = arith.constant 0 : index
    %c0_215 = arith.constant 0 : index
    %182 = vector.load %arg7[%c0_214, %c0_215] : memref<32x2xf32, #tpu.memory_space<vmem>>, vector<32x2xf32>
    %183 = vector.broadcast %181 : vector<32x1xf32> to vector<32x2xf32>
    %184 = arith.mulf %182, %183 : vector<32x2xf32>
    %cst_216 = arith.constant dense<0.000000e+00> : vector<2xf32>
    %185 = vector.multi_reduction <add>, %184, %cst_216 [0] : vector<32x2xf32> to vector<2xf32>
    %186 = vector.shape_cast %185 : vector<2xf32> to vector<1x2xf32>
    %c0_217 = arith.constant 0 : index
    %c0_218 = arith.constant 0 : index
    %187 = vector.load %arg8[%c0_217, %c0_218] : memref<1x2xf32, #tpu.memory_space<vmem>>, vector<1x2xf32>
    %188 = arith.addf %186, %187 : vector<1x2xf32>
    %cst_219 = arith.constant 0.000000e+00 : f32
    %189 = vector.broadcast %cst_219 : f32 to vector<1x2xf32>
    %190 = arith.maximumf %188, %189 : vector<1x2xf32>
    %c0_220 = arith.constant 0 : index
    %c0_221 = arith.constant 0 : index
    %191 = vector.load %arg9[%c0_220, %c0_221] : memref<32x2xf32, #tpu.memory_space<vmem>>, vector<32x2xf32>
    %192 = vector.broadcast %190 : vector<1x2xf32> to vector<32x2xf32>
    %193 = arith.mulf %191, %192 : vector<32x2xf32>
    %cst_222 = arith.constant dense<0.000000e+00> : vector<32xf32>
    %194 = vector.multi_reduction <add>, %193, %cst_222 [1] : vector<32x2xf32> to vector<32xf32>
    %195 = vector.shape_cast %194 : vector<32xf32> to vector<32x1xf32>
    %c0_223 = arith.constant 0 : index
    %c0_224 = arith.constant 0 : index
    %196 = vector.load %arg10[%c0_223, %c0_224] : memref<32x1xf32, #tpu.memory_space<vmem>>, vector<32x1xf32>
    %197 = arith.addf %195, %196 : vector<32x1xf32>
    %cst_225 = arith.constant 0.000000e+00 : f32
    %198 = vector.broadcast %cst_225 : f32 to vector<32x1xf32>
    %199 = arith.subf %198, %197 : vector<32x1xf32>
    %200 = math.exp %199 : vector<32x1xf32>
    %cst_226 = arith.constant 1.000000e+00 : f32
    %201 = vector.broadcast %cst_226 : f32 to vector<32x1xf32>
    %202 = arith.addf %201, %200 : vector<32x1xf32>
    %cst_227 = arith.constant 1.000000e+00 : f32
    %203 = vector.broadcast %cst_227 : f32 to vector<32x1xf32>
    %204 = arith.divf %203, %202 : vector<32x1xf32>
    %c1_228 = arith.constant 1 : index
    %c0_229 = arith.constant 0 : index
    %c19_230 = arith.constant 19 : index
    %205 = vector.load %arg1[%c1_228, %c0_229, %c19_230] : memref<2x32x422xbf16, #tpu.memory_space<vmem>>, vector<1x32x384xbf16>
    %206 = vector.shape_cast %205 : vector<1x32x384xbf16> to vector<32x384xbf16>
    %207 = arith.extf %206 : vector<32x384xbf16> to vector<32x384xf32>
    %208 = vector.broadcast %204 : vector<32x1xf32> to vector<32x384xf32>
    %209 = arith.mulf %177, %208 : vector<32x384xf32>
    %210 = arith.addf %209, %207 : vector<32x384xf32>
    %c1_231 = arith.constant 1 : index
    %c0_232 = arith.constant 0 : index
    %c0_233 = arith.constant 0 : index
    %211 = vector.load %arg11[%c1_231, %c0_232, %c0_233] : memref<2x32x384xf32, #tpu.memory_space<vmem>>, vector<1x32x384xf32>
    %212 = vector.shape_cast %211 : vector<1x32x384xf32> to vector<32x384xf32>
    %213 = vector.shape_cast %210 : vector<32x384xf32> to vector<1x32x384xf32>
    tpu.vector_store %arg11[%c1_231, %c0_232, %c0_233], %213 {strides = array<i32>} : memref<2x32x384xf32, #tpu.memory_space<vmem>>, vector<1x32x384xf32>,
    return
  }
  func.func @transform_0(%arg0: i32) -> (i32, i32, i32) {
    %c0_i32 = arith.constant 0 : i32
    %c0_i32_0 = arith.constant 0 : i32
    %c0_i32_1 = arith.constant 0 : i32
    return %arg0, %c0_i32, %c0_i32_0 : i32, i32, i32
  }
  func.func @transform_1(%arg0: i32) -> (i32, i32) {
    %c0_i32 = arith.constant 0 : i32
    %c0_i32_0 = arith.constant 0 : i32
    %c0_i32_1 = arith.constant 0 : i32
    return %c0_i32, %c0_i32_0 : i32, i32
  }
  func.func @transform_2(%arg0: i32) -> (i32, i32) {
    %c0_i32 = arith.constant 0 : i32
    %c0_i32_0 = arith.constant 0 : i32
    %c0_i32_1 = arith.constant 0 : i32
    return %c0_i32, %c0_i32_0 : i32, i32
  }
  func.func @transform_3(%arg0: i32) -> (i32, i32) {
    %c0_i32 = arith.constant 0 : i32
    %c0_i32_0 = arith.constant 0 : i32
    %c0_i32_1 = arith.constant 0 : i32
    return %c0_i32, %c0_i32_0 : i32, i32
  }
  func.func @transform_4(%arg0: i32) -> (i32, i32) {
    %c0_i32 = arith.constant 0 : i32
    %c0_i32_0 = arith.constant 0 : i32
    %c0_i32_1 = arith.constant 0 : i32
    return %c0_i32, %c0_i32_0 : i32, i32
  }
  func.func @transform_5(%arg0: i32) -> (i32, i32) {
    %c0_i32 = arith.constant 0 : i32
    %c0_i32_0 = arith.constant 0 : i32
    %c0_i32_1 = arith.constant 0 : i32
    return %c0_i32, %c0_i32_0 : i32, i32
  }
  func.func @transform_6(%arg0: i32) -> (i32, i32) {
    %c0_i32 = arith.constant 0 : i32
    %c0_i32_0 = arith.constant 0 : i32
    %c0_i32_1 = arith.constant 0 : i32
    return %c0_i32, %c0_i32_0 : i32, i32
  }
  func.func @transform_7(%arg0: i32) -> (i32, i32) {
    %c0_i32 = arith.constant 0 : i32
    %c0_i32_0 = arith.constant 0 : i32
    %c0_i32_1 = arith.constant 0 : i32
    return %c0_i32, %c0_i32_0 : i32, i32
  }
  func.func @transform_8(%arg0: i32) -> (i32, i32) {
    %c0_i32 = arith.constant 0 : i32
    %c0_i32_0 = arith.constant 0 : i32
    %c0_i32_1 = arith.constant 0 : i32
    return %c0_i32, %c0_i32_0 : i32, i32
  }
  func.func @transform_9(%arg0: i32) -> (i32, i32) {
    %c0_i32 = arith.constant 0 : i32
    %c0_i32_0 = arith.constant 0 : i32
    %c0_i32_1 = arith.constant 0 : i32
    return %c0_i32, %c0_i32_0 : i32, i32
  }
  func.func @transform_10(%arg0: i32) -> (i32, i32, i32) {
    %c0_i32 = arith.constant 0 : i32
    %c0_i32_0 = arith.constant 0 : i32
    %c0_i32_1 = arith.constant 0 : i32
    return %arg0, %c0_i32, %c0_i32_0 : i32, i32, i32
  }
}

</mosaic_0001>

<llo_original>
// kernel: tpu_custom_call.1
$region0: #{tpu_custom_call.1}
  #allocation0 [shape = 'u32[]', space=smem, size = 0x4, offset = 0x4, fixed_abs, tag = 'smem constant byte address 0x4 - core index']
  #allocation1 [shape = 'u32[72,128]{1,0:T(1,128)}', space=vmem, size = 0x9000, scoped, tag = 'internal scratch']
  #allocation2 [shape = 'bf16[288,768]{1,0:T(8,128)(2,1)}', space=vmem, size = 0x6c000, scoped, tag = 'scratch operand']
  #allocation3 [shape = 'bf16[2,32,422]{2,1,0:T(8,128)(2,1)}', space=vmem, size = 0x10000, scoped, tag = 'scratch operand']
  %s0 = inlined_call_operand.hbm [shape: bf16[4,32,422], index: 0, kind: input, shape index: {}]
  %s1 = inlined_call_operand.vmem [shape: f32[1,768], index: 1, kind: input, shape index: {}]
  %s2 = inlined_call_operand.vmem [shape: bf16[32,288], index: 2, kind: input, shape index: {}]
  %s3 = inlined_call_operand.vmem [shape: f32[32,1], index: 3, kind: input, shape index: {}]
  %s4 = inlined_call_operand.vmem [shape: bf16[32,288], index: 4, kind: input, shape index: {}]
  %s5 = inlined_call_operand.vmem [shape: f32[32,1], index: 5, kind: input, shape index: {}]
  %s6 = inlined_call_operand.vmem [shape: f32[32,2], index: 6, kind: input, shape index: {}]
  %s7 = inlined_call_operand.vmem [shape: f32[1,2], index: 7, kind: input, shape index: {}]
  %s8 = inlined_call_operand.vmem [shape: f32[32,2], index: 8, kind: input, shape index: {}]
  %s9 = inlined_call_operand.vmem [shape: f32[32,1], index: 9, kind: input, shape index: {}]
  %s10 = inlined_call_operand.hbm [shape: f32[4,32,384], index: 10, kind: output, shape index: {}]
  %s11 = sld [smem:[#allocation0]]
  $region77: #{tpu_custom_call.1} parent=0
    _
  %s13 = ssub.s32 1, %s11
  %s14 = scalar_select 0, %s13, %s11
  $region1: #{tpu_custom_call.1} parent=0
    #allocation4 [shape = 'u8[131072]{0}', space=vmem, size = 0x20000, scoped, tag = 'input window, operand 0']
    #allocation5 [shape = 's32[2]{0}', space=sflag, size = 0x8, scoped, tag = 'scoped memory for tpu_custom_call.1']
    #allocation6 [shape = 's32[2]{0}', space=sflag, size = 0x8, scoped, tag = 'scoped memory for tpu_custom_call.1']
    #allocation7 [shape = 'u8[196608]{0}', space=vmem, size = 0x30000, scoped, tag = 'output window, operand 0']
    %15 = vsyncpa [#allocation5], 0
    %s16 = scalar_lea.sflag [#allocation5], 1
    %17 = vsyncpa %s16, 0
    %18 = vsyncpa [#allocation6], 0
    %s19 = scalar_lea.sflag [#allocation6], 1
    %20 = vsyncpa %s19, 0
    loop: start=0, step=1, limit=4
    $region2: #{tpu_custom_call.1} parent=1 // loop_pre_header
      _
    $region3: #{tpu_custom_call.1} parent=1 // loop_header
      %s22 = sphi 0, %s26
      %p23 = scmp.ge.s32.totalorder %s22, 4
      %s32 = sphi 0, %s34
      %s35 = sphi 0, %s32
      %s36 = sphi 0, %s35
      %s52 = sphi 0, %s36
      %s56 = sphi 0, %s56
      %s58 = sphi 0, %s56
      %s59 = sphi 0, %s58
      %s73 = sphi 0, %s59
      %s77 = sphi 0, %s77
      %s79 = sphi 0, %s77
      %s80 = sphi 0, %s79
      %s94 = sphi 0, %s80
      %s98 = sphi 0, %s98
      %s100 = sphi 0, %s98
      %s101 = sphi 0, %s100
      %s115 = sphi 0, %s101
      %s119 = sphi 0, %s119
      %s121 = sphi 0, %s119
      %s122 = sphi 0, %s121
      %s136 = sphi 0, %s122
      %s140 = sphi 0, %s140
      %s142 = sphi 0, %s140
      %s143 = sphi 0, %s142
      %s157 = sphi 0, %s143
      %s161 = sphi 0, %s161
      %s163 = sphi 0, %s161
      %s164 = sphi 0, %s163
      %s178 = sphi 0, %s164
      %s182 = sphi 0, %s182
      %s184 = sphi 0, %s182
      %s185 = sphi 0, %s184
      %s199 = sphi 0, %s185
      %s203 = sphi 0, %s203
      %s205 = sphi 0, %s203
      %s206 = sphi 0, %s205
      %s220 = sphi 0, %s206
      %s224 = sphi 0, %s224
      %s226 = sphi 0, %s224
      %s227 = sphi 0, %s226
      %s241 = sphi 0, %s227
      %s247 = sphi 0, %s249
      %s250 = sphi 0, %s247
      %s251 = sphi 0, %s250
      %s267 = sphi 0, %s251
    $region4: #{tpu_custom_call.1} parent=1 // loop_header_branch
      %25 = sbr.rel (%p23) target = $region8
    $region5: #{tpu_custom_call.1} parent=1 // loop_body
      %s27 = ssub.s32 %s22, 1
      %s28 = ssub.s32 %s22, 2
      %s29 = sadd.s32 %s22, 1
      %s30 = ssub.s32 %s22, %s29
      %p31 = scmp.eq.s32.totalorder %s30, 0
      %s33 = sadd.s32 %s32, 1
      %s34 = scalar_select %p31, %s32, %s33
      %p37 = pneg %p31
      %p38 = scmp.eq.s32.totalorder %s22, 1
      %p39 = por %p37, %p38
      %p40 = scmp.ne.s32.totalorder %s32, %s35
      %p41 = scmp.eq.s32.totalorder %s22, 0
      %p42 = por %p40, %p41
      %p43 = scmp.ne.s32.totalorder %s32, %s35
      %p44 = scmp.eq.s32.totalorder %s27, 1
      %p45 = por %p43, %p44
      %p46 = scmp.ne.s32.totalorder %s35, %s36
      %p47 = scmp.eq.s32.totalorder %s27, 0
      %p48 = por %p46, %p47
      %p49 = scmp.ne.s32.totalorder %s35, %s36
      %p50 = scmp.eq.s32.totalorder %s28, 1
      %p51 = por %p49, %p50
      %p53 = scmp.ne.s32.totalorder %s36, %s52
      %p54 = scmp.eq.s32.totalorder %s28, 0
      %p55 = por %p53, %p54
      %s57 = sadd.s32 %s56, 1
      %p60 = scmp.eq.s32.totalorder %s22, 1
      %p61 = scmp.ne.s32.totalorder %s56, %s58
      %p62 = scmp.eq.s32.totalorder %s22, 0
      %p63 = por %p61, %p62
      %p64 = scmp.ne.s32.totalorder %s56, %s58
      %p65 = scmp.eq.s32.totalorder %s27, 1
      %p66 = por %p64, %p65
      %p67 = scmp.ne.s32.totalorder %s58, %s59
      %p68 = scmp.eq.s32.totalorder %s27, 0
      %p69 = por %p67, %p68
      %p70 = scmp.ne.s32.totalorder %s58, %s59
      %p71 = scmp.eq.s32.totalorder %s28, 1
      %p72 = por %p70, %p71
      %p74 = scmp.ne.s32.totalorder %s59, %s73
      %p75 = scmp.eq.s32.totalorder %s28, 0
      %p76 = por %p74, %p75
      %s78 = sadd.s32 %s77, 1
      %p81 = scmp.eq.s32.totalorder %s22, 1
      %p82 = scmp.ne.s32.totalorder %s77, %s79
      %p83 = scmp.eq.s32.totalorder %s22, 0
      %p84 = por %p82, %p83
      %p85 = scmp.ne.s32.totalorder %s77, %s79
      %p86 = scmp.eq.s32.totalorder %s27, 1
      %p87 = por %p85, %p86
      %p88 = scmp.ne.s32.totalorder %s79, %s80
      %p89 = scmp.eq.s32.totalorder %s27, 0
      %p90 = por %p88, %p89
      %p91 = scmp.ne.s32.totalorder %s79, %s80
      %p92 = scmp.eq.s32.totalorder %s28, 1
      %p93 = por %p91, %p92
      %p95 = scmp.ne.s32.totalorder %s80, %s94
      %p96 = scmp.eq.s32.totalorder %s28, 0
      %p97 = por %p95, %p96
      %s99 = sadd.s32 %s98, 1
      %p102 = scmp.eq.s32.totalorder %s22, 1
      %p103 = scmp.ne.s32.totalorder %s98, %s100
      %p104 = scmp.eq.s32.totalorder %s22, 0
      %p105 = por %p103, %p104
      %p106 = scmp.ne.s32.totalorder %s98, %s100
      %p107 = scmp.eq.s32.totalorder %s27, 1
      %p108 = por %p106, %p107
      %p109 = scmp.ne.s32.totalorder %s100, %s101
      %p110 = scmp.eq.s32.totalorder %s27, 0
      %p111 = por %p109, %p110
      %p112 = scmp.ne.s32.totalorder %s100, %s101
      %p113 = scmp.eq.s32.totalorder %s28, 1
      %p114 = por %p112, %p113
      %p116 = scmp.ne.s32.totalorder %s101, %s115
      %p117 = scmp.eq.s32.totalorder %s28, 0
      %p118 = por %p116, %p117
      %s120 = sadd.s32 %s119, 1
      %p123 = scmp.eq.s32.totalorder %s22, 1
      %p124 = scmp.ne.s32.totalorder %s119, %s121
      %p125 = scmp.eq.s32.totalorder %s22, 0
      %p126 = por %p124, %p125
      %p127 = scmp.ne.s32.totalorder %s119, %s121
      %p128 = scmp.eq.s32.totalorder %s27, 1
      %p129 = por %p127, %p128
      %p130 = scmp.ne.s32.totalorder %s121, %s122
      %p131 = scmp.eq.s32.totalorder %s27, 0
      %p132 = por %p130, %p131
      %p133 = scmp.ne.s32.totalorder %s121, %s122
      %p134 = scmp.eq.s32.totalorder %s28, 1
      %p135 = por %p133, %p134
      %p137 = scmp.ne.s32.totalorder %s122, %s136
      %p138 = scmp.eq.s32.totalorder %s28, 0
      %p139 = por %p137, %p138
      %s141 = sadd.s32 %s140, 1
      %p144 = scmp.eq.s32.totalorder %s22, 1
      %p145 = scmp.ne.s32.totalorder %s140, %s142
      %p146 = scmp.eq.s32.totalorder %s22, 0
      %p147 = por %p145, %p146
      %p148 = scmp.ne.s32.totalorder %s140, %s142
      %p149 = scmp.eq.s32.totalorder %s27, 1
      %p150 = por %p148, %p149
      %p151 = scmp.ne.s32.totalorder %s142, %s143
      %p152 = scmp.eq.s32.totalorder %s27, 0
      %p153 = por %p151, %p152
      %p154 = scmp.ne.s32.totalorder %s142, %s143
      %p155 = scmp.eq.s32.totalorder %s28, 1
      %p156 = por %p154, %p155
      %p158 = scmp.ne.s32.totalorder %s143, %s157
      %p159 = scmp.eq.s32.totalorder %s28, 0
      %p160 = por %p158, %p159
      %s162 = sadd.s32 %s161, 1
      %p165 = scmp.eq.s32.totalorder %s22, 1
      %p166 = scmp.ne.s32.totalorder %s161, %s163
      %p167 = scmp.eq.s32.totalorder %s22, 0
      %p168 = por %p166, %p167
      %p169 = scmp.ne.s32.totalorder %s161, %s163
      %p170 = scmp.eq.s32.totalorder %s27, 1
      %p171 = por %p169, %p170
      %p172 = scmp.ne.s32.totalorder %s163, %s164
      %p173 = scmp.eq.s32.totalorder %s27, 0
      %p174 = por %p172, %p173
      %p175 = scmp.ne.s32.totalorder %s163, %s164
      %p176 = scmp.eq.s32.totalorder %s28, 1
      %p177 = por %p175, %p176
      %p179 = scmp.ne.s32.totalorder %s164, %s178
      %p180 = scmp.eq.s32.totalorder %s28, 0
      %p181 = por %p179, %p180
      %s183 = sadd.s32 %s182, 1
      %p186 = scmp.eq.s32.totalorder %s22, 1
      %p187 = scmp.ne.s32.totalorder %s182, %s184
      %p188 = scmp.eq.s32.totalorder %s22, 0
      %p189 = por %p187, %p188
      %p190 = scmp.ne.s32.totalorder %s182, %s184
      %p191 = scmp.eq.s32.totalorder %s27, 1
      %p192 = por %p190, %p191
      %p193 = scmp.ne.s32.totalorder %s184, %s185
      %p194 = scmp.eq.s32.totalorder %s27, 0
      %p195 = por %p193, %p194
      %p196 = scmp.ne.s32.totalorder %s184, %s185
      %p197 = scmp.eq.s32.totalorder %s28, 1
      %p198 = por %p196, %p197
      %p200 = scmp.ne.s32.totalorder %s185, %s199
      %p201 = scmp.eq.s32.totalorder %s28, 0
      %p202 = por %p200, %p201
      %s204 = sadd.s32 %s203, 1
      %p207 = scmp.eq.s32.totalorder %s22, 1
      %p208 = scmp.ne.s32.totalorder %s203, %s205
      %p209 = scmp.eq.s32.totalorder %s22, 0
      %p210 = por %p208, %p209
      %p211 = scmp.ne.s32.totalorder %s203, %s205
      %p212 = scmp.eq.s32.totalorder %s27, 1
      %p213 = por %p211, %p212
      %p214 = scmp.ne.s32.totalorder %s205, %s206
      %p215 = scmp.eq.s32.totalorder %s27, 0
      %p216 = por %p214, %p215
      %p217 = scmp.ne.s32.totalorder %s205, %s206
      %p218 = scmp.eq.s32.totalorder %s28, 1
      %p219 = por %p217, %p218
      %p221 = scmp.ne.s32.totalorder %s206, %s220
      %p222 = scmp.eq.s32.totalorder %s28, 0
      %p223 = por %p221, %p222
      %s225 = sadd.s32 %s224, 1
      %p228 = scmp.eq.s32.totalorder %s22, 1
      %p229 = scmp.ne.s32.totalorder %s224, %s226
      %p230 = scmp.eq.s32.totalorder %s22, 0
      %p231 = por %p229, %p230
      %p232 = scmp.ne.s32.totalorder %s224, %s226
      %p233 = scmp.eq.s32.totalorder %s27, 1
      %p234 = por %p232, %p233
      %p235 = scmp.ne.s32.totalorder %s226, %s227
      %p236 = scmp.eq.s32.totalorder %s27, 0
      %p237 = por %p235, %p236
      %p238 = scmp.ne.s32.totalorder %s226, %s227
      %p239 = scmp.eq.s32.totalorder %s28, 1
      %p240 = por %p238, %p239
      %p242 = scmp.ne.s32.totalorder %s227, %s241
      %p243 = scmp.eq.s32.totalorder %s28, 0
      %p244 = por %p242, %p243
      %s245 = ssub.s32 %s22, %s29
      %p246 = scmp.eq.s32.totalorder %s245, 0
      %s248 = sadd.s32 %s247, 1
      %s249 = scalar_select %p246, %s247, %s248
      %p252 = pneg %p246
      %p253 = scmp.eq.s32.totalorder %s22, 1
      %p254 = por %p252, %p253
      %p255 = scmp.ne.s32.totalorder %s247, %s250
      %p256 = scmp.eq.s32.totalorder %s22, 0
      %p257 = por %p255, %p256
      %p258 = scmp.ne.s32.totalorder %s247, %s250
      %p259 = scmp.eq.s32.totalorder %s27, 1
      %p260 = por %p258, %p259
      %p261 = scmp.ne.s32.totalorder %s250, %s251
      %p262 = scmp.eq.s32.totalorder %s27, 0
      %p263 = por %p261, %p262
      %p264 = scmp.ne.s32.totalorder %s250, %s251
      %p265 = scmp.eq.s32.totalorder %s28, 1
      %p266 = por %p264, %p265
      %p268 = scmp.ne.s32.totalorder %s251, %s267
      %p269 = scmp.eq.s32.totalorder %s28, 0
      %p270 = por %p268, %p269
      %p271 = scmp.le.s32.totalorder 1, %s22
      %p272 = scmp.lt.s32.totalorder %s22, 3
      %p273 = pnand %p271, %p272
      %p274 = pneg %p273
      // Predicated region
      $region9: #{tpu_custom_call.1} parent=5 // pred_check
        _
      $region10: #{tpu_custom_call.1} parent=5 // pred_check_branch
        %276 = sbr.rel (%p273) target = $region12
      $region11: #{tpu_custom_call.1} parent=5 // pred_region
        %s277 = ssub.s32 %s22, 1
        // Predicated region
        $region13: #{tpu_custom_call.1} parent=11 // pred_check
          %p278 = pneg %p69
        $region14: #{tpu_custom_call.1} parent=11 // pred_check_branch
          %280 = sbr.rel (%p278) target = $region16
        $region15: #{tpu_custom_call.1} parent=11 // pred_region
          _
        $region16: #{tpu_custom_call.1} parent=11 // pred_fallthru
          _
        // Predicated region
        $region17: #{tpu_custom_call.1} parent=11 // pred_check
          %p281 = pneg %p90
        $region18: #{tpu_custom_call.1} parent=11 // pred_check_branch
          %283 = sbr.rel (%p281) target = $region20
        $region19: #{tpu_custom_call.1} parent=11 // pred_region
          _
        $region20: #{tpu_custom_call.1} parent=11 // pred_fallthru
          _
        // Predicated region
        $region21: #{tpu_custom_call.1} parent=11 // pred_check
          %p284 = pneg %p111
        $region22: #{tpu_custom_call.1} parent=11 // pred_check_branch
          %286 = sbr.rel (%p284) target = $region24
        $region23: #{tpu_custom_call.1} parent=11 // pred_region
          _
        $region24: #{tpu_custom_call.1} parent=11 // pred_fallthru
          _
        // Predicated region
        $region25: #{tpu_custom_call.1} parent=11 // pred_check
          %p287 = pneg %p132
        $region26: #{tpu_custom_call.1} parent=11 // pred_check_branch
          %289 = sbr.rel (%p287) target = $region28
        $region27: #{tpu_custom_call.1} parent=11 // pred_region
          _
        $region28: #{tpu_custom_call.1} parent=11 // pred_fallthru
          _
        // Predicated region
        $region29: #{tpu_custom_call.1} parent=11 // pred_check
          %p290 = pneg %p153
        $region30: #{tpu_custom_call.1} parent=11 // pred_check_branch
          %292 = sbr.rel (%p290) target = $region32
        $region31: #{tpu_custom_call.1} parent=11 // pred_region
          _
        $region32: #{tpu_custom_call.1} parent=11 // pred_fallthru
          _
        // Predicated region
        $region33: #{tpu_custom_call.1} parent=11 // pred_check
          %p293 = pneg %p174
        $region34: #{tpu_custom_call.1} parent=11 // pred_check_branch
          %295 = sbr.rel (%p293) target = $region36
        $region35: #{tpu_custom_call.1} parent=11 // pred_region
          _
        $region36: #{tpu_custom_call.1} parent=11 // pred_fallthru
          _
        // Predicated region
        $region37: #{tpu_custom_call.1} parent=11 // pred_check
          %p296 = pneg %p195
        $region38: #{tpu_custom_call.1} parent=11 // pred_check_branch
          %298 = sbr.rel (%p296) target = $region40
        $region39: #{tpu_custom_call.1} parent=11 // pred_region
          _
        $region40: #{tpu_custom_call.1} parent=11 // pred_fallthru
          _
        // Predicated region
        $region41: #{tpu_custom_call.1} parent=11 // pred_check
          %p299 = pneg %p216
        $region42: #{tpu_custom_call.1} parent=11 // pred_check_branch
          %301 = sbr.rel (%p299) target = $region44
        $region43: #{tpu_custom_call.1} parent=11 // pred_region
          _
        $region44: #{tpu_custom_call.1} parent=11 // pred_fallthru
          _
        // Predicated region
        $region45: #{tpu_custom_call.1} parent=11 // pred_check
          %p302 = pneg %p237
        $region46: #{tpu_custom_call.1} parent=11 // pred_check_branch
          %304 = sbr.rel (%p302) target = $region48
        $region47: #{tpu_custom_call.1} parent=11 // pred_region
          _
        $region48: #{tpu_custom_call.1} parent=11 // pred_fallthru
          _
      $region12: #{tpu_custom_call.1} parent=5 // pred_fallthru
        _
      %p305 = scmp.lt.s32.totalorder %s22, 2
      // Predicated region
      $region49: #{tpu_custom_call.1} parent=5 // pred_check
        %p306 = pneg %p305
      $region50: #{tpu_custom_call.1} parent=5 // pred_check_branch
        %308 = sbr.rel (%p306) target = $region52
      $region51: #{tpu_custom_call.1} parent=5 // pred_region
        // Predicated region
        $region53: #{tpu_custom_call.1} parent=51 // pred_check
          %p309 = pneg %p42
        $region54: #{tpu_custom_call.1} parent=51 // pred_check_branch
          %311 = sbr.rel (%p309) target = $region56
        $region55: #{tpu_custom_call.1} parent=51 // pred_region
          %s312 = sand.u32 %s32, 1
          %s313 = scalar_lea.sflag [#allocation5], %s312
          %s314 = sand.u32 %s32, 1
          %s315 = smul.addr %s314, 128
          %s316 = scalar_lea.vmem [#allocation4], %s315
          %s317 = smul.u32 2, %s22
          %319 = vsyncadd %s313, 0
          %s320 = smul.addr %s317, 16
          %s321 = smul.addr %s320, 4
          %s322 = scalar_lea.hbm %s0, %s321
          %s323 = sshll.u32 %s322, 4
          %s324 = int_to_ptr.hbm [resolvable:$true] %s323
          %s325 = sshll.u32 %s316, 4
          %s326 = int_to_ptr.vmem [resolvable:$true] %s325
          %331 = dma.hbm_to_vmem [thread:$0]  %s324, 2048, %s326, %s313, 256, 256, 16
        $region56: #{tpu_custom_call.1} parent=51 // pred_fallthru
          _
      $region52: #{tpu_custom_call.1} parent=5 // pred_fallthru
        _
      %p332 = scmp.le.s32.totalorder 1, %s22
      %p333 = scmp.lt.s32.totalorder %s22, 3
      %p334 = pnand %p332, %p333
      %p335 = pneg %p334
      // Predicated region
      $region57: #{tpu_custom_call.1} parent=5 // pred_check
        _
      $region58: #{tpu_custom_call.1} parent=5 // pred_check_branch
        %337 = sbr.rel (%p334) target = $region60
      $region59: #{tpu_custom_call.1} parent=5 // pred_region
        %s338 = ssub.s32 %s22, 1
        %s339 = sand.u32 %s35, 1
        %s340 = scalar_lea.sflag [#allocation5], %s339
        %s341 = sand.u32 %s35, 1
        %s342 = smul.addr %s341, 128
        %s343 = scalar_lea.vmem [#allocation4], %s342
        // Predicated region
        $region61: #{tpu_custom_call.1} parent=59 // pred_check
          %p344 = pneg %p48
        $region62: #{tpu_custom_call.1} parent=59 // pred_check_branch
          %346 = sbr.rel (%p344) target = $region64
        $region63: #{tpu_custom_call.1} parent=59 // pred_region
          %348 = dma.done %s340, 2048
        $region64: #{tpu_custom_call.1} parent=59 // pred_fallthru
          _
        %s349 = sand.u32 %s35, 1
        %s350 = scalar_lea.sflag [#allocation5], %s349
        %s351 = sand.u32 %s35, 1
        %s352 = smul.addr %s351, 128
        %s353 = scalar_lea.vmem [#allocation4], %s352
        %p354 = pneg %p48
        %p355 = pneg %p45
        %p356 = pneg %p69
        %p357 = pneg %p66
        %p358 = pneg %p90
        %p359 = pneg %p87
        %p360 = pneg %p111
        %p361 = pneg %p108
        %p362 = pneg %p132
        %p363 = pneg %p129
        %p364 = pneg %p153
        %p365 = pneg %p150
        %p366 = pneg %p174
        %p367 = pneg %p171
        %p368 = pneg %p195
        %p369 = pneg %p192
        %p370 = pneg %p216
        %p371 = pneg %p213
        %p372 = pneg %p237
        %p373 = pneg %p234
        %p374 = pneg %p263
        %p375 = pneg %p260
        %s376 = sand.u32 %s250, 1
        %s377 = scalar_lea.sflag [#allocation6], %s376
        %s378 = sand.u32 %s250, 1
        %s379 = smul.addr %s378, 192
        %s380 = scalar_lea.vmem [#allocation7], %s379
        %s381 = smul.u32 2, %s27
        %s382 = smul.u32 2, %s27
        %v384 = vld [vmem:[%s1] sm:$0x3f]
        %v385 = vld [vmem:[%s343] sm:$0xff]
        %v386 = vld [vmem:[%s343 + $0x8] sm:$0xf]
        %v387 = vld [vmem:[%s343 + $0x10] sm:$0xff]
        %v388 = vld [vmem:[%s343 + $0x18] sm:$0xf]
        %v389 = vld [vmem:[%s343 + $0x20] sm:$0xff]
        %v390 = vld [vmem:[%s343 + $0x28] sm:$0xf]
        %v391 = vld [vmem:[%s343 + $0x30] sm:$0xff]
        %v392 = vld [vmem:[%s343 + $0x38] sm:$0xf]
        %393 = vst [vmem:[#allocation2] sm:$0xff] %v385
        %394 = vst [vmem:[#allocation2 + $0x8] sm:$0xf] %v386
        %395 = vst [vmem:[#allocation2 + $0x18] sm:$0xff] %v387
        %396 = vst [vmem:[#allocation2 + $0x20] sm:$0xf] %v388
        %397 = vst [vmem:[#allocation2 + $0x30] sm:$0xff] %v389
        %398 = vst [vmem:[#allocation2 + $0x38] sm:$0xf] %v390
        %399 = vst [vmem:[#allocation2 + $0x48] sm:$0xff] %v391
        %400 = vst [vmem:[#allocation2 + $0x50] sm:$0xf] %v392
        %v401 = vld [vmem:[%s343] sm:$0xff]
        %v402 = vld [vmem:[%s343 + $0x8] sm:$0xff]
        %v403 = vld [vmem:[%s343 + $0x10] sm:$0xff]
        %v404 = vld [vmem:[%s343 + $0x18] sm:$0xff]
        %v405 = vld [vmem:[%s343 + $0x20] sm:$0xff]
        %v406 = vld [vmem:[%s343 + $0x28] sm:$0xff]
        %v407 = vld [vmem:[%s343 + $0x30] sm:$0xff]
        %v408 = vld [vmem:[%s343 + $0x38] sm:$0xff]
        %417 = vrot.lane.b32.xlu0 %v401, 127
        %v418 = vpop.permute.xlu0 %417
        %419 = vrot.lane.b32.xlu0 %v402, 127
        %v420 = vpop.permute.xlu0 %419
        %421 = vrot.lane.b32.xlu0 %v403, 127
        %v422 = vpop.permute.xlu0 %421
        %423 = vrot.lane.b32.xlu0 %v404, 127
        %v424 = vpop.permute.xlu0 %423
        %425 = vrot.lane.b32.xlu0 %v405, 127
        %v426 = vpop.permute.xlu0 %425
        %427 = vrot.lane.b32.xlu0 %v406, 127
        %v428 = vpop.permute.xlu0 %427
        %429 = vrot.lane.b32.xlu0 %v407, 127
        %v430 = vpop.permute.xlu0 %429
        %431 = vrot.lane.b32.xlu0 %v408, 127
        %v432 = vpop.permute.xlu0 %431
        %v433 = vrot.slane %v418, 4
        %v434 = vrot.slane %v420, 4
        %v435 = vrot.slane %v422, 4
        %v436 = vrot.slane %v424, 4
        %v437 = vrot.slane %v426, 4
        %v438 = vrot.slane %v428, 4
        %v439 = vrot.slane %v430, 4
        %v440 = vrot.slane %v432, 4
        %vm441 = vcmask 1043456
        %v442 = vsel %vm441, %v433, %v434
        %vm443 = vcmask 1039360
        %v444 = vsel %vm443, %v418, %v442
        %v445 = vsel %vm443, %v420, %v434
        %v446 = vsel %vm441, %v435, %v436
        %v447 = vsel %vm443, %v422, %v446
        %v448 = vsel %vm443, %v424, %v436
        %v449 = vsel %vm441, %v437, %v438
        %v450 = vsel %vm443, %v426, %v449
        %v451 = vsel %vm443, %v428, %v438
        %v452 = vsel %vm441, %v439, %v440
        %v453 = vsel %vm443, %v430, %v452
        %v454 = vsel %vm443, %v432, %v440
        %463 = vst [vmem:[#allocation2 + $0x60] sm:$0xff] %v444
        %464 = vst [vmem:[#allocation2 + $0x68] sm:$0xf] %v445
        %465 = vst [vmem:[#allocation2 + $0x78] sm:$0xff] %v447
        %466 = vst [vmem:[#allocation2 + $0x80] sm:$0xf] %v448
        %467 = vst [vmem:[#allocation2 + $0x90] sm:$0xff] %v450
        %468 = vst [vmem:[#allocation2 + $0x98] sm:$0xf] %v451
        %469 = vst [vmem:[#allocation2 + $0xa8] sm:$0xff] %v453
        %470 = vst [vmem:[#allocation2 + $0xb0] sm:$0xf] %v454
        %v471 = vld [vmem:[%s343] sm:$0xff]
        %v472 = vld [vmem:[%s343 + $0x8] sm:$0xff]
        %v473 = vld [vmem:[%s343 + $0x10] sm:$0xff]
        %v474 = vld [vmem:[%s343 + $0x18] sm:$0xff]
        %v475 = vld [vmem:[%s343 + $0x20] sm:$0xff]
        %v476 = vld [vmem:[%s343 + $0x28] sm:$0xff]
        %v477 = vld [vmem:[%s343 + $0x30] sm:$0xff]
        %v478 = vld [vmem:[%s343 + $0x38] sm:$0xff]
        %487 = vrot.lane.b32.xlu0 %v471, 126
        %v488 = vpop.permute.xlu0 %487
        %489 = vrot.lane.b32.xlu0 %v472, 126
        %v490 = vpop.permute.xlu0 %489
        %491 = vrot.lane.b32.xlu0 %v473, 126
        %v492 = vpop.permute.xlu0 %491
        %493 = vrot.lane.b32.xlu0 %v474, 126
        %v494 = vpop.permute.xlu0 %493
        %495 = vrot.lane.b32.xlu0 %v475, 126
        %v496 = vpop.permute.xlu0 %495
        %497 = vrot.lane.b32.xlu0 %v476, 126
        %v498 = vpop.permute.xlu0 %497
        %499 = vrot.lane.b32.xlu0 %v477, 126
        %v500 = vpop.permute.xlu0 %499
        %501 = vrot.lane.b32.xlu0 %v478, 126
        %v502 = vpop.permute.xlu0 %501
        %v503 = vrot.slane %v488, 4
        %v504 = vrot.slane %v490, 4
        %v505 = vrot.slane %v492, 4
        %v506 = vrot.slane %v494, 4
        %v507 = vrot.slane %v496, 4
        %v508 = vrot.slane %v498, 4
        %v509 = vrot.slane %v500, 4
        %v510 = vrot.slane %v502, 4
        %v511 = vsel %vm441, %v503, %v504
        %vm512 = vcmask 1031168
        %v513 = vsel %vm512, %v488, %v511
        %v514 = vsel %vm512, %v490, %v504
        %v515 = vsel %vm441, %v505, %v506
        %v516 = vsel %vm512, %v492, %v515
        %v517 = vsel %vm512, %v494, %v506
        %v518 = vsel %vm441, %v507, %v508
        %v519 = vsel %vm512, %v496, %v518
        %v520 = vsel %vm512, %v498, %v508
        %v521 = vsel %vm441, %v509, %v510
        %v522 = vsel %vm512, %v500, %v521
        %v523 = vsel %vm512, %v502, %v510
        %532 = vst [vmem:[#allocation2 + $0xc0] sm:$0xff] %v513
        %533 = vst [vmem:[#allocation2 + $0xc8] sm:$0xf] %v514
        %534 = vst [vmem:[#allocation2 + $0xd8] sm:$0xff] %v516
        %535 = vst [vmem:[#allocation2 + $0xe0] sm:$0xf] %v517
        %536 = vst [vmem:[#allocation2 + $0xf0] sm:$0xff] %v519
        %537 = vst [vmem:[#allocation2 + $0xf8] sm:$0xf] %v520
        %538 = vst [vmem:[#allocation2 + $0x108] sm:$0xff] %v522
        %539 = vst [vmem:[#allocation2 + $0x110] sm:$0xf] %v523
        %v540 = vld [vmem:[%s343] sm:$0xff]
        %v541 = vld [vmem:[%s343 + $0x8] sm:$0xff]
        %v542 = vld [vmem:[%s343 + $0x10] sm:$0xff]
        %v543 = vld [vmem:[%s343 + $0x18] sm:$0xff]
        %v544 = vld [vmem:[%s343 + $0x20] sm:$0xff]
        %v545 = vld [vmem:[%s343 + $0x28] sm:$0xff]
        %v546 = vld [vmem:[%s343 + $0x30] sm:$0xff]
        %v547 = vld [vmem:[%s343 + $0x38] sm:$0xff]
        %556 = vrot.lane.b32.xlu0 %v540, 110
        %v557 = vpop.permute.xlu0 %556
        %558 = vrot.lane.b32.xlu0 %v541, 110
        %v559 = vpop.permute.xlu0 %558
        %560 = vrot.lane.b32.xlu0 %v542, 110
        %v561 = vpop.permute.xlu0 %560
        %562 = vrot.lane.b32.xlu0 %v543, 110
        %v563 = vpop.permute.xlu0 %562
        %564 = vrot.lane.b32.xlu0 %v544, 110
        %v565 = vpop.permute.xlu0 %564
        %566 = vrot.lane.b32.xlu0 %v545, 110
        %v567 = vpop.permute.xlu0 %566
        %568 = vrot.lane.b32.xlu0 %v546, 110
        %v569 = vpop.permute.xlu0 %568
        %570 = vrot.lane.b32.xlu0 %v547, 110
        %v571 = vpop.permute.xlu0 %570
        %v572 = vrot.slane %v557, 4
        %v573 = vrot.slane %v559, 4
        %v574 = vrot.slane %v561, 4
        %v575 = vrot.slane %v563, 4
        %v576 = vrot.slane %v565, 4
        %v577 = vrot.slane %v567, 4
        %v578 = vrot.slane %v569, 4
        %v579 = vrot.slane %v571, 4
        %v580 = vsel %vm441, %v572, %v573
        %vm581 = vcmask 900096
        %v582 = vsel %vm581, %v557, %v580
        %v583 = vsel %vm581, %v559, %v573
        %v584 = vsel %vm441, %v574, %v575
        %v585 = vsel %vm581, %v561, %v584
        %v586 = vsel %vm581, %v563, %v575
        %v587 = vsel %vm441, %v576, %v577
        %v588 = vsel %vm581, %v565, %v587
        %v589 = vsel %vm581, %v567, %v577
        %v590 = vsel %vm441, %v578, %v579
        %v591 = vsel %vm581, %v569, %v590
        %v592 = vsel %vm581, %v571, %v579
        %601 = vst [vmem:[#allocation2 + $0x120] sm:$0xff] %v582
        %602 = vst [vmem:[#allocation2 + $0x128] sm:$0xf] %v583
        %603 = vst [vmem:[#allocation2 + $0x138] sm:$0xff] %v585
        %604 = vst [vmem:[#allocation2 + $0x140] sm:$0xf] %v586
        %605 = vst [vmem:[#allocation2 + $0x150] sm:$0xff] %v588
        %606 = vst [vmem:[#allocation2 + $0x158] sm:$0xf] %v589
        %607 = vst [vmem:[#allocation2 + $0x168] sm:$0xff] %v591
        %608 = vst [vmem:[#allocation2 + $0x170] sm:$0xf] %v592
        %v609 = vld [vmem:[%s343] sm:$0xff]
        %v610 = vld [vmem:[%s343 + $0x8] sm:$0xff]
        %v611 = vld [vmem:[%s343 + $0x10] sm:$0xff]
        %v612 = vld [vmem:[%s343 + $0x18] sm:$0xff]
        %v613 = vld [vmem:[%s343 + $0x20] sm:$0xff]
        %v614 = vld [vmem:[%s343 + $0x28] sm:$0xff]
        %v615 = vld [vmem:[%s343 + $0x30] sm:$0xff]
        %v616 = vld [vmem:[%s343 + $0x38] sm:$0xff]
        %625 = vrot.lane.b32.xlu0 %v609, 109
        %v626 = vpop.permute.xlu0 %625
        %627 = vrot.lane.b32.xlu0 %v610, 109
        %v628 = vpop.permute.xlu0 %627
        %629 = vrot.lane.b32.xlu0 %v611, 109
        %v630 = vpop.permute.xlu0 %629
        %631 = vrot.lane.b32.xlu0 %v612, 109
        %v632 = vpop.permute.xlu0 %631
        %633 = vrot.lane.b32.xlu0 %v613, 109
        %v634 = vpop.permute.xlu0 %633
        %635 = vrot.lane.b32.xlu0 %v614, 109
        %v636 = vpop.permute.xlu0 %635
        %637 = vrot.lane.b32.xlu0 %v615, 109
        %v638 = vpop.permute.xlu0 %637
        %639 = vrot.lane.b32.xlu0 %v616, 109
        %v640 = vpop.permute.xlu0 %639
        %v641 = vrot.slane %v626, 4
        %v642 = vrot.slane %v628, 4
        %v643 = vrot.slane %v630, 4
        %v644 = vrot.slane %v632, 4
        %v645 = vrot.slane %v634, 4
        %v646 = vrot.slane %v636, 4
        %v647 = vrot.slane %v638, 4
        %v648 = vrot.slane %v640, 4
        %v649 = vsel %vm441, %v641, %v642
        %vm650 = vcmask 891904
        %v651 = vsel %vm650, %v626, %v649
        %v652 = vsel %vm650, %v628, %v642
        %v653 = vsel %vm441, %v643, %v644
        %v654 = vsel %vm650, %v630, %v653
        %v655 = vsel %vm650, %v632, %v644
        %v656 = vsel %vm441, %v645, %v646
        %v657 = vsel %vm650, %v634, %v656
        %v658 = vsel %vm650, %v636, %v646
        %v659 = vsel %vm441, %v647, %v648
        %v660 = vsel %vm650, %v638, %v659
        %v661 = vsel %vm650, %v640, %v648
        %670 = vst [vmem:[#allocation2 + $0x180] sm:$0xff] %v651
        %671 = vst [vmem:[#allocation2 + $0x188] sm:$0xf] %v652
        %672 = vst [vmem:[#allocation2 + $0x198] sm:$0xff] %v654
        %673 = vst [vmem:[#allocation2 + $0x1a0] sm:$0xf] %v655
        %674 = vst [vmem:[#allocation2 + $0x1b0] sm:$0xff] %v657
        %675 = vst [vmem:[#allocation2 + $0x1b8] sm:$0xf] %v658
        %676 = vst [vmem:[#allocation2 + $0x1c8] sm:$0xff] %v660
        %677 = vst [vmem:[#allocation2 + $0x1d0] sm:$0xf] %v661
        %v678 = vld [vmem:[%s343] sm:$0xff]
        %v679 = vld [vmem:[%s343 + $0x8] sm:$0xff]
        %v680 = vld [vmem:[%s343 + $0x10] sm:$0xff]
        %v681 = vld [vmem:[%s343 + $0x18] sm:$0xff]
        %v682 = vld [vmem:[%s343 + $0x20] sm:$0xff]
        %v683 = vld [vmem:[%s343 + $0x28] sm:$0xff]
        %v684 = vld [vmem:[%s343 + $0x30] sm:$0xff]
        %v685 = vld [vmem:[%s343 + $0x38] sm:$0xff]
        %694 = vrot.lane.b32.xlu0 %v678, 108
        %v695 = vpop.permute.xlu0 %694
        %696 = vrot.lane.b32.xlu0 %v679, 108
        %v697 = vpop.permute.xlu0 %696
        %698 = vrot.lane.b32.xlu0 %v680, 108
        %v699 = vpop.permute.xlu0 %698
        %700 = vrot.lane.b32.xlu0 %v681, 108
        %v701 = vpop.permute.xlu0 %700
        %702 = vrot.lane.b32.xlu0 %v682, 108
        %v703 = vpop.permute.xlu0 %702
        %704 = vrot.lane.b32.xlu0 %v683, 108
        %v705 = vpop.permute.xlu0 %704
        %706 = vrot.lane.b32.xlu0 %v684, 108
        %v707 = vpop.permute.xlu0 %706
        %708 = vrot.lane.b32.xlu0 %v685, 108
        %v709 = vpop.permute.xlu0 %708
        %v710 = vrot.slane %v695, 4
        %v711 = vrot.slane %v697, 4
        %v712 = vrot.slane %v699, 4
        %v713 = vrot.slane %v701, 4
        %v714 = vrot.slane %v703, 4
        %v715 = vrot.slane %v705, 4
        %v716 = vrot.slane %v707, 4
        %v717 = vrot.slane %v709, 4
        %v718 = vsel %vm441, %v710, %v711
        %vm719 = vcmask 883712
        %v720 = vsel %vm719, %v695, %v718
        %v721 = vsel %vm719, %v697, %v711
        %v722 = vsel %vm441, %v712, %v713
        %v723 = vsel %vm719, %v699, %v722
        %v724 = vsel %vm719, %v701, %v713
        %v725 = vsel %vm441, %v714, %v715
        %v726 = vsel %vm719, %v703, %v725
        %v727 = vsel %vm719, %v705, %v715
        %v728 = vsel %vm441, %v716, %v717
        %v729 = vsel %vm719, %v707, %v728
        %v730 = vsel %vm719, %v709, %v717
        %739 = vst [vmem:[#allocation2 + $0x1e0] sm:$0xff] %v720
        %740 = vst [vmem:[#allocation2 + $0x1e8] sm:$0xf] %v721
        %741 = vst [vmem:[#allocation2 + $0x1f8] sm:$0xff] %v723
        %742 = vst [vmem:[#allocation2 + $0x200] sm:$0xf] %v724
        %743 = vst [vmem:[#allocation2 + $0x210] sm:$0xff] %v726
        %744 = vst [vmem:[#allocation2 + $0x218] sm:$0xf] %v727
        %745 = vst [vmem:[#allocation2 + $0x228] sm:$0xff] %v729
        %746 = vst [vmem:[#allocation2 + $0x230] sm:$0xf] %v730
        %v747 = vld [vmem:[%s343] sm:$0xff]
        %v748 = vld [vmem:[%s343 + $0x8] sm:$0xff]
        %v749 = vld [vmem:[%s343 + $0x10] sm:$0xff]
        %v750 = vld [vmem:[%s343 + $0x18] sm:$0xff]
        %v751 = vld [vmem:[%s343 + $0x20] sm:$0xff]
        %v752 = vld [vmem:[%s343 + $0x28] sm:$0xff]
        %v753 = vld [vmem:[%s343 + $0x30] sm:$0xff]
        %v754 = vld [vmem:[%s343 + $0x38] sm:$0xff]
        %763 = vrot.lane.b32.xlu0 %v747, 92
        %v764 = vpop.permute.xlu0 %763
        %765 = vrot.lane.b32.xlu0 %v748, 92
        %v766 = vpop.permute.xlu0 %765
        %767 = vrot.lane.b32.xlu0 %v749, 92
        %v768 = vpop.permute.xlu0 %767
        %769 = vrot.lane.b32.xlu0 %v750, 92
        %v770 = vpop.permute.xlu0 %769
        %771 = vrot.lane.b32.xlu0 %v751, 92
        %v772 = vpop.permute.xlu0 %771
        %773 = vrot.lane.b32.xlu0 %v752, 92
        %v774 = vpop.permute.xlu0 %773
        %775 = vrot.lane.b32.xlu0 %v753, 92
        %v776 = vpop.permute.xlu0 %775
        %777 = vrot.lane.b32.xlu0 %v754, 92
        %v778 = vpop.permute.xlu0 %777
        %v779 = vrot.slane %v764, 4
        %v780 = vrot.slane %v766, 4
        %v781 = vrot.slane %v768, 4
        %v782 = vrot.slane %v770, 4
        %v783 = vrot.slane %v772, 4
        %v784 = vrot.slane %v774, 4
        %v785 = vrot.slane %v776, 4
        %v786 = vrot.slane %v778, 4
        %v787 = vsel %vm441, %v779, %v780
        %vm788 = vcmask 752640
        %v789 = vsel %vm788, %v764, %v787
        %v790 = vsel %vm788, %v766, %v780
        %v791 = vsel %vm441, %v781, %v782
        %v792 = vsel %vm788, %v768, %v791
        %v793 = vsel %vm788, %v770, %v782
        %v794 = vsel %vm441, %v783, %v784
        %v795 = vsel %vm788, %v772, %v794
        %v796 = vsel %vm788, %v774, %v784
        %v797 = vsel %vm441, %v785, %v786
        %v798 = vsel %vm788, %v776, %v797
        %v799 = vsel %vm788, %v778, %v786
        %808 = vst [vmem:[#allocation2 + $0x240] sm:$0xff] %v789
        %809 = vst [vmem:[#allocation2 + $0x248] sm:$0xf] %v790
        %810 = vst [vmem:[#allocation2 + $0x258] sm:$0xff] %v792
        %811 = vst [vmem:[#allocation2 + $0x260] sm:$0xf] %v793
        %812 = vst [vmem:[#allocation2 + $0x270] sm:$0xff] %v795
        %813 = vst [vmem:[#allocation2 + $0x278] sm:$0xf] %v796
        %814 = vst [vmem:[#allocation2 + $0x288] sm:$0xff] %v798
        %815 = vst [vmem:[#allocation2 + $0x290] sm:$0xf] %v799
        %v816 = vld [vmem:[%s343] sm:$0xff]
        %v817 = vld [vmem:[%s343 + $0x8] sm:$0xff]
        %v818 = vld [vmem:[%s343 + $0x10] sm:$0xff]
        %v819 = vld [vmem:[%s343 + $0x18] sm:$0xff]
        %v820 = vld [vmem:[%s343 + $0x20] sm:$0xff]
        %v821 = vld [vmem:[%s343 + $0x28] sm:$0xff]
        %v822 = vld [vmem:[%s343 + $0x30] sm:$0xff]
        %v823 = vld [vmem:[%s343 + $0x38] sm:$0xff]
        %832 = vrot.lane.b32.xlu0 %v816, 91
        %v833 = vpop.permute.xlu0 %832
        %834 = vrot.lane.b32.xlu0 %v817, 91
        %v835 = vpop.permute.xlu0 %834
        %836 = vrot.lane.b32.xlu0 %v818, 91
        %v837 = vpop.permute.xlu0 %836
        %838 = vrot.lane.b32.xlu0 %v819, 91
        %v839 = vpop.permute.xlu0 %838
        %840 = vrot.lane.b32.xlu0 %v820, 91
        %v841 = vpop.permute.xlu0 %840
        %842 = vrot.lane.b32.xlu0 %v821, 91
        %v843 = vpop.permute.xlu0 %842
        %844 = vrot.lane.b32.xlu0 %v822, 91
        %v845 = vpop.permute.xlu0 %844
        %846 = vrot.lane.b32.xlu0 %v823, 91
        %v847 = vpop.permute.xlu0 %846
        %v848 = vrot.slane %v833, 4
        %v849 = vrot.slane %v835, 4
        %v850 = vrot.slane %v837, 4
        %v851 = vrot.slane %v839, 4
        %v852 = vrot.slane %v841, 4
        %v853 = vrot.slane %v843, 4
        %v854 = vrot.slane %v845, 4
        %v855 = vrot.slane %v847, 4
        %v856 = vsel %vm441, %v848, %v849
        %vm857 = vcmask 744448
        %v858 = vsel %vm857, %v833, %v856
        %v859 = vsel %vm857, %v835, %v849
        %v860 = vsel %vm441, %v850, %v851
        %v861 = vsel %vm857, %v837, %v860
        %v862 = vsel %vm857, %v839, %v851
        %v863 = vsel %vm441, %v852, %v853
        %v864 = vsel %vm857, %v841, %v863
        %v865 = vsel %vm857, %v843, %v853
        %v866 = vsel %vm441, %v854, %v855
        %v867 = vsel %vm857, %v845, %v866
        %v868 = vsel %vm857, %v847, %v855
        %877 = vst [vmem:[#allocation2 + $0x2a0] sm:$0xff] %v858
        %878 = vst [vmem:[#allocation2 + $0x2a8] sm:$0xf] %v859
        %879 = vst [vmem:[#allocation2 + $0x2b8] sm:$0xff] %v861
        %880 = vst [vmem:[#allocation2 + $0x2c0] sm:$0xf] %v862
        %881 = vst [vmem:[#allocation2 + $0x2d0] sm:$0xff] %v864
        %882 = vst [vmem:[#allocation2 + $0x2d8] sm:$0xf] %v865
        %883 = vst [vmem:[#allocation2 + $0x2e8] sm:$0xff] %v867
        %884 = vst [vmem:[#allocation2 + $0x2f0] sm:$0xf] %v868
        %v885 = vld [vmem:[%s343] sm:$0xff]
        %v886 = vld [vmem:[%s343 + $0x8] sm:$0xff]
        %v887 = vld [vmem:[%s343 + $0x10] sm:$0xff]
        %v888 = vld [vmem:[%s343 + $0x18] sm:$0xff]
        %v889 = vld [vmem:[%s343 + $0x20] sm:$0xff]
        %v890 = vld [vmem:[%s343 + $0x28] sm:$0xff]
        %v891 = vld [vmem:[%s343 + $0x30] sm:$0xff]
        %v892 = vld [vmem:[%s343 + $0x38] sm:$0xff]
        %901 = vrot.lane.b32.xlu0 %v885, 90
        %v902 = vpop.permute.xlu0 %901
        %903 = vrot.lane.b32.xlu0 %v886, 90
        %v904 = vpop.permute.xlu0 %903
        %905 = vrot.lane.b32.xlu0 %v887, 90
        %v906 = vpop.permute.xlu0 %905
        %907 = vrot.lane.b32.xlu0 %v888, 90
        %v908 = vpop.permute.xlu0 %907
        %909 = vrot.lane.b32.xlu0 %v889, 90
        %v910 = vpop.permute.xlu0 %909
        %911 = vrot.lane.b32.xlu0 %v890, 90
        %v912 = vpop.permute.xlu0 %911
        %913 = vrot.lane.b32.xlu0 %v891, 90
        %v914 = vpop.permute.xlu0 %913
        %915 = vrot.lane.b32.xlu0 %v892, 90
        %v916 = vpop.permute.xlu0 %915
        %v917 = vrot.slane %v902, 4
        %v918 = vrot.slane %v904, 4
        %v919 = vrot.slane %v906, 4
        %v920 = vrot.slane %v908, 4
        %v921 = vrot.slane %v910, 4
        %v922 = vrot.slane %v912, 4
        %v923 = vrot.slane %v914, 4
        %v924 = vrot.slane %v916, 4
        %v925 = vsel %vm441, %v917, %v918
        %vm926 = vcmask 736256
        %v927 = vsel %vm926, %v902, %v925
        %v928 = vsel %vm926, %v904, %v918
        %v929 = vsel %vm441, %v919, %v920
        %v930 = vsel %vm926, %v906, %v929
        %v931 = vsel %vm926, %v908, %v920
        %v932 = vsel %vm441, %v921, %v922
        %v933 = vsel %vm926, %v910, %v932
        %v934 = vsel %vm926, %v912, %v922
        %v935 = vsel %vm441, %v923, %v924
        %v936 = vsel %vm926, %v914, %v935
        %v937 = vsel %vm926, %v916, %v924
        %946 = vst [vmem:[#allocation2 + $0x300] sm:$0xff] %v927
        %947 = vst [vmem:[#allocation2 + $0x308] sm:$0xf] %v928
        %948 = vst [vmem:[#allocation2 + $0x318] sm:$0xff] %v930
        %949 = vst [vmem:[#allocation2 + $0x320] sm:$0xf] %v931
        %950 = vst [vmem:[#allocation2 + $0x330] sm:$0xff] %v933
        %951 = vst [vmem:[#allocation2 + $0x338] sm:$0xf] %v934
        %952 = vst [vmem:[#allocation2 + $0x348] sm:$0xff] %v936
        %953 = vst [vmem:[#allocation2 + $0x350] sm:$0xf] %v937
        %s954 = scalar_lea.vmem %s343, 64 [#allocation4]
        %v955 = vld [vmem:[%s954] sm:$0xff]
        %v956 = vld [vmem:[%s954 + $0x8] sm:$0xf]
        %v957 = vld [vmem:[%s954 + $0x10] sm:$0xff]
        %v958 = vld [vmem:[%s954 + $0x18] sm:$0xf]
        %v959 = vld [vmem:[%s954 + $0x20] sm:$0xff]
        %v960 = vld [vmem:[%s954 + $0x28] sm:$0xf]
        %v961 = vld [vmem:[%s954 + $0x30] sm:$0xff]
        %v962 = vld [vmem:[%s954 + $0x38] sm:$0xf]
        %963 = vst [vmem:[#allocation2 + $0xc] sm:$0xff] %v955
        %964 = vst [vmem:[#allocation2 + $0x14] sm:$0xf] %v956
        %965 = vst [vmem:[#allocation2 + $0x24] sm:$0xff] %v957
        %966 = vst [vmem:[#allocation2 + $0x2c] sm:$0xf] %v958
        %967 = vst [vmem:[#allocation2 + $0x3c] sm:$0xff] %v959
        %968 = vst [vmem:[#allocation2 + $0x44] sm:$0xf] %v960
        %969 = vst [vmem:[#allocation2 + $0x54] sm:$0xff] %v961
        %970 = vst [vmem:[#allocation2 + $0x5c] sm:$0xf] %v962
        %v971 = vld [vmem:[%s954] sm:$0xff]
        %v972 = vld [vmem:[%s954 + $0x8] sm:$0xff]
        %v973 = vld [vmem:[%s954 + $0x10] sm:$0xff]
        %v974 = vld [vmem:[%s954 + $0x18] sm:$0xff]
        %v975 = vld [vmem:[%s954 + $0x20] sm:$0xff]
        %v976 = vld [vmem:[%s954 + $0x28] sm:$0xff]
        %v977 = vld [vmem:[%s954 + $0x30] sm:$0xff]
        %v978 = vld [vmem:[%s954 + $0x38] sm:$0xff]
        %987 = vrot.lane.b32.xlu0 %v971, 127
        %v988 = vpop.permute.xlu0 %987
        %989 = vrot.lane.b32.xlu0 %v972, 127
        %v990 = vpop.permute.xlu0 %989
        %991 = vrot.lane.b32.xlu0 %v973, 127
        %v992 = vpop.permute.xlu0 %991
        %993 = vrot.lane.b32.xlu0 %v974, 127
        %v994 = vpop.permute.xlu0 %993
        %995 = vrot.lane.b32.xlu0 %v975, 127
        %v996 = vpop.permute.xlu0 %995
        %997 = vrot.lane.b32.xlu0 %v976, 127
        %v998 = vpop.permute.xlu0 %997
        %999 = vrot.lane.b32.xlu0 %v977, 127
        %v1000 = vpop.permute.xlu0 %999
        %1001 = vrot.lane.b32.xlu0 %v978, 127
        %v1002 = vpop.permute.xlu0 %1001
        %v1003 = vrot.slane %v988, 4
        %v1004 = vrot.slane %v990, 4
        %v1005 = vrot.slane %v992, 4
        %v1006 = vrot.slane %v994, 4
        %v1007 = vrot.slane %v996, 4
        %v1008 = vrot.slane %v998, 4
        %v1009 = vrot.slane %v1000, 4
        %v1010 = vrot.slane %v1002, 4
        %v1011 = vsel %vm441, %v1003, %v1004
        %v1012 = vsel %vm443, %v988, %v1011
        %v1013 = vsel %vm443, %v990, %v1004
        %v1014 = vsel %vm441, %v1005, %v1006
        %v1015 = vsel %vm443, %v992, %v1014
        %v1016 = vsel %vm443, %v994, %v1006
        %v1017 = vsel %vm441, %v1007, %v1008
        %v1018 = vsel %vm443, %v996, %v1017
        %v1019 = vsel %vm443, %v998, %v1008
        %v1020 = vsel %vm441, %v1009, %v1010
        %v1021 = vsel %vm443, %v1000, %v1020
        %v1022 = vsel %vm443, %v1002, %v1010
        %1031 = vst [vmem:[#allocation2 + $0x6c] sm:$0xff] %v1012
        %1032 = vst [vmem:[#allocation2 + $0x74] sm:$0xf] %v1013
        %1033 = vst [vmem:[#allocation2 + $0x84] sm:$0xff] %v1015
        %1034 = vst [vmem:[#allocation2 + $0x8c] sm:$0xf] %v1016
        %1035 = vst [vmem:[#allocation2 + $0x9c] sm:$0xff] %v1018
        %1036 = vst [vmem:[#allocation2 + $0xa4] sm:$0xf] %v1019
        %1037 = vst [vmem:[#allocation2 + $0xb4] sm:$0xff] %v1021
        %1038 = vst [vmem:[#allocation2 + $0xbc] sm:$0xf] %v1022
        %v1039 = vld [vmem:[%s954] sm:$0xff]
        %v1040 = vld [vmem:[%s954 + $0x8] sm:$0xff]
        %v1041 = vld [vmem:[%s954 + $0x10] sm:$0xff]
        %v1042 = vld [vmem:[%s954 + $0x18] sm:$0xff]
        %v1043 = vld [vmem:[%s954 + $0x20] sm:$0xff]
        %v1044 = vld [vmem:[%s954 + $0x28] sm:$0xff]
        %v1045 = vld [vmem:[%s954 + $0x30] sm:$0xff]
        %v1046 = vld [vmem:[%s954 + $0x38] sm:$0xff]
        %1055 = vrot.lane.b32.xlu0 %v1039, 126
        %v1056 = vpop.permute.xlu0 %1055
        %1057 = vrot.lane.b32.xlu0 %v1040, 126
        %v1058 = vpop.permute.xlu0 %1057
        %1059 = vrot.lane.b32.xlu0 %v1041, 126
        %v1060 = vpop.permute.xlu0 %1059
        %1061 = vrot.lane.b32.xlu0 %v1042, 126
        %v1062 = vpop.permute.xlu0 %1061
        %1063 = vrot.lane.b32.xlu0 %v1043, 126
        %v1064 = vpop.permute.xlu0 %1063
        %1065 = vrot.lane.b32.xlu0 %v1044, 126
        %v1066 = vpop.permute.xlu0 %1065
        %1067 = vrot.lane.b32.xlu0 %v1045, 126
        %v1068 = vpop.permute.xlu0 %1067
        %1069 = vrot.lane.b32.xlu0 %v1046, 126
        %v1070 = vpop.permute.xlu0 %1069
        %v1071 = vrot.slane %v1056, 4
        %v1072 = vrot.slane %v1058, 4
        %v1073 = vrot.slane %v1060, 4
        %v1074 = vrot.slane %v1062, 4
        %v1075 = vrot.slane %v1064, 4
        %v1076 = vrot.slane %v1066, 4
        %v1077 = vrot.slane %v1068, 4
        %v1078 = vrot.slane %v1070, 4
        %v1079 = vsel %vm441, %v1071, %v1072
        %v1080 = vsel %vm512, %v1056, %v1079
        %v1081 = vsel %vm512, %v1058, %v1072
        %v1082 = vsel %vm441, %v1073, %v1074
        %v1083 = vsel %vm512, %v1060, %v1082
        %v1084 = vsel %vm512, %v1062, %v1074
        %v1085 = vsel %vm441, %v1075, %v1076
        %v1086 = vsel %vm512, %v1064, %v1085
        %v1087 = vsel %vm512, %v1066, %v1076
        %v1088 = vsel %vm441, %v1077, %v1078
        %v1089 = vsel %vm512, %v1068, %v1088
        %v1090 = vsel %vm512, %v1070, %v1078
        %1099 = vst [vmem:[#allocation2 + $0xcc] sm:$0xff] %v1080
        %1100 = vst [vmem:[#allocation2 + $0xd4] sm:$0xf] %v1081
        %1101 = vst [vmem:[#allocation2 + $0xe4] sm:$0xff] %v1083
        %1102 = vst [vmem:[#allocation2 + $0xec] sm:$0xf] %v1084
        %1103 = vst [vmem:[#allocation2 + $0xfc] sm:$0xff] %v1086
        %1104 = vst [vmem:[#allocation2 + $0x104] sm:$0xf] %v1087
        %1105 = vst [vmem:[#allocation2 + $0x114] sm:$0xff] %v1089
        %1106 = vst [vmem:[#allocation2 + $0x11c] sm:$0xf] %v1090
        %v1107 = vld [vmem:[%s954] sm:$0xff]
        %v1108 = vld [vmem:[%s954 + $0x8] sm:$0xff]
        %v1109 = vld [vmem:[%s954 + $0x10] sm:$0xff]
        %v1110 = vld [vmem:[%s954 + $0x18] sm:$0xff]
        %v1111 = vld [vmem:[%s954 + $0x20] sm:$0xff]
        %v1112 = vld [vmem:[%s954 + $0x28] sm:$0xff]
        %v1113 = vld [vmem:[%s954 + $0x30] sm:$0xff]
        %v1114 = vld [vmem:[%s954 + $0x38] sm:$0xff]
        %1123 = vrot.lane.b32.xlu0 %v1107, 110
        %v1124 = vpop.permute.xlu0 %1123
        %1125 = vrot.lane.b32.xlu0 %v1108, 110
        %v1126 = vpop.permute.xlu0 %1125
        %1127 = vrot.lane.b32.xlu0 %v1109, 110
        %v1128 = vpop.permute.xlu0 %1127
        %1129 = vrot.lane.b32.xlu0 %v1110, 110
        %v1130 = vpop.permute.xlu0 %1129
        %1131 = vrot.lane.b32.xlu0 %v1111, 110
        %v1132 = vpop.permute.xlu0 %1131
        %1133 = vrot.lane.b32.xlu0 %v1112, 110
        %v1134 = vpop.permute.xlu0 %1133
        %1135 = vrot.lane.b32.xlu0 %v1113, 110
        %v1136 = vpop.permute.xlu0 %1135
        %1137 = vrot.lane.b32.xlu0 %v1114, 110
        %v1138 = vpop.permute.xlu0 %1137
        %v1139 = vrot.slane %v1124, 4
        %v1140 = vrot.slane %v1126, 4
        %v1141 = vrot.slane %v1128, 4
        %v1142 = vrot.slane %v1130, 4
        %v1143 = vrot.slane %v1132, 4
        %v1144 = vrot.slane %v1134, 4
        %v1145 = vrot.slane %v1136, 4
        %v1146 = vrot.slane %v1138, 4
        %v1147 = vsel %vm441, %v1139, %v1140
        %v1148 = vsel %vm581, %v1124, %v1147
        %v1149 = vsel %vm581, %v1126, %v1140
        %v1150 = vsel %vm441, %v1141, %v1142
        %v1151 = vsel %vm581, %v1128, %v1150
        %v1152 = vsel %vm581, %v1130, %v1142
        %v1153 = vsel %vm441, %v1143, %v1144
        %v1154 = vsel %vm581, %v1132, %v1153
        %v1155 = vsel %vm581, %v1134, %v1144
        %v1156 = vsel %vm441, %v1145, %v1146
        %v1157 = vsel %vm581, %v1136, %v1156
        %v1158 = vsel %vm581, %v1138, %v1146
        %1167 = vst [vmem:[#allocation2 + $0x12c] sm:$0xff] %v1148
        %1168 = vst [vmem:[#allocation2 + $0x134] sm:$0xf] %v1149
        %1169 = vst [vmem:[#allocation2 + $0x144] sm:$0xff] %v1151
        %1170 = vst [vmem:[#allocation2 + $0x14c] sm:$0xf] %v1152
        %1171 = vst [vmem:[#allocation2 + $0x15c] sm:$0xff] %v1154
        %1172 = vst [vmem:[#allocation2 + $0x164] sm:$0xf] %v1155
        %1173 = vst [vmem:[#allocation2 + $0x174] sm:$0xff] %v1157
        %1174 = vst [vmem:[#allocation2 + $0x17c] sm:$0xf] %v1158
        %v1175 = vld [vmem:[%s954] sm:$0xff]
        %v1176 = vld [vmem:[%s954 + $0x8] sm:$0xff]
        %v1177 = vld [vmem:[%s954 + $0x10] sm:$0xff]
        %v1178 = vld [vmem:[%s954 + $0x18] sm:$0xff]
        %v1179 = vld [vmem:[%s954 + $0x20] sm:$0xff]
        %v1180 = vld [vmem:[%s954 + $0x28] sm:$0xff]
        %v1181 = vld [vmem:[%s954 + $0x30] sm:$0xff]
        %v1182 = vld [vmem:[%s954 + $0x38] sm:$0xff]
        %1191 = vrot.lane.b32.xlu0 %v1175, 109
        %v1192 = vpop.permute.xlu0 %1191
        %1193 = vrot.lane.b32.xlu0 %v1176, 109
        %v1194 = vpop.permute.xlu0 %1193
        %1195 = vrot.lane.b32.xlu0 %v1177, 109
        %v1196 = vpop.permute.xlu0 %1195
        %1197 = vrot.lane.b32.xlu0 %v1178, 109
        %v1198 = vpop.permute.xlu0 %1197
        %1199 = vrot.lane.b32.xlu0 %v1179, 109
        %v1200 = vpop.permute.xlu0 %1199
        %1201 = vrot.lane.b32.xlu0 %v1180, 109
        %v1202 = vpop.permute.xlu0 %1201
        %1203 = vrot.lane.b32.xlu0 %v1181, 109
        %v1204 = vpop.permute.xlu0 %1203
        %1205 = vrot.lane.b32.xlu0 %v1182, 109
        %v1206 = vpop.permute.xlu0 %1205
        %v1207 = vrot.slane %v1192, 4
        %v1208 = vrot.slane %v1194, 4
        %v1209 = vrot.slane %v1196, 4
        %v1210 = vrot.slane %v1198, 4
        %v1211 = vrot.slane %v1200, 4
        %v1212 = vrot.slane %v1202, 4
        %v1213 = vrot.slane %v1204, 4
        %v1214 = vrot.slane %v1206, 4
        %v1215 = vsel %vm441, %v1207, %v1208
        %v1216 = vsel %vm650, %v1192, %v1215
        %v1217 = vsel %vm650, %v1194, %v1208
        %v1218 = vsel %vm441, %v1209, %v1210
        %v1219 = vsel %vm650, %v1196, %v1218
        %v1220 = vsel %vm650, %v1198, %v1210
        %v1221 = vsel %vm441, %v1211, %v1212
        %v1222 = vsel %vm650, %v1200, %v1221
        %v1223 = vsel %vm650, %v1202, %v1212
        %v1224 = vsel %vm441, %v1213, %v1214
        %v1225 = vsel %vm650, %v1204, %v1224
        %v1226 = vsel %vm650, %v1206, %v1214
        %1235 = vst [vmem:[#allocation2 + $0x18c] sm:$0xff] %v1216
        %1236 = vst [vmem:[#allocation2 + $0x194] sm:$0xf] %v1217
        %1237 = vst [vmem:[#allocation2 + $0x1a4] sm:$0xff] %v1219
        %1238 = vst [vmem:[#allocation2 + $0x1ac] sm:$0xf] %v1220
        %1239 = vst [vmem:[#allocation2 + $0x1bc] sm:$0xff] %v1222
        %1240 = vst [vmem:[#allocation2 + $0x1c4] sm:$0xf] %v1223
        %1241 = vst [vmem:[#allocation2 + $0x1d4] sm:$0xff] %v1225
        %1242 = vst [vmem:[#allocation2 + $0x1dc] sm:$0xf] %v1226
        %v1243 = vld [vmem:[%s954] sm:$0xff]
        %v1244 = vld [vmem:[%s954 + $0x8] sm:$0xff]
        %v1245 = vld [vmem:[%s954 + $0x10] sm:$0xff]
        %v1246 = vld [vmem:[%s954 + $0x18] sm:$0xff]
        %v1247 = vld [vmem:[%s954 + $0x20] sm:$0xff]
        %v1248 = vld [vmem:[%s954 + $0x28] sm:$0xff]
        %v1249 = vld [vmem:[%s954 + $0x30] sm:$0xff]
        %v1250 = vld [vmem:[%s954 + $0x38] sm:$0xff]
        %1259 = vrot.lane.b32.xlu0 %v1243, 108
        %v1260 = vpop.permute.xlu0 %1259
        %1261 = vrot.lane.b32.xlu0 %v1244, 108
        %v1262 = vpop.permute.xlu0 %1261
        %1263 = vrot.lane.b32.xlu0 %v1245, 108
        %v1264 = vpop.permute.xlu0 %1263
        %1265 = vrot.lane.b32.xlu0 %v1246, 108
        %v1266 = vpop.permute.xlu0 %1265
        %1267 = vrot.lane.b32.xlu0 %v1247, 108
        %v1268 = vpop.permute.xlu0 %1267
        %1269 = vrot.lane.b32.xlu0 %v1248, 108
        %v1270 = vpop.permute.xlu0 %1269
        %1271 = vrot.lane.b32.xlu0 %v1249, 108
        %v1272 = vpop.permute.xlu0 %1271
        %1273 = vrot.lane.b32.xlu0 %v1250, 108
        %v1274 = vpop.permute.xlu0 %1273
        %v1275 = vrot.slane %v1260, 4
        %v1276 = vrot.slane %v1262, 4
        %v1277 = vrot.slane %v1264, 4
        %v1278 = vrot.slane %v1266, 4
        %v1279 = vrot.slane %v1268, 4
        %v1280 = vrot.slane %v1270, 4
        %v1281 = vrot.slane %v1272, 4
        %v1282 = vrot.slane %v1274, 4
        %v1283 = vsel %vm441, %v1275, %v1276
        %v1284 = vsel %vm719, %v1260, %v1283
        %v1285 = vsel %vm719, %v1262, %v1276
        %v1286 = vsel %vm441, %v1277, %v1278
        %v1287 = vsel %vm719, %v1264, %v1286
        %v1288 = vsel %vm719, %v1266, %v1278
        %v1289 = vsel %vm441, %v1279, %v1280
        %v1290 = vsel %vm719, %v1268, %v1289
        %v1291 = vsel %vm719, %v1270, %v1280
        %v1292 = vsel %vm441, %v1281, %v1282
        %v1293 = vsel %vm719, %v1272, %v1292
        %v1294 = vsel %vm719, %v1274, %v1282
        %1303 = vst [vmem:[#allocation2 + $0x1ec] sm:$0xff] %v1284
        %1304 = vst [vmem:[#allocation2 + $0x1f4] sm:$0xf] %v1285
        %1305 = vst [vmem:[#allocation2 + $0x204] sm:$0xff] %v1287
        %1306 = vst [vmem:[#allocation2 + $0x20c] sm:$0xf] %v1288
        %1307 = vst [vmem:[#allocation2 + $0x21c] sm:$0xff] %v1290
        %1308 = vst [vmem:[#allocation2 + $0x224] sm:$0xf] %v1291
        %1309 = vst [vmem:[#allocation2 + $0x234] sm:$0xff] %v1293
        %1310 = vst [vmem:[#allocation2 + $0x23c] sm:$0xf] %v1294
        %v1311 = vld [vmem:[%s954] sm:$0xff]
        %v1312 = vld [vmem:[%s954 + $0x8] sm:$0xff]
        %v1313 = vld [vmem:[%s954 + $0x10] sm:$0xff]
        %v1314 = vld [vmem:[%s954 + $0x18] sm:$0xff]
        %v1315 = vld [vmem:[%s954 + $0x20] sm:$0xff]
        %v1316 = vld [vmem:[%s954 + $0x28] sm:$0xff]
        %v1317 = vld [vmem:[%s954 + $0x30] sm:$0xff]
        %v1318 = vld [vmem:[%s954 + $0x38] sm:$0xff]
        %1327 = vrot.lane.b32.xlu0 %v1311, 92
        %v1328 = vpop.permute.xlu0 %1327
        %1329 = vrot.lane.b32.xlu0 %v1312, 92
        %v1330 = vpop.permute.xlu0 %1329
        %1331 = vrot.lane.b32.xlu0 %v1313, 92
        %v1332 = vpop.permute.xlu0 %1331
        %1333 = vrot.lane.b32.xlu0 %v1314, 92
        %v1334 = vpop.permute.xlu0 %1333
        %1335 = vrot.lane.b32.xlu0 %v1315, 92
        %v1336 = vpop.permute.xlu0 %1335
        %1337 = vrot.lane.b32.xlu0 %v1316, 92
        %v1338 = vpop.permute.xlu0 %1337
        %1339 = vrot.lane.b32.xlu0 %v1317, 92
        %v1340 = vpop.permute.xlu0 %1339
        %1341 = vrot.lane.b32.xlu0 %v1318, 92
        %v1342 = vpop.permute.xlu0 %1341
        %v1343 = vrot.slane %v1328, 4
        %v1344 = vrot.slane %v1330, 4
        %v1345 = vrot.slane %v1332, 4
        %v1346 = vrot.slane %v1334, 4
        %v1347 = vrot.slane %v1336, 4
        %v1348 = vrot.slane %v1338, 4
        %v1349 = vrot.slane %v1340, 4
        %v1350 = vrot.slane %v1342, 4
        %v1351 = vsel %vm441, %v1343, %v1344
        %v1352 = vsel %vm788, %v1328, %v1351
        %v1353 = vsel %vm788, %v1330, %v1344
        %v1354 = vsel %vm441, %v1345, %v1346
        %v1355 = vsel %vm788, %v1332, %v1354
        %v1356 = vsel %vm788, %v1334, %v1346
        %v1357 = vsel %vm441, %v1347, %v1348
        %v1358 = vsel %vm788, %v1336, %v1357
        %v1359 = vsel %vm788, %v1338, %v1348
        %v1360 = vsel %vm441, %v1349, %v1350
        %v1361 = vsel %vm788, %v1340, %v1360
        %v1362 = vsel %vm788, %v1342, %v1350
        %1371 = vst [vmem:[#allocation2 + $0x24c] sm:$0xff] %v1352
        %1372 = vst [vmem:[#allocation2 + $0x254] sm:$0xf] %v1353
        %1373 = vst [vmem:[#allocation2 + $0x264] sm:$0xff] %v1355
        %1374 = vst [vmem:[#allocation2 + $0x26c] sm:$0xf] %v1356
        %1375 = vst [vmem:[#allocation2 + $0x27c] sm:$0xff] %v1358
        %1376 = vst [vmem:[#allocation2 + $0x284] sm:$0xf] %v1359
        %1377 = vst [vmem:[#allocation2 + $0x294] sm:$0xff] %v1361
        %1378 = vst [vmem:[#allocation2 + $0x29c] sm:$0xf] %v1362
        %v1379 = vld [vmem:[%s954] sm:$0xff]
        %v1380 = vld [vmem:[%s954 + $0x8] sm:$0xff]
        %v1381 = vld [vmem:[%s954 + $0x10] sm:$0xff]
        %v1382 = vld [vmem:[%s954 + $0x18] sm:$0xff]
        %v1383 = vld [vmem:[%s954 + $0x20] sm:$0xff]
        %v1384 = vld [vmem:[%s954 + $0x28] sm:$0xff]
        %v1385 = vld [vmem:[%s954 + $0x30] sm:$0xff]
        %v1386 = vld [vmem:[%s954 + $0x38] sm:$0xff]
        %1395 = vrot.lane.b32.xlu0 %v1379, 91
        %v1396 = vpop.permute.xlu0 %1395
        %1397 = vrot.lane.b32.xlu0 %v1380, 91
        %v1398 = vpop.permute.xlu0 %1397
        %1399 = vrot.lane.b32.xlu0 %v1381, 91
        %v1400 = vpop.permute.xlu0 %1399
        %1401 = vrot.lane.b32.xlu0 %v1382, 91
        %v1402 = vpop.permute.xlu0 %1401
        %1403 = vrot.lane.b32.xlu0 %v1383, 91
        %v1404 = vpop.permute.xlu0 %1403
        %1405 = vrot.lane.b32.xlu0 %v1384, 91
        %v1406 = vpop.permute.xlu0 %1405
        %1407 = vrot.lane.b32.xlu0 %v1385, 91
        %v1408 = vpop.permute.xlu0 %1407
        %1409 = vrot.lane.b32.xlu0 %v1386, 91
        %v1410 = vpop.permute.xlu0 %1409
        %v1411 = vrot.slane %v1396, 4
        %v1412 = vrot.slane %v1398, 4
        %v1413 = vrot.slane %v1400, 4
        %v1414 = vrot.slane %v1402, 4
        %v1415 = vrot.slane %v1404, 4
        %v1416 = vrot.slane %v1406, 4
        %v1417 = vrot.slane %v1408, 4
        %v1418 = vrot.slane %v1410, 4
        %v1419 = vsel %vm441, %v1411, %v1412
        %v1420 = vsel %vm857, %v1396, %v1419
        %v1421 = vsel %vm857, %v1398, %v1412
        %v1422 = vsel %vm441, %v1413, %v1414
        %v1423 = vsel %vm857, %v1400, %v1422
        %v1424 = vsel %vm857, %v1402, %v1414
        %v1425 = vsel %vm441, %v1415, %v1416
        %v1426 = vsel %vm857, %v1404, %v1425
        %v1427 = vsel %vm857, %v1406, %v1416
        %v1428 = vsel %vm441, %v1417, %v1418
        %v1429 = vsel %vm857, %v1408, %v1428
        %v1430 = vsel %vm857, %v1410, %v1418
        %1439 = vst [vmem:[#allocation2 + $0x2ac] sm:$0xff] %v1420
        %1440 = vst [vmem:[#allocation2 + $0x2b4] sm:$0xf] %v1421
        %1441 = vst [vmem:[#allocation2 + $0x2c4] sm:$0xff] %v1423
        %1442 = vst [vmem:[#allocation2 + $0x2cc] sm:$0xf] %v1424
        %1443 = vst [vmem:[#allocation2 + $0x2dc] sm:$0xff] %v1426
        %1444 = vst [vmem:[#allocation2 + $0x2e4] sm:$0xf] %v1427
        %1445 = vst [vmem:[#allocation2 + $0x2f4] sm:$0xff] %v1429
        %1446 = vst [vmem:[#allocation2 + $0x2fc] sm:$0xf] %v1430
        %v1447 = vld [vmem:[%s954] sm:$0xff]
        %v1448 = vld [vmem:[%s954 + $0x8] sm:$0xff]
        %v1449 = vld [vmem:[%s954 + $0x10] sm:$0xff]
        %v1450 = vld [vmem:[%s954 + $0x18] sm:$0xff]
        %v1451 = vld [vmem:[%s954 + $0x20] sm:$0xff]
        %v1452 = vld [vmem:[%s954 + $0x28] sm:$0xff]
        %v1453 = vld [vmem:[%s954 + $0x30] sm:$0xff]
        %v1454 = vld [vmem:[%s954 + $0x38] sm:$0xff]
        %1463 = vrot.lane.b32.xlu0 %v1447, 90
        %v1464 = vpop.permute.xlu0 %1463
        %1465 = vrot.lane.b32.xlu0 %v1448, 90
        %v1466 = vpop.permute.xlu0 %1465
        %1467 = vrot.lane.b32.xlu0 %v1449, 90
        %v1468 = vpop.permute.xlu0 %1467
        %1469 = vrot.lane.b32.xlu0 %v1450, 90
        %v1470 = vpop.permute.xlu0 %1469
        %1471 = vrot.lane.b32.xlu0 %v1451, 90
        %v1472 = vpop.permute.xlu0 %1471
        %1473 = vrot.lane.b32.xlu0 %v1452, 90
        %v1474 = vpop.permute.xlu0 %1473
        %1475 = vrot.lane.b32.xlu0 %v1453, 90
        %v1476 = vpop.permute.xlu0 %1475
        %1477 = vrot.lane.b32.xlu0 %v1454, 90
        %v1478 = vpop.permute.xlu0 %1477
        %v1479 = vrot.slane %v1464, 4
        %v1480 = vrot.slane %v1466, 4
        %v1481 = vrot.slane %v1468, 4
        %v1482 = vrot.slane %v1470, 4
        %v1483 = vrot.slane %v1472, 4
        %v1484 = vrot.slane %v1474, 4
        %v1485 = vrot.slane %v1476, 4
        %v1486 = vrot.slane %v1478, 4
        %v1487 = vsel %vm441, %v1479, %v1480
        %v1488 = vsel %vm926, %v1464, %v1487
        %v1489 = vsel %vm926, %v1466, %v1480
        %v1490 = vsel %vm441, %v1481, %v1482
        %v1491 = vsel %vm926, %v1468, %v1490
        %v1492 = vsel %vm926, %v1470, %v1482
        %v1493 = vsel %vm441, %v1483, %v1484
        %v1494 = vsel %vm926, %v1472, %v1493
        %v1495 = vsel %vm926, %v1474, %v1484
        %v1496 = vsel %vm441, %v1485, %v1486
        %v1497 = vsel %vm926, %v1476, %v1496
        %v1498 = vsel %vm926, %v1478, %v1486
        %1507 = vst [vmem:[#allocation2 + $0x30c] sm:$0xff] %v1488
        %1508 = vst [vmem:[#allocation2 + $0x314] sm:$0xf] %v1489
        %1509 = vst [vmem:[#allocation2 + $0x324] sm:$0xff] %v1491
        %1510 = vst [vmem:[#allocation2 + $0x32c] sm:$0xf] %v1492
        %1511 = vst [vmem:[#allocation2 + $0x33c] sm:$0xff] %v1494
        %1512 = vst [vmem:[#allocation2 + $0x344] sm:$0xf] %v1495
        %1513 = vst [vmem:[#allocation2 + $0x354] sm:$0xff] %v1497
        %1514 = vst [vmem:[#allocation2 + $0x35c] sm:$0xf] %v1498
        %v1515 = vld [vmem:[%s2] sm:$0xff]
        %v1516 = vld [vmem:[%s2 + $0x8] sm:$0xf]
        %v1517 = vld [vmem:[%s2 + $0xc] sm:$0xff]
        %v1518 = vld [vmem:[%s2 + $0x14] sm:$0xf]
        %v1519 = vld [vmem:[%s2 + $0x18] sm:$0xff]
        %v1520 = vld [vmem:[%s2 + $0x20] sm:$0xf]
        %v1521 = vld [vmem:[%s2 + $0x24] sm:$0xff]
        %v1522 = vld [vmem:[%s2 + $0x2c] sm:$0xf]
        %v1523 = vld [vmem:[#allocation2] sm:$0xff]
        %v1524 = vld [vmem:[#allocation2 + $0x8] sm:$0xff]
        %v1525 = vld [vmem:[#allocation2 + $0x10] sm:$0xff]
        %v1526 = vld [vmem:[#allocation2 + $0x18] sm:$0xff]
        %v1527 = vld [vmem:[#allocation2 + $0x20] sm:$0xff]
        %v1528 = vld [vmem:[#allocation2 + $0x28] sm:$0xff]
        %v1529 = vld [vmem:[#allocation2 + $0x30] sm:$0xff]
        %v1530 = vld [vmem:[#allocation2 + $0x38] sm:$0xff]
        %v1531 = vld [vmem:[#allocation2 + $0x40] sm:$0xff]
        %v1532 = vld [vmem:[#allocation2 + $0x48] sm:$0xff]
        %v1533 = vld [vmem:[#allocation2 + $0x50] sm:$0xff]
        %v1534 = vld [vmem:[#allocation2 + $0x58] sm:$0xff]
        %v1535 = vld [vmem:[#allocation2 + $0x60] sm:$0xff]
        %v1536 = vld [vmem:[#allocation2 + $0x68] sm:$0xff]
        %v1537 = vld [vmem:[#allocation2 + $0x70] sm:$0xff]
        %v1538 = vld [vmem:[#allocation2 + $0x78] sm:$0xff]
        %v1539 = vld [vmem:[#allocation2 + $0x80] sm:$0xff]
        %v1540 = vld [vmem:[#allocation2 + $0x88] sm:$0xff]
        %v1541 = vld [vmem:[#allocation2 + $0x90] sm:$0xff]
        %v1542 = vld [vmem:[#allocation2 + $0x98] sm:$0xff]
        %v1543 = vld [vmem:[#allocation2 + $0xa0] sm:$0xff]
        %v1544 = vld [vmem:[#allocation2 + $0xa8] sm:$0xff]
        %v1545 = vld [vmem:[#allocation2 + $0xb0] sm:$0xff]
        %v1546 = vld [vmem:[#allocation2 + $0xb8] sm:$0xff]
        %v1547 = vld [vmem:[#allocation2 + $0xc0] sm:$0xff]
        %v1548 = vld [vmem:[#allocation2 + $0xc8] sm:$0xff]
        %v1549 = vld [vmem:[#allocation2 + $0xd0] sm:$0xff]
        %v1550 = vld [vmem:[#allocation2 + $0xd8] sm:$0xff]
        %v1551 = vld [vmem:[#allocation2 + $0xe0] sm:$0xff]
        %v1552 = vld [vmem:[#allocation2 + $0xe8] sm:$0xff]
        %v1553 = vld [vmem:[#allocation2 + $0xf0] sm:$0xff]
        %v1554 = vld [vmem:[#allocation2 + $0xf8] sm:$0xff]
        %v1555 = vld [vmem:[#allocation2 + $0x100] sm:$0xff]
        %v1556 = vld [vmem:[#allocation2 + $0x108] sm:$0xff]
        %v1557 = vld [vmem:[#allocation2 + $0x110] sm:$0xff]
        %v1558 = vld [vmem:[#allocation2 + $0x118] sm:$0xff]
        %v1559 = vld [vmem:[#allocation2 + $0x120] sm:$0xff]
        %v1560 = vld [vmem:[#allocation2 + $0x128] sm:$0xff]
        %v1561 = vld [vmem:[#allocation2 + $0x130] sm:$0xff]
        %v1562 = vld [vmem:[#allocation2 + $0x138] sm:$0xff]
        %v1563 = vld [vmem:[#allocation2 + $0x140] sm:$0xff]
        %v1564 = vld [vmem:[#allocation2 + $0x148] sm:$0xff]
        %v1565 = vld [vmem:[#allocation2 + $0x150] sm:$0xff]
        %v1566 = vld [vmem:[#allocation2 + $0x158] sm:$0xff]
        %v1567 = vld [vmem:[#allocation2 + $0x160] sm:$0xff]
        %v1568 = vld [vmem:[#allocation2 + $0x168] sm:$0xff]
        %v1569 = vld [vmem:[#allocation2 + $0x170] sm:$0xff]
        %v1570 = vld [vmem:[#allocation2 + $0x178] sm:$0xff]
        %v1571 = vld [vmem:[#allocation2 + $0x180] sm:$0xff]
        %v1572 = vld [vmem:[#allocation2 + $0x188] sm:$0xff]
        %v1573 = vld [vmem:[#allocation2 + $0x190] sm:$0xff]
        %v1574 = vld [vmem:[#allocation2 + $0x198] sm:$0xff]
        %v1575 = vld [vmem:[#allocation2 + $0x1a0] sm:$0xff]
        %v1576 = vld [vmem:[#allocation2 + $0x1a8] sm:$0xff]
        %v1577 = vld [vmem:[#allocation2 + $0x1b0] sm:$0xff]
        %v1578 = vld [vmem:[#allocation2 + $0x1b8] sm:$0xff]
        %v1579 = vld [vmem:[#allocation2 + $0x1c0] sm:$0xff]
        %v1580 = vld [vmem:[#allocation2 + $0x1c8] sm:$0xff]
        %v1581 = vld [vmem:[#allocation2 + $0x1d0] sm:$0xff]
        %v1582 = vld [vmem:[#allocation2 + $0x1d8] sm:$0xff]
        %v1583 = vld [vmem:[#allocation2 + $0x1e0] sm:$0xff]
        %v1584 = vld [vmem:[#allocation2 + $0x1e8] sm:$0xff]
        %v1585 = vld [vmem:[#allocation2 + $0x1f0] sm:$0xff]
        %v1586 = vld [vmem:[#allocation2 + $0x1f8] sm:$0xff]
        %v1587 = vld [vmem:[#allocation2 + $0x200] sm:$0xff]
        %v1588 = vld [vmem:[#allocation2 + $0x208] sm:$0xff]
        %v1589 = vld [vmem:[#allocation2 + $0x210] sm:$0xff]
        %v1590 = vld [vmem:[#allocation2 + $0x218] sm:$0xff]
        %v1591 = vld [vmem:[#allocation2 + $0x220] sm:$0xff]
        %v1592 = vld [vmem:[#allocation2 + $0x228] sm:$0xff]
        %v1593 = vld [vmem:[#allocation2 + $0x230] sm:$0xff]
        %v1594 = vld [vmem:[#allocation2 + $0x238] sm:$0xff]
        %v1595 = vld [vmem:[#allocation2 + $0x240] sm:$0xff]
        %v1596 = vld [vmem:[#allocation2 + $0x248] sm:$0xff]
        %v1597 = vld [vmem:[#allocation2 + $0x250] sm:$0xff]
        %v1598 = vld [vmem:[#allocation2 + $0x258] sm:$0xff]
        %v1599 = vld [vmem:[#allocation2 + $0x260] sm:$0xff]
        %v1600 = vld [vmem:[#allocation2 + $0x268] sm:$0xff]
        %v1601 = vld [vmem:[#allocation2 + $0x270] sm:$0xff]
        %v1602 = vld [vmem:[#allocation2 + $0x278] sm:$0xff]
        %v1603 = vld [vmem:[#allocation2 + $0x280] sm:$0xff]
        %v1604 = vld [vmem:[#allocation2 + $0x288] sm:$0xff]
        %v1605 = vld [vmem:[#allocation2 + $0x290] sm:$0xff]
        %v1606 = vld [vmem:[#allocation2 + $0x298] sm:$0xff]
        %v1607 = vld [vmem:[#allocation2 + $0x2a0] sm:$0xff]
        %v1608 = vld [vmem:[#allocation2 + $0x2a8] sm:$0xff]
        %v1609 = vld [vmem:[#allocation2 + $0x2b0] sm:$0xff]
        %v1610 = vld [vmem:[#allocation2 + $0x2b8] sm:$0xff]
        %v1611 = vld [vmem:[#allocation2 + $0x2c0] sm:$0xff]
        %v1612 = vld [vmem:[#allocation2 + $0x2c8] sm:$0xff]
        %v1613 = vld [vmem:[#allocation2 + $0x2d0] sm:$0xff]
        %v1614 = vld [vmem:[#allocation2 + $0x2d8] sm:$0xff]
        %v1615 = vld [vmem:[#allocation2 + $0x2e0] sm:$0xff]
        %v1616 = vld [vmem:[#allocation2 + $0x2e8] sm:$0xff]
        %v1617 = vld [vmem:[#allocation2 + $0x2f0] sm:$0xff]
        %v1618 = vld [vmem:[#allocation2 + $0x2f8] sm:$0xff]
        %v1619 = vld [vmem:[#allocation2 + $0x300] sm:$0xff]
        %v1620 = vld [vmem:[#allocation2 + $0x308] sm:$0xff]
        %v1621 = vld [vmem:[#allocation2 + $0x310] sm:$0xff]
        %v1622 = vld [vmem:[#allocation2 + $0x318] sm:$0xff]
        %v1623 = vld [vmem:[#allocation2 + $0x320] sm:$0xff]
        %v1624 = vld [vmem:[#allocation2 + $0x328] sm:$0xff]
        %v1625 = vld [vmem:[#allocation2 + $0x330] sm:$0xff]
        %v1626 = vld [vmem:[#allocation2 + $0x338] sm:$0xff]
        %v1627 = vld [vmem:[#allocation2 + $0x340] sm:$0xff]
        %v1628 = vld [vmem:[#allocation2 + $0x348] sm:$0xff]
        %v1629 = vld [vmem:[#allocation2 + $0x350] sm:$0xff]
        %v1630 = vld [vmem:[#allocation2 + $0x358] sm:$0xff]
        %v1631 = vld [vmem:[%s3] sm:$0xff]
        %v1632 = vld [vmem:[%s3 + $0x8] sm:$0xff]
        %v1633 = vld [vmem:[%s3 + $0x10] sm:$0xff]
        %v1634 = vld [vmem:[%s3 + $0x18] sm:$0xff]
        %1636 = vset.pattern.permute.xlu0 0
        %1637 = vperm.xlu0 %1636, %v1631
        %v1638 = vpop.permute.xlu0 %1637
        %1641 = vset.pattern.permute.xlu0 0
        %1642 = vperm.xlu0 %1641, %v1632
        %v1643 = vpop.permute.xlu0 %1642
        %1646 = vset.pattern.permute.xlu0 0
        %1647 = vperm.xlu0 %1646, %v1633
        %v1648 = vpop.permute.xlu0 %1647
        %1651 = vset.pattern.permute.xlu0 0
        %1652 = vperm.xlu0 %1651, %v1634
        %v1653 = vpop.permute.xlu0 %1652
        %v1663 = vunpack.c.l.b16 %v1515
        %v1664 = vunpack.c.h.b16 %v1515
        %v1665 = vunpack.c.l.b16 %v1516
        %v1666 = vunpack.c.l.b16 %v1517
        %v1667 = vunpack.c.h.b16 %v1517
        %v1668 = vunpack.c.l.b16 %v1518
        %v1669 = vunpack.c.l.b16 %v1519
        %v1670 = vunpack.c.h.b16 %v1519
        %v1671 = vunpack.c.l.b16 %v1520
        %v1672 = vunpack.c.l.b16 %v1521
        %v1673 = vunpack.c.h.b16 %v1521
        %v1674 = vunpack.c.l.b16 %v1522
        %v1675 = vpack.c.b16 %v1666, %v1663
        %v1676 = vpack.c.b16 %v1667, %v1664
        %v1677 = vpack.c.b16 %v1668, %v1665
        %v1678 = vpack.c.b16 %v1672, %v1669
        %v1679 = vpack.c.b16 %v1673, %v1670
        %v1680 = vpack.c.b16 %v1674, %v1671
        %v1793 = vunpack.c.l.b16 %v1523
        %v1794 = vunpack.c.h.b16 %v1523
        %v1795 = vunpack.c.l.b16 %v1524
        %v1796 = vunpack.c.h.b16 %v1524
        %v1797 = vunpack.c.l.b16 %v1525
        %v1798 = vunpack.c.h.b16 %v1525
        %v1799 = vunpack.c.l.b16 %v1526
        %v1800 = vunpack.c.h.b16 %v1526
        %v1801 = vunpack.c.l.b16 %v1527
        %v1802 = vunpack.c.h.b16 %v1527
        %v1803 = vunpack.c.l.b16 %v1528
        %v1804 = vunpack.c.h.b16 %v1528
        %v1805 = vunpack.c.l.b16 %v1529
        %v1806 = vunpack.c.h.b16 %v1529
        %v1807 = vunpack.c.l.b16 %v1530
        %v1808 = vunpack.c.h.b16 %v1530
        %v1809 = vunpack.c.l.b16 %v1531
        %v1810 = vunpack.c.h.b16 %v1531
        %v1811 = vunpack.c.l.b16 %v1532
        %v1812 = vunpack.c.h.b16 %v1532
        %v1813 = vunpack.c.l.b16 %v1533
        %v1814 = vunpack.c.h.b16 %v1533
        %v1815 = vunpack.c.l.b16 %v1534
        %v1816 = vunpack.c.h.b16 %v1534
        %v1817 = vunpack.c.l.b16 %v1535
        %v1818 = vunpack.c.h.b16 %v1535
        %v1819 = vunpack.c.l.b16 %v1536
        %v1820 = vunpack.c.h.b16 %v1536
        %v1821 = vunpack.c.l.b16 %v1537
        %v1822 = vunpack.c.h.b16 %v1537
        %v1823 = vunpack.c.l.b16 %v1538
        %v1824 = vunpack.c.h.b16 %v1538
        %v1825 = vunpack.c.l.b16 %v1539
        %v1826 = vunpack.c.h.b16 %v1539
        %v1827 = vunpack.c.l.b16 %v1540
        %v1828 = vunpack.c.h.b16 %v1540
        %v1829 = vunpack.c.l.b16 %v1541
        %v1830 = vunpack.c.h.b16 %v1541
        %v1831 = vunpack.c.l.b16 %v1542
        %v1832 = vunpack.c.h.b16 %v1542
        %v1833 = vunpack.c.l.b16 %v1543
        %v1834 = vunpack.c.h.b16 %v1543
        %v1835 = vunpack.c.l.b16 %v1544
        %v1836 = vunpack.c.h.b16 %v1544
        %v1837 = vunpack.c.l.b16 %v1545
        %v1838 = vunpack.c.h.b16 %v1545
        %v1839 = vunpack.c.l.b16 %v1546
        %v1840 = vunpack.c.h.b16 %v1546
        %v1841 = vunpack.c.l.b16 %v1547
        %v1842 = vunpack.c.h.b16 %v1547
        %v1843 = vunpack.c.l.b16 %v1548
        %v1844 = vunpack.c.h.b16 %v1548
        %v1845 = vunpack.c.l.b16 %v1549
        %v1846 = vunpack.c.h.b16 %v1549
        %v1847 = vunpack.c.l.b16 %v1550
        %v1848 = vunpack.c.h.b16 %v1550
        %v1849 = vunpack.c.l.b16 %v1551
        %v1850 = vunpack.c.h.b16 %v1551
        %v1851 = vunpack.c.l.b16 %v1552
        %v1852 = vunpack.c.h.b16 %v1552
        %v1853 = vunpack.c.l.b16 %v1553
        %v1854 = vunpack.c.h.b16 %v1553
        %v1855 = vunpack.c.l.b16 %v1554
        %v1856 = vunpack.c.h.b16 %v1554
        %v1857 = vunpack.c.l.b16 %v1555
        %v1858 = vunpack.c.h.b16 %v1555
        %v1859 = vunpack.c.l.b16 %v1556
        %v1860 = vunpack.c.h.b16 %v1556
        %v1861 = vunpack.c.l.b16 %v1557
        %v1862 = vunpack.c.h.b16 %v1557
        %v1863 = vunpack.c.l.b16 %v1558
        %v1864 = vunpack.c.h.b16 %v1558
        %v1865 = vunpack.c.l.b16 %v1559
        %v1866 = vunpack.c.h.b16 %v1559
        %v1867 = vunpack.c.l.b16 %v1560
        %v1868 = vunpack.c.h.b16 %v1560
        %v1869 = vunpack.c.l.b16 %v1561
        %v1870 = vunpack.c.h.b16 %v1561
        %v1871 = vunpack.c.l.b16 %v1562
        %v1872 = vunpack.c.h.b16 %v1562
        %v1873 = vunpack.c.l.b16 %v1563
        %v1874 = vunpack.c.h.b16 %v1563
        %v1875 = vunpack.c.l.b16 %v1564
        %v1876 = vunpack.c.h.b16 %v1564
        %v1877 = vunpack.c.l.b16 %v1565
        %v1878 = vunpack.c.h.b16 %v1565
        %v1879 = vunpack.c.l.b16 %v1566
        %v1880 = vunpack.c.h.b16 %v1566
        %v1881 = vunpack.c.l.b16 %v1567
        %v1882 = vunpack.c.h.b16 %v1567
        %v1883 = vunpack.c.l.b16 %v1568
        %v1884 = vunpack.c.h.b16 %v1568
        %v1885 = vunpack.c.l.b16 %v1569
        %v1886 = vunpack.c.h.b16 %v1569
        %v1887 = vunpack.c.l.b16 %v1570
        %v1888 = vunpack.c.h.b16 %v1570
        %v1889 = vunpack.c.l.b16 %v1571
        %v1890 = vunpack.c.h.b16 %v1571
        %v1891 = vunpack.c.l.b16 %v1572
        %v1892 = vunpack.c.h.b16 %v1572
        %v1893 = vunpack.c.l.b16 %v1573
        %v1894 = vunpack.c.h.b16 %v1573
        %v1895 = vunpack.c.l.b16 %v1574
        %v1896 = vunpack.c.h.b16 %v1574
        %v1897 = vunpack.c.l.b16 %v1575
        %v1898 = vunpack.c.h.b16 %v1575
        %v1899 = vunpack.c.l.b16 %v1576
        %v1900 = vunpack.c.h.b16 %v1576
        %v1901 = vunpack.c.l.b16 %v1577
        %v1902 = vunpack.c.h.b16 %v1577
        %v1903 = vunpack.c.l.b16 %v1578
        %v1904 = vunpack.c.h.b16 %v1578
        %v1905 = vunpack.c.l.b16 %v1579
        %v1906 = vunpack.c.h.b16 %v1579
        %v1907 = vunpack.c.l.b16 %v1580
        %v1908 = vunpack.c.h.b16 %v1580
        %v1909 = vunpack.c.l.b16 %v1581
        %v1910 = vunpack.c.h.b16 %v1581
        %v1911 = vunpack.c.l.b16 %v1582
        %v1912 = vunpack.c.h.b16 %v1582
        %v1913 = vunpack.c.l.b16 %v1583
        %v1914 = vunpack.c.h.b16 %v1583
        %v1915 = vunpack.c.l.b16 %v1584
        %v1916 = vunpack.c.h.b16 %v1584
        %v1917 = vunpack.c.l.b16 %v1585
        %v1918 = vunpack.c.h.b16 %v1585
        %v1919 = vunpack.c.l.b16 %v1586
        %v1920 = vunpack.c.h.b16 %v1586
        %v1921 = vunpack.c.l.b16 %v1587
        %v1922 = vunpack.c.h.b16 %v1587
        %v1923 = vunpack.c.l.b16 %v1588
        %v1924 = vunpack.c.h.b16 %v1588
        %v1925 = vunpack.c.l.b16 %v1589
        %v1926 = vunpack.c.h.b16 %v1589
        %v1927 = vunpack.c.l.b16 %v1590
        %v1928 = vunpack.c.h.b16 %v1590
        %v1929 = vunpack.c.l.b16 %v1591
        %v1930 = vunpack.c.h.b16 %v1591
        %v1931 = vunpack.c.l.b16 %v1592
        %v1932 = vunpack.c.h.b16 %v1592
        %v1933 = vunpack.c.l.b16 %v1593
        %v1934 = vunpack.c.h.b16 %v1593
        %v1935 = vunpack.c.l.b16 %v1594
        %v1936 = vunpack.c.h.b16 %v1594
        %v1937 = vunpack.c.l.b16 %v1595
        %v1938 = vunpack.c.h.b16 %v1595
        %v1939 = vunpack.c.l.b16 %v1596
        %v1940 = vunpack.c.h.b16 %v1596
        %v1941 = vunpack.c.l.b16 %v1597
        %v1942 = vunpack.c.h.b16 %v1597
        %v1943 = vunpack.c.l.b16 %v1598
        %v1944 = vunpack.c.h.b16 %v1598
        %v1945 = vunpack.c.l.b16 %v1599
        %v1946 = vunpack.c.h.b16 %v1599
        %v1947 = vunpack.c.l.b16 %v1600
        %v1948 = vunpack.c.h.b16 %v1600
        %v1949 = vunpack.c.l.b16 %v1601
        %v1950 = vunpack.c.h.b16 %v1601
        %v1951 = vunpack.c.l.b16 %v1602
        %v1952 = vunpack.c.h.b16 %v1602
        %v1953 = vunpack.c.l.b16 %v1603
        %v1954 = vunpack.c.h.b16 %v1603
        %v1955 = vunpack.c.l.b16 %v1604
        %v1956 = vunpack.c.h.b16 %v1604
        %v1957 = vunpack.c.l.b16 %v1605
        %v1958 = vunpack.c.h.b16 %v1605
        %v1959 = vunpack.c.l.b16 %v1606
        %v1960 = vunpack.c.h.b16 %v1606
        %v1961 = vunpack.c.l.b16 %v1607
        %v1962 = vunpack.c.h.b16 %v1607
        %v1963 = vunpack.c.l.b16 %v1608
        %v1964 = vunpack.c.h.b16 %v1608
        %v1965 = vunpack.c.l.b16 %v1609
        %v1966 = vunpack.c.h.b16 %v1609
        %v1967 = vunpack.c.l.b16 %v1610
        %v1968 = vunpack.c.h.b16 %v1610
        %v1969 = vunpack.c.l.b16 %v1611
        %v1970 = vunpack.c.h.b16 %v1611
        %v1971 = vunpack.c.l.b16 %v1612
        %v1972 = vunpack.c.h.b16 %v1612
        %v1973 = vunpack.c.l.b16 %v1613
        %v1974 = vunpack.c.h.b16 %v1613
        %v1975 = vunpack.c.l.b16 %v1614
        %v1976 = vunpack.c.h.b16 %v1614
        %v1977 = vunpack.c.l.b16 %v1615
        %v1978 = vunpack.c.h.b16 %v1615
        %v1979 = vunpack.c.l.b16 %v1616
        %v1980 = vunpack.c.h.b16 %v1616
        %v1981 = vunpack.c.l.b16 %v1617
        %v1982 = vunpack.c.h.b16 %v1617
        %v1983 = vunpack.c.l.b16 %v1618
        %v1984 = vunpack.c.h.b16 %v1618
        %v1985 = vunpack.c.l.b16 %v1619
        %v1986 = vunpack.c.h.b16 %v1619
        %v1987 = vunpack.c.l.b16 %v1620
        %v1988 = vunpack.c.h.b16 %v1620
        %v1989 = vunpack.c.l.b16 %v1621
        %v1990 = vunpack.c.h.b16 %v1621
        %v1991 = vunpack.c.l.b16 %v1622
        %v1992 = vunpack.c.h.b16 %v1622
        %v1993 = vunpack.c.l.b16 %v1623
        %v1994 = vunpack.c.h.b16 %v1623
        %v1995 = vunpack.c.l.b16 %v1624
        %v1996 = vunpack.c.h.b16 %v1624
        %v1997 = vunpack.c.l.b16 %v1625
        %v1998 = vunpack.c.h.b16 %v1625
        %v1999 = vunpack.c.l.b16 %v1626
        %v2000 = vunpack.c.h.b16 %v1626
        %v2001 = vunpack.c.l.b16 %v1627
        %v2002 = vunpack.c.h.b16 %v1627
        %v2003 = vunpack.c.l.b16 %v1628
        %v2004 = vunpack.c.h.b16 %v1628
        %v2005 = vunpack.c.l.b16 %v1629
        %v2006 = vunpack.c.h.b16 %v1629
        %v2007 = vunpack.c.l.b16 %v1630
        %v2008 = vunpack.c.h.b16 %v1630
        %v2009 = vpack.c.b16 %v1799, %v1793
        %v2010 = vpack.c.b16 %v1800, %v1794
        %v2011 = vpack.c.b16 %v1801, %v1795
        %v2012 = vpack.c.b16 %v1802, %v1796
        %v2013 = vpack.c.b16 %v1803, %v1797
        %v2014 = vpack.c.b16 %v1804, %v1798
        %v2015 = vpack.c.b16 %v1811, %v1805
        %v2016 = vpack.c.b16 %v1812, %v1806
        %v2017 = vpack.c.b16 %v1813, %v1807
        %v2018 = vpack.c.b16 %v1814, %v1808
        %v2019 = vpack.c.b16 %v1815, %v1809
        %v2020 = vpack.c.b16 %v1816, %v1810
        %v2021 = vpack.c.b16 %v1823, %v1817
        %v2022 = vpack.c.b16 %v1824, %v1818
        %v2023 = vpack.c.b16 %v1825, %v1819
        %v2024 = vpack.c.b16 %v1826, %v1820
        %v2025 = vpack.c.b16 %v1827, %v1821
        %v2026 = vpack.c.b16 %v1828, %v1822
        %v2027 = vpack.c.b16 %v1835, %v1829
        %v2028 = vpack.c.b16 %v1836, %v1830
        %v2029 = vpack.c.b16 %v1837, %v1831
        %v2030 = vpack.c.b16 %v1838, %v1832
        %v2031 = vpack.c.b16 %v1839, %v1833
        %v2032 = vpack.c.b16 %v1840, %v1834
        %v2033 = vpack.c.b16 %v1847, %v1841
        %v2034 = vpack.c.b16 %v1848, %v1842
        %v2035 = vpack.c.b16 %v1849, %v1843
        %v2036 = vpack.c.b16 %v1850, %v1844
        %v2037 = vpack.c.b16 %v1851, %v1845
        %v2038 = vpack.c.b16 %v1852, %v1846
        %v2039 = vpack.c.b16 %v1859, %v1853
        %v2040 = vpack.c.b16 %v1860, %v1854
        %v2041 = vpack.c.b16 %v1861, %v1855
        %v2042 = vpack.c.b16 %v1862, %v1856
        %v2043 = vpack.c.b16 %v1863, %v1857
        %v2044 = vpack.c.b16 %v1864, %v1858
        %v2045 = vpack.c.b16 %v1871, %v1865
        %v2046 = vpack.c.b16 %v1872, %v1866
        %v2047 = vpack.c.b16 %v1873, %v1867
        %v2048 = vpack.c.b16 %v1874, %v1868
        %v2049 = vpack.c.b16 %v1875, %v1869
        %v2050 = vpack.c.b16 %v1876, %v1870
        %v2051 = vpack.c.b16 %v1883, %v1877
        %v2052 = vpack.c.b16 %v1884, %v1878
        %v2053 = vpack.c.b16 %v1885, %v1879
        %v2054 = vpack.c.b16 %v1886, %v1880
        %v2055 = vpack.c.b16 %v1887, %v1881
        %v2056 = vpack.c.b16 %v1888, %v1882
        %v2057 = vpack.c.b16 %v1895, %v1889
        %v2058 = vpack.c.b16 %v1896, %v1890
        %v2059 = vpack.c.b16 %v1897, %v1891
        %v2060 = vpack.c.b16 %v1898, %v1892
        %v2061 = vpack.c.b16 %v1899, %v1893
        %v2062 = vpack.c.b16 %v1900, %v1894
        %v2063 = vpack.c.b16 %v1907, %v1901
        %v2064 = vpack.c.b16 %v1908, %v1902
        %v2065 = vpack.c.b16 %v1909, %v1903
        %v2066 = vpack.c.b16 %v1910, %v1904
        %v2067 = vpack.c.b16 %v1911, %v1905
        %v2068 = vpack.c.b16 %v1912, %v1906
        %v2069 = vpack.c.b16 %v1919, %v1913
        %v2070 = vpack.c.b16 %v1920, %v1914
        %v2071 = vpack.c.b16 %v1921, %v1915
        %v2072 = vpack.c.b16 %v1922, %v1916
        %v2073 = vpack.c.b16 %v1923, %v1917
        %v2074 = vpack.c.b16 %v1924, %v1918
        %v2075 = vpack.c.b16 %v1931, %v1925
        %v2076 = vpack.c.b16 %v1932, %v1926
        %v2077 = vpack.c.b16 %v1933, %v1927
        %v2078 = vpack.c.b16 %v1934, %v1928
        %v2079 = vpack.c.b16 %v1935, %v1929
        %v2080 = vpack.c.b16 %v1936, %v1930
        %v2081 = vpack.c.b16 %v1943, %v1937
        %v2082 = vpack.c.b16 %v1944, %v1938
        %v2083 = vpack.c.b16 %v1945, %v1939
        %v2084 = vpack.c.b16 %v1946, %v1940
        %v2085 = vpack.c.b16 %v1947, %v1941
        %v2086 = vpack.c.b16 %v1948, %v1942
        %v2087 = vpack.c.b16 %v1955, %v1949
        %v2088 = vpack.c.b16 %v1956, %v1950
        %v2089 = vpack.c.b16 %v1957, %v1951
        %v2090 = vpack.c.b16 %v1958, %v1952
        %v2091 = vpack.c.b16 %v1959, %v1953
        %v2092 = vpack.c.b16 %v1960, %v1954
        %v2093 = vpack.c.b16 %v1967, %v1961
        %v2094 = vpack.c.b16 %v1968, %v1962
        %v2095 = vpack.c.b16 %v1969, %v1963
        %v2096 = vpack.c.b16 %v1970, %v1964
        %v2097 = vpack.c.b16 %v1971, %v1965
        %v2098 = vpack.c.b16 %v1972, %v1966
        %v2099 = vpack.c.b16 %v1979, %v1973
        %v2100 = vpack.c.b16 %v1980, %v1974
        %v2101 = vpack.c.b16 %v1981, %v1975
        %v2102 = vpack.c.b16 %v1982, %v1976
        %v2103 = vpack.c.b16 %v1983, %v1977
        %v2104 = vpack.c.b16 %v1984, %v1978
        %v2105 = vpack.c.b16 %v1991, %v1985
        %v2106 = vpack.c.b16 %v1992, %v1986
        %v2107 = vpack.c.b16 %v1993, %v1987
        %v2108 = vpack.c.b16 %v1994, %v1988
        %v2109 = vpack.c.b16 %v1995, %v1989
        %v2110 = vpack.c.b16 %v1996, %v1990
        %v2111 = vpack.c.b16 %v2003, %v1997
        %v2112 = vpack.c.b16 %v2004, %v1998
        %v2113 = vpack.c.b16 %v2005, %v1999
        %v2114 = vpack.c.b16 %v2006, %v2000
        %v2115 = vpack.c.b16 %v2007, %v2001
        %v2116 = vpack.c.b16 %v2008, %v2002
        %vm2225 = vcmask 261120
        %v2227 = vsel %vm2225, %v1677, 0
        %v2230 = vsel %vm2225, %v1680, 0
        %2232 = vmatpush.bf16.msra.mxu0 %v2051
        %2233 = vmatpush.bf16.msra.mxu0 %v2045
        %2234 = vmatpush.bf16.msra.mxu0 %v2039
        %2235 = vmatpush.bf16.msra.mxu0 %v2033
        %2236 = vmatpush.bf16.msra.mxu0 %v2027
        %2237 = vmatpush.bf16.msra.mxu0 %v2021
        %2238 = vmatpush.bf16.msra.mxu0 %v2015
        %2239 = vmatpush.bf16.msra.mxu0 %v2009
        %2240 = vmatmul.bf16.gmra.mxu0 %v1675
        %v2241 = vpop.f32.mrf.mxu0
        %v2242 = vadd.f32 %v1638, %v2241
        %v2243 = vpop.f32.mrf.mxu0
        %v2244 = vadd.f32 %v1643, %v2243
        %2245 = vmatmul.bf16.gmra.mxu0 %v1678
        %v2246 = vpop.f32.mrf.mxu0
        %v2247 = vadd.f32 %v1648, %v2246
        %v2248 = vpop.f32.mrf.mxu0
        %v2249 = vadd.f32 %v1653, %v2248
        %2250 = vdwg.mxu0
        %2251 = vmatpush.bf16.msra.mxu0 %v2099
        %2252 = vmatpush.bf16.msra.mxu0 %v2093
        %2253 = vmatpush.bf16.msra.mxu0 %v2087
        %2254 = vmatpush.bf16.msra.mxu0 %v2081
        %2255 = vmatpush.bf16.msra.mxu0 %v2075
        %2256 = vmatpush.bf16.msra.mxu0 %v2069
        %2257 = vmatpush.bf16.msra.mxu0 %v2063
        %2258 = vmatpush.bf16.msra.mxu0 %v2057
        %2259 = vmatmul.bf16.gmra.mxu0 %v1676
        %v2260 = vpop.f32.mrf.mxu0
        %v2261 = vadd.f32 %v2242, %v2260
        %v2262 = vpop.f32.mrf.mxu0
        %v2263 = vadd.f32 %v2244, %v2262
        %2264 = vmatmul.bf16.gmra.mxu0 %v1679
        %v2265 = vpop.f32.mrf.mxu0
        %v2266 = vadd.f32 %v2247, %v2265
        %v2267 = vpop.f32.mrf.mxu0
        %v2268 = vadd.f32 %v2249, %v2267
        %2269 = vdwg.mxu0
        %2270 = vmatpush.bf16.msra.mxu0 0
        %2271 = vmatpush.bf16.msra.mxu0 0
        %2272 = vmatpush.bf16.msra.mxu0 0
        %2273 = vmatpush.bf16.msra.mxu0 0
        %2274 = vmatpush.bf16.msra.mxu0 0
        %2275 = vmatpush.bf16.msra.mxu0 0
        %2276 = vmatpush.bf16.msra.mxu0 %v2111
        %2277 = vmatpush.bf16.msra.mxu0 %v2105
        %2278 = vmatmul.bf16.gmra.mxu0 %v2227
        %v2279 = vpop.f32.mrf.mxu0
        %v2280 = vadd.f32 %v2261, %v2279
        %v2281 = vpop.f32.mrf.mxu0
        %v2282 = vadd.f32 %v2263, %v2281
        %2283 = vmatmul.bf16.gmra.mxu0 %v2230
        %v2284 = vpop.f32.mrf.mxu0
        %v2285 = vadd.f32 %v2266, %v2284
        %v2286 = vpop.f32.mrf.mxu0
        %v2287 = vadd.f32 %v2268, %v2286
        %2288 = vdwg.mxu0
        %2289 = vmatpush.bf16.msra.mxu0 %v2052
        %2290 = vmatpush.bf16.msra.mxu0 %v2046
        %2291 = vmatpush.bf16.msra.mxu0 %v2040
        %2292 = vmatpush.bf16.msra.mxu0 %v2034
        %2293 = vmatpush.bf16.msra.mxu0 %v2028
        %2294 = vmatpush.bf16.msra.mxu0 %v2022
        %2295 = vmatpush.bf16.msra.mxu0 %v2016
        %2296 = vmatpush.bf16.msra.mxu0 %v2010
        %2297 = vmatmul.bf16.gmra.mxu0 %v1675
        %v2298 = vpop.f32.mrf.mxu0
        %v2299 = vadd.f32 %v1638, %v2298
        %v2300 = vpop.f32.mrf.mxu0
        %v2301 = vadd.f32 %v1643, %v2300
        %2302 = vmatmul.bf16.gmra.mxu0 %v1678
        %v2303 = vpop.f32.mrf.mxu0
        %v2304 = vadd.f32 %v1648, %v2303
        %v2305 = vpop.f32.mrf.mxu0
        %v2306 = vadd.f32 %v1653, %v2305
        %2307 = vdwg.mxu0
        %2308 = vmatpush.bf16.msra.mxu0 %v2100
        %2309 = vmatpush.bf16.msra.mxu0 %v2094
        %2310 = vmatpush.bf16.msra.mxu0 %v2088
        %2311 = vmatpush.bf16.msra.mxu0 %v2082
        %2312 = vmatpush.bf16.msra.mxu0 %v2076
        %2313 = vmatpush.bf16.msra.mxu0 %v2070
        %2314 = vmatpush.bf16.msra.mxu0 %v2064
        %2315 = vmatpush.bf16.msra.mxu0 %v2058
        %2316 = vmatmul.bf16.gmra.mxu0 %v1676
        %v2317 = vpop.f32.mrf.mxu0
        %v2318 = vadd.f32 %v2299, %v2317
        %v2319 = vpop.f32.mrf.mxu0
        %v2320 = vadd.f32 %v2301, %v2319
        %2321 = vmatmul.bf16.gmra.mxu0 %v1679
        %v2322 = vpop.f32.mrf.mxu0
        %v2323 = vadd.f32 %v2304, %v2322
        %v2324 = vpop.f32.mrf.mxu0
        %v2325 = vadd.f32 %v2306, %v2324
        %2326 = vdwg.mxu0
        %2327 = vmatpush.bf16.msra.mxu0 0
        %2328 = vmatpush.bf16.msra.mxu0 0
        %2329 = vmatpush.bf16.msra.mxu0 0
        %2330 = vmatpush.bf16.msra.mxu0 0
        %2331 = vmatpush.bf16.msra.mxu0 0
        %2332 = vmatpush.bf16.msra.mxu0 0
        %2333 = vmatpush.bf16.msra.mxu0 %v2112
        %2334 = vmatpush.bf16.msra.mxu0 %v2106
        %2335 = vmatmul.bf16.gmra.mxu0 %v2227
        %v2336 = vpop.f32.mrf.mxu0
        %v2337 = vadd.f32 %v2318, %v2336
        %v2338 = vpop.f32.mrf.mxu0
        %v2339 = vadd.f32 %v2320, %v2338
        %2340 = vmatmul.bf16.gmra.mxu0 %v2230
        %v2341 = vpop.f32.mrf.mxu0
        %v2342 = vadd.f32 %v2323, %v2341
        %v2343 = vpop.f32.mrf.mxu0
        %v2344 = vadd.f32 %v2325, %v2343
        %2345 = vdwg.mxu0
        %2346 = vmatpush.bf16.msra.mxu0 %v2053
        %2347 = vmatpush.bf16.msra.mxu0 %v2047
        %2348 = vmatpush.bf16.msra.mxu0 %v2041
        %2349 = vmatpush.bf16.msra.mxu0 %v2035
        %2350 = vmatpush.bf16.msra.mxu0 %v2029
        %2351 = vmatpush.bf16.msra.mxu0 %v2023
        %2352 = vmatpush.bf16.msra.mxu0 %v2017
        %2353 = vmatpush.bf16.msra.mxu0 %v2011
        %2354 = vmatmul.bf16.gmra.mxu0 %v1675
        %v2355 = vpop.f32.mrf.mxu0
        %v2356 = vadd.f32 %v1638, %v2355
        %v2357 = vpop.f32.mrf.mxu0
        %v2358 = vadd.f32 %v1643, %v2357
        %2359 = vmatmul.bf16.gmra.mxu0 %v1678
        %v2360 = vpop.f32.mrf.mxu0
        %v2361 = vadd.f32 %v1648, %v2360
        %v2362 = vpop.f32.mrf.mxu0
        %v2363 = vadd.f32 %v1653, %v2362
        %2364 = vdwg.mxu0
        %2365 = vmatpush.bf16.msra.mxu0 %v2101
        %2366 = vmatpush.bf16.msra.mxu0 %v2095
        %2367 = vmatpush.bf16.msra.mxu0 %v2089
        %2368 = vmatpush.bf16.msra.mxu0 %v2083
        %2369 = vmatpush.bf16.msra.mxu0 %v2077
        %2370 = vmatpush.bf16.msra.mxu0 %v2071
        %2371 = vmatpush.bf16.msra.mxu0 %v2065
        %2372 = vmatpush.bf16.msra.mxu0 %v2059
        %2373 = vmatmul.bf16.gmra.mxu0 %v1676
        %v2374 = vpop.f32.mrf.mxu0
        %v2375 = vadd.f32 %v2356, %v2374
        %v2376 = vpop.f32.mrf.mxu0
        %v2377 = vadd.f32 %v2358, %v2376
        %2378 = vmatmul.bf16.gmra.mxu0 %v1679
        %v2379 = vpop.f32.mrf.mxu0
        %v2380 = vadd.f32 %v2361, %v2379
        %v2381 = vpop.f32.mrf.mxu0
        %v2382 = vadd.f32 %v2363, %v2381
        %2383 = vdwg.mxu0
        %2384 = vmatpush.bf16.msra.mxu0 0
        %2385 = vmatpush.bf16.msra.mxu0 0
        %2386 = vmatpush.bf16.msra.mxu0 0
        %2387 = vmatpush.bf16.msra.mxu0 0
        %2388 = vmatpush.bf16.msra.mxu0 0
        %2389 = vmatpush.bf16.msra.mxu0 0
        %2390 = vmatpush.bf16.msra.mxu0 %v2113
        %2391 = vmatpush.bf16.msra.mxu0 %v2107
        %2392 = vmatmul.bf16.gmra.mxu0 %v2227
        %v2393 = vpop.f32.mrf.mxu0
        %v2394 = vadd.f32 %v2375, %v2393
        %v2395 = vpop.f32.mrf.mxu0
        %v2396 = vadd.f32 %v2377, %v2395
        %2397 = vmatmul.bf16.gmra.mxu0 %v2230
        %v2398 = vpop.f32.mrf.mxu0
        %v2399 = vadd.f32 %v2380, %v2398
        %v2400 = vpop.f32.mrf.mxu0
        %v2401 = vadd.f32 %v2382, %v2400
        %2402 = vdwg.mxu0
        %2403 = vmatpush.bf16.msra.mxu0 %v2054
        %2404 = vmatpush.bf16.msra.mxu0 %v2048
        %2405 = vmatpush.bf16.msra.mxu0 %v2042
        %2406 = vmatpush.bf16.msra.mxu0 %v2036
        %2407 = vmatpush.bf16.msra.mxu0 %v2030
        %2408 = vmatpush.bf16.msra.mxu0 %v2024
        %2409 = vmatpush.bf16.msra.mxu0 %v2018
        %2410 = vmatpush.bf16.msra.mxu0 %v2012
        %2411 = vmatmul.bf16.gmra.mxu0 %v1675
        %v2412 = vpop.f32.mrf.mxu0
        %v2413 = vadd.f32 %v1638, %v2412
        %v2414 = vpop.f32.mrf.mxu0
        %v2415 = vadd.f32 %v1643, %v2414
        %2416 = vmatmul.bf16.gmra.mxu0 %v1678
        %v2417 = vpop.f32.mrf.mxu0
        %v2418 = vadd.f32 %v1648, %v2417
        %v2419 = vpop.f32.mrf.mxu0
        %v2420 = vadd.f32 %v1653, %v2419
        %2421 = vdwg.mxu0
        %2422 = vmatpush.bf16.msra.mxu0 %v2102
        %2423 = vmatpush.bf16.msra.mxu0 %v2096
        %2424 = vmatpush.bf16.msra.mxu0 %v2090
        %2425 = vmatpush.bf16.msra.mxu0 %v2084
        %2426 = vmatpush.bf16.msra.mxu0 %v2078
        %2427 = vmatpush.bf16.msra.mxu0 %v2072
        %2428 = vmatpush.bf16.msra.mxu0 %v2066
        %2429 = vmatpush.bf16.msra.mxu0 %v2060
        %2430 = vmatmul.bf16.gmra.mxu0 %v1676
        %v2431 = vpop.f32.mrf.mxu0
        %v2432 = vadd.f32 %v2413, %v2431
        %v2433 = vpop.f32.mrf.mxu0
        %v2434 = vadd.f32 %v2415, %v2433
        %2435 = vmatmul.bf16.gmra.mxu0 %v1679
        %v2436 = vpop.f32.mrf.mxu0
        %v2437 = vadd.f32 %v2418, %v2436
        %v2438 = vpop.f32.mrf.mxu0
        %v2439 = vadd.f32 %v2420, %v2438
        %2440 = vdwg.mxu0
        %2441 = vmatpush.bf16.msra.mxu0 0
        %2442 = vmatpush.bf16.msra.mxu0 0
        %2443 = vmatpush.bf16.msra.mxu0 0
        %2444 = vmatpush.bf16.msra.mxu0 0
        %2445 = vmatpush.bf16.msra.mxu0 0
        %2446 = vmatpush.bf16.msra.mxu0 0
        %2447 = vmatpush.bf16.msra.mxu0 %v2114
        %2448 = vmatpush.bf16.msra.mxu0 %v2108
        %2449 = vmatmul.bf16.gmra.mxu0 %v2227
        %v2450 = vpop.f32.mrf.mxu0
        %v2451 = vadd.f32 %v2432, %v2450
        %v2452 = vpop.f32.mrf.mxu0
        %v2453 = vadd.f32 %v2434, %v2452
        %2454 = vmatmul.bf16.gmra.mxu0 %v2230
        %v2455 = vpop.f32.mrf.mxu0
        %v2456 = vadd.f32 %v2437, %v2455
        %v2457 = vpop.f32.mrf.mxu0
        %v2458 = vadd.f32 %v2439, %v2457
        %2459 = vdwg.mxu0
        %2460 = vmatpush.bf16.msra.mxu0 %v2055
        %2461 = vmatpush.bf16.msra.mxu0 %v2049
        %2462 = vmatpush.bf16.msra.mxu0 %v2043
        %2463 = vmatpush.bf16.msra.mxu0 %v2037
        %2464 = vmatpush.bf16.msra.mxu0 %v2031
        %2465 = vmatpush.bf16.msra.mxu0 %v2025
        %2466 = vmatpush.bf16.msra.mxu0 %v2019
        %2467 = vmatpush.bf16.msra.mxu0 %v2013
        %2468 = vmatmul.bf16.gmra.mxu0 %v1675
        %v2469 = vpop.f32.mrf.mxu0
        %v2470 = vadd.f32 %v1638, %v2469
        %v2471 = vpop.f32.mrf.mxu0
        %v2472 = vadd.f32 %v1643, %v2471
        %2473 = vmatmul.bf16.gmra.mxu0 %v1678
        %v2474 = vpop.f32.mrf.mxu0
        %v2475 = vadd.f32 %v1648, %v2474
        %v2476 = vpop.f32.mrf.mxu0
        %v2477 = vadd.f32 %v1653, %v2476
        %2478 = vdwg.mxu0
        %2479 = vmatpush.bf16.msra.mxu0 %v2103
        %2480 = vmatpush.bf16.msra.mxu0 %v2097
        %2481 = vmatpush.bf16.msra.mxu0 %v2091
        %2482 = vmatpush.bf16.msra.mxu0 %v2085
        %2483 = vmatpush.bf16.msra.mxu0 %v2079
        %2484 = vmatpush.bf16.msra.mxu0 %v2073
        %2485 = vmatpush.bf16.msra.mxu0 %v2067
        %2486 = vmatpush.bf16.msra.mxu0 %v2061
        %2487 = vmatmul.bf16.gmra.mxu0 %v1676
        %v2488 = vpop.f32.mrf.mxu0
        %v2489 = vadd.f32 %v2470, %v2488
        %v2490 = vpop.f32.mrf.mxu0
        %v2491 = vadd.f32 %v2472, %v2490
        %2492 = vmatmul.bf16.gmra.mxu0 %v1679
        %v2493 = vpop.f32.mrf.mxu0
        %v2494 = vadd.f32 %v2475, %v2493
        %v2495 = vpop.f32.mrf.mxu0
        %v2496 = vadd.f32 %v2477, %v2495
        %2497 = vdwg.mxu0
        %2498 = vmatpush.bf16.msra.mxu0 0
        %2499 = vmatpush.bf16.msra.mxu0 0
        %2500 = vmatpush.bf16.msra.mxu0 0
        %2501 = vmatpush.bf16.msra.mxu0 0
        %2502 = vmatpush.bf16.msra.mxu0 0
        %2503 = vmatpush.bf16.msra.mxu0 0
        %2504 = vmatpush.bf16.msra.mxu0 %v2115
        %2505 = vmatpush.bf16.msra.mxu0 %v2109
        %2506 = vmatmul.bf16.gmra.mxu0 %v2227
        %v2507 = vpop.f32.mrf.mxu0
        %v2508 = vadd.f32 %v2489, %v2507
        %v2509 = vpop.f32.mrf.mxu0
        %v2510 = vadd.f32 %v2491, %v2509
        %2511 = vmatmul.bf16.gmra.mxu0 %v2230
        %v2512 = vpop.f32.mrf.mxu0
        %v2513 = vadd.f32 %v2494, %v2512
        %v2514 = vpop.f32.mrf.mxu0
        %v2515 = vadd.f32 %v2496, %v2514
        %2516 = vdwg.mxu0
        %2517 = vmatpush.bf16.msra.mxu0 %v2056
        %2518 = vmatpush.bf16.msra.mxu0 %v2050
        %2519 = vmatpush.bf16.msra.mxu0 %v2044
        %2520 = vmatpush.bf16.msra.mxu0 %v2038
        %2521 = vmatpush.bf16.msra.mxu0 %v2032
        %2522 = vmatpush.bf16.msra.mxu0 %v2026
        %2523 = vmatpush.bf16.msra.mxu0 %v2020
        %2524 = vmatpush.bf16.msra.mxu0 %v2014
        %2525 = vmatmul.bf16.gmra.mxu0 %v1675
        %v2526 = vpop.f32.mrf.mxu0
        %v2527 = vadd.f32 %v1638, %v2526
        %v2528 = vpop.f32.mrf.mxu0
        %v2529 = vadd.f32 %v1643, %v2528
        %2530 = vmatmul.bf16.gmra.mxu0 %v1678
        %v2531 = vpop.f32.mrf.mxu0
        %v2532 = vadd.f32 %v1648, %v2531
        %v2533 = vpop.f32.mrf.mxu0
        %v2534 = vadd.f32 %v1653, %v2533
        %2535 = vdwg.mxu0
        %2536 = vmatpush.bf16.msra.mxu0 %v2104
        %2537 = vmatpush.bf16.msra.mxu0 %v2098
        %2538 = vmatpush.bf16.msra.mxu0 %v2092
        %2539 = vmatpush.bf16.msra.mxu0 %v2086
        %2540 = vmatpush.bf16.msra.mxu0 %v2080
        %2541 = vmatpush.bf16.msra.mxu0 %v2074
        %2542 = vmatpush.bf16.msra.mxu0 %v2068
        %2543 = vmatpush.bf16.msra.mxu0 %v2062
        %2544 = vmatmul.bf16.gmra.mxu0 %v1676
        %v2545 = vpop.f32.mrf.mxu0
        %v2546 = vadd.f32 %v2527, %v2545
        %v2547 = vpop.f32.mrf.mxu0
        %v2548 = vadd.f32 %v2529, %v2547
        %2549 = vmatmul.bf16.gmra.mxu0 %v1679
        %v2550 = vpop.f32.mrf.mxu0
        %v2551 = vadd.f32 %v2532, %v2550
        %v2552 = vpop.f32.mrf.mxu0
        %v2553 = vadd.f32 %v2534, %v2552
        %2554 = vdwg.mxu0
        %2555 = vmatpush.bf16.msra.mxu0 0
        %2556 = vmatpush.bf16.msra.mxu0 0
        %2557 = vmatpush.bf16.msra.mxu0 0
        %2558 = vmatpush.bf16.msra.mxu0 0
        %2559 = vmatpush.bf16.msra.mxu0 0
        %2560 = vmatpush.bf16.msra.mxu0 0
        %2561 = vmatpush.bf16.msra.mxu0 %v2116
        %2562 = vmatpush.bf16.msra.mxu0 %v2110
        %2563 = vmatmul.bf16.gmra.mxu0 %v2227
        %v2564 = vpop.f32.mrf.mxu0
        %v2565 = vadd.f32 %v2546, %v2564
        %v2566 = vpop.f32.mrf.mxu0
        %v2567 = vadd.f32 %v2548, %v2566
        %2568 = vmatmul.bf16.gmra.mxu0 %v2230
        %v2569 = vpop.f32.mrf.mxu0
        %v2570 = vadd.f32 %v2551, %v2569
        %v2571 = vpop.f32.mrf.mxu0
        %v2572 = vadd.f32 %v2553, %v2571
        %2573 = vdwg.mxu0
        %v2574 = vmax.f32 %v2280, 0.0
        %v2575 = vmax.f32 %v2337, 0.0
        %v2576 = vmax.f32 %v2394, 0.0
        %v2577 = vmax.f32 %v2451, 0.0
        %v2578 = vmax.f32 %v2508, 0.0
        %v2579 = vmax.f32 %v2565, 0.0
        %v2580 = vmax.f32 %v2282, 0.0
        %v2581 = vmax.f32 %v2339, 0.0
        %v2582 = vmax.f32 %v2396, 0.0
        %v2583 = vmax.f32 %v2453, 0.0
        %v2584 = vmax.f32 %v2510, 0.0
        %v2585 = vmax.f32 %v2567, 0.0
        %v2586 = vmax.f32 %v2285, 0.0
        %v2587 = vmax.f32 %v2342, 0.0
        %v2588 = vmax.f32 %v2399, 0.0
        %v2589 = vmax.f32 %v2456, 0.0
        %v2590 = vmax.f32 %v2513, 0.0
        %v2591 = vmax.f32 %v2570, 0.0
        %v2592 = vmax.f32 %v2287, 0.0
        %v2593 = vmax.f32 %v2344, 0.0
        %v2594 = vmax.f32 %v2401, 0.0
        %v2595 = vmax.f32 %v2458, 0.0
        %v2596 = vmax.f32 %v2515, 0.0
        %v2597 = vmax.f32 %v2572, 0.0
        %v2599 = vperm.slane %v384, 0
        %v2600 = vperm.slane %v384, 1
        %v2601 = vperm.slane %v384, 2
        %v2602 = vperm.slane %v384, 3
        %v2603 = vperm.slane %v384, 4
        %v2604 = vperm.slane %v384, 5
        %v2611 = vmul.f32 %v2574, %v2599
        %v2612 = vmul.f32 %v2575, %v2600
        %v2613 = vmul.f32 %v2576, %v2601
        %v2614 = vmul.f32 %v2577, %v2602
        %v2615 = vmul.f32 %v2578, %v2603
        %v2616 = vmul.f32 %v2579, %v2604
        %v2617 = vmul.f32 %v2580, %v2599
        %v2618 = vmul.f32 %v2581, %v2600
        %v2619 = vmul.f32 %v2582, %v2601
        %v2620 = vmul.f32 %v2583, %v2602
        %v2621 = vmul.f32 %v2584, %v2603
        %v2622 = vmul.f32 %v2585, %v2604
        %v2623 = vmul.f32 %v2586, %v2599
        %v2624 = vmul.f32 %v2587, %v2600
        %v2625 = vmul.f32 %v2588, %v2601
        %v2626 = vmul.f32 %v2589, %v2602
        %v2627 = vmul.f32 %v2590, %v2603
        %v2628 = vmul.f32 %v2591, %v2604
        %v2629 = vmul.f32 %v2592, %v2599
        %v2630 = vmul.f32 %v2593, %v2600
        %v2631 = vmul.f32 %v2594, %v2601
        %v2632 = vmul.f32 %v2595, %v2602
        %v2633 = vmul.f32 %v2596, %v2603
        %v2634 = vmul.f32 %v2597, %v2604
        %vm2635 = vcmask 150528
        %2636 = vst.msk [vmem:[#allocation3] sm:$0xf] %vm2635, 0
        %2637 = vst.msk [vmem:[#allocation3 + $0x10] sm:$0xf] %vm2635, 0
        %2638 = vst.msk [vmem:[#allocation3 + $0x20] sm:$0xf] %vm2635, 0
        %2639 = vst.msk [vmem:[#allocation3 + $0x30] sm:$0xf] %vm2635, 0
        %2640 = vst.msk [vmem:[#allocation3 + $0x40] sm:$0xf] %vm2635, 0
        %2641 = vst.msk [vmem:[#allocation3 + $0x50] sm:$0xf] %vm2635, 0
        %2642 = vst.msk [vmem:[#allocation3 + $0x60] sm:$0xf] %vm2635, 0
        %2643 = vst.msk [vmem:[#allocation3 + $0x70] sm:$0xf] %vm2635, 0
        %vm2644 = vcmask 306328
        %2645 = vst.msk [vmem:[#allocation3 + $0xc] sm:$0xf] %vm2644, 0
        %2646 = vst.msk [vmem:[#allocation3 + $0x1c] sm:$0xf] %vm2644, 0
        %2647 = vst.msk [vmem:[#allocation3 + $0x2c] sm:$0xf] %vm2644, 0
        %2648 = vst.msk [vmem:[#allocation3 + $0x3c] sm:$0xf] %vm2644, 0
        %2649 = vst.msk [vmem:[#allocation3 + $0x4c] sm:$0xf] %vm2644, 0
        %2650 = vst.msk [vmem:[#allocation3 + $0x5c] sm:$0xf] %vm2644, 0
        %2651 = vst.msk [vmem:[#allocation3 + $0x6c] sm:$0xf] %vm2644, 0
        %2652 = vst.msk [vmem:[#allocation3 + $0x7c] sm:$0xf] %vm2644, 0
        %v2653 = vpack.c.bf16 %v2612, %v2611
        %v2654 = vpack.c.bf16 %v2613, %v2613
        %v2655 = vpack.c.bf16 %v2618, %v2617
        %v2656 = vpack.c.bf16 %v2619, %v2619
        %v2657 = vpack.c.bf16 %v2624, %v2623
        %v2658 = vpack.c.bf16 %v2625, %v2625
        %v2659 = vpack.c.bf16 %v2630, %v2629
        %v2660 = vpack.c.bf16 %v2631, %v2631
        %2669 = vrot.lane.b32.xlu0 %v2653, 19
        %v2670 = vpop.permute.xlu0 %2669
        %2671 = vrot.lane.b32.xlu0 %v2654, 19
        %v2672 = vpop.permute.xlu0 %2671
        %2673 = vrot.lane.b32.xlu0 %v2655, 19
        %v2674 = vpop.permute.xlu0 %2673
        %2675 = vrot.lane.b32.xlu0 %v2656, 19
        %v2676 = vpop.permute.xlu0 %2675
        %2677 = vrot.lane.b32.xlu0 %v2657, 19
        %v2678 = vpop.permute.xlu0 %2677
        %2679 = vrot.lane.b32.xlu0 %v2658, 19
        %v2680 = vpop.permute.xlu0 %2679
        %2681 = vrot.lane.b32.xlu0 %v2659, 19
        %v2682 = vpop.permute.xlu0 %2681
        %2683 = vrot.lane.b32.xlu0 %v2660, 19
        %v2684 = vpop.permute.xlu0 %2683
        %v2685 = vrot.slane %v2670, 4
        %v2686 = vrot.slane %v2672, 4
        %v2687 = vrot.slane %v2674, 4
        %v2688 = vrot.slane %v2676, 4
        %v2689 = vrot.slane %v2678, 4
        %v2690 = vrot.slane %v2680, 4
        %v2691 = vrot.slane %v2682, 4
        %v2692 = vrot.slane %v2684, 4
        %vm2693 = vcmask 154624
        %v2694 = vsel %vm2693, %v2685, %v2670
        %v2695 = vsel %vm441, %v2685, %v2686
        %v2696 = vsel %vm2693, %v2695, %v2672
        %v2697 = vsel %vm2693, %v2687, %v2674
        %v2698 = vsel %vm441, %v2687, %v2688
        %v2699 = vsel %vm2693, %v2698, %v2676
        %v2700 = vsel %vm2693, %v2689, %v2678
        %v2701 = vsel %vm441, %v2689, %v2690
        %v2702 = vsel %vm2693, %v2701, %v2680
        %v2703 = vsel %vm2693, %v2691, %v2682
        %v2704 = vsel %vm441, %v2691, %v2692
        %v2705 = vsel %vm2693, %v2704, %v2684
        %vm2714 = vcmask 1043608
        %vm2715 = vcmask 1047556
        %vm2716 = vmor %vm2715, %vm2714
        %2717 = vst.msk [vmem:[#allocation3] sm:$0xff] %vm2716, %v2694
        %vm2718 = vcmask 1043456
        %vm2719 = vcmask 154628
        %vm2720 = vmor %vm2719, %vm2718
        %2721 = vst.msk [vmem:[#allocation3 + $0x8] sm:$0xff] %vm2720, %v2696
        %2722 = vst.msk [vmem:[#allocation3 + $0x10] sm:$0xff] %vm2716, %v2697
        %2723 = vst.msk [vmem:[#allocation3 + $0x18] sm:$0xff] %vm2720, %v2699
        %2724 = vst.msk [vmem:[#allocation3 + $0x20] sm:$0xff] %vm2716, %v2700
        %2725 = vst.msk [vmem:[#allocation3 + $0x28] sm:$0xff] %vm2720, %v2702
        %2726 = vst.msk [vmem:[#allocation3 + $0x30] sm:$0xff] %vm2716, %v2703
        %2727 = vst.msk [vmem:[#allocation3 + $0x38] sm:$0xff] %vm2720, %v2705
        %v2728 = vpack.c.bf16 %v2615, %v2614
        %v2729 = vpack.c.bf16 %v2616, %v2616
        %v2730 = vpack.c.bf16 %v2621, %v2620
        %v2731 = vpack.c.bf16 %v2622, %v2622
        %v2732 = vpack.c.bf16 %v2627, %v2626
        %v2733 = vpack.c.bf16 %v2628, %v2628
        %v2734 = vpack.c.bf16 %v2633, %v2632
        %v2735 = vpack.c.bf16 %v2634, %v2634
        %2744 = vrot.lane.b32.xlu0 %v2728, 19
        %v2745 = vpop.permute.xlu0 %2744
        %2746 = vrot.lane.b32.xlu0 %v2729, 19
        %v2747 = vpop.permute.xlu0 %2746
        %2748 = vrot.lane.b32.xlu0 %v2730, 19
        %v2749 = vpop.permute.xlu0 %2748
        %2750 = vrot.lane.b32.xlu0 %v2731, 19
        %v2751 = vpop.permute.xlu0 %2750
        %2752 = vrot.lane.b32.xlu0 %v2732, 19
        %v2753 = vpop.permute.xlu0 %2752
        %2754 = vrot.lane.b32.xlu0 %v2733, 19
        %v2755 = vpop.permute.xlu0 %2754
        %2756 = vrot.lane.b32.xlu0 %v2734, 19
        %v2757 = vpop.permute.xlu0 %2756
        %2758 = vrot.lane.b32.xlu0 %v2735, 19
        %v2759 = vpop.permute.xlu0 %2758
        %v2760 = vrot.slane %v2745, 4
        %v2761 = vrot.slane %v2747, 4
        %v2762 = vrot.slane %v2749, 4
        %v2763 = vrot.slane %v2751, 4
        %v2764 = vrot.slane %v2753, 4
        %v2765 = vrot.slane %v2755, 4
        %v2766 = vrot.slane %v2757, 4
        %v2767 = vrot.slane %v2759, 4
        %v2768 = vsel %vm2693, %v2760, %v2745
        %v2769 = vsel %vm441, %v2760, %v2761
        %v2770 = vsel %vm2693, %v2769, %v2747
        %v2771 = vsel %vm2693, %v2762, %v2749
        %v2772 = vsel %vm441, %v2762, %v2763
        %v2773 = vsel %vm2693, %v2772, %v2751
        %v2774 = vsel %vm2693, %v2764, %v2753
        %v2775 = vsel %vm441, %v2764, %v2765
        %v2776 = vsel %vm2693, %v2775, %v2755
        %v2777 = vsel %vm2693, %v2766, %v2757
        %v2778 = vsel %vm441, %v2766, %v2767
        %v2779 = vsel %vm2693, %v2778, %v2759
        %s2788 = scalar_lea.vmem [#allocation3], 64
        %2789 = vst.msk [vmem:[%s2788] sm:$0xff] %vm2716, %v2768
        %2790 = vst.msk [vmem:[%s2788 + $0x8] sm:$0xff] %vm2720, %v2770
        %2791 = vst.msk [vmem:[%s2788 + $0x10] sm:$0xff] %vm2716, %v2771
        %2792 = vst.msk [vmem:[%s2788 + $0x18] sm:$0xff] %vm2720, %v2773
        %2793 = vst.msk [vmem:[%s2788 + $0x20] sm:$0xff] %vm2716, %v2774
        %2794 = vst.msk [vmem:[%s2788 + $0x28] sm:$0xff] %vm2720, %v2776
        %2795 = vst.msk [vmem:[%s2788 + $0x30] sm:$0xff] %vm2716, %v2777
        %2796 = vst.msk [vmem:[%s2788 + $0x38] sm:$0xff] %vm2720, %v2779
        %v2797 = vld [vmem:[#allocation3] sm:$0xff]
        %v2798 = vld [vmem:[#allocation3 + $0x8] sm:$0xf]
        %v2799 = vld [vmem:[#allocation3 + $0x10] sm:$0xff]
        %v2800 = vld [vmem:[#allocation3 + $0x18] sm:$0xf]
        %v2801 = vld [vmem:[#allocation3 + $0x20] sm:$0xff]
        %v2802 = vld [vmem:[#allocation3 + $0x28] sm:$0xf]
        %v2803 = vld [vmem:[#allocation3 + $0x30] sm:$0xff]
        %v2804 = vld [vmem:[#allocation3 + $0x38] sm:$0xf]
        %2805 = vst [vmem:[#allocation2] sm:$0xff] %v2797
        %2806 = vst [vmem:[#allocation2 + $0x8] sm:$0xf] %v2798
        %2807 = vst [vmem:[#allocation2 + $0x18] sm:$0xff] %v2799
        %2808 = vst [vmem:[#allocation2 + $0x20] sm:$0xf] %v2800
        %2809 = vst [vmem:[#allocation2 + $0x30] sm:$0xff] %v2801
        %2810 = vst [vmem:[#allocation2 + $0x38] sm:$0xf] %v2802
        %2811 = vst [vmem:[#allocation2 + $0x48] sm:$0xff] %v2803
        %2812 = vst [vmem:[#allocation2 + $0x50] sm:$0xf] %v2804
        %v2813 = vld [vmem:[#allocation3] sm:$0xff]
        %v2814 = vld [vmem:[#allocation3 + $0x8] sm:$0xff]
        %v2815 = vld [vmem:[#allocation3 + $0x10] sm:$0xff]
        %v2816 = vld [vmem:[#allocation3 + $0x18] sm:$0xff]
        %v2817 = vld [vmem:[#allocation3 + $0x20] sm:$0xff]
        %v2818 = vld [vmem:[#allocation3 + $0x28] sm:$0xff]
        %v2819 = vld [vmem:[#allocation3 + $0x30] sm:$0xff]
        %v2820 = vld [vmem:[#allocation3 + $0x38] sm:$0xff]
        %2829 = vrot.lane.b32.xlu0 %v2813, 127
        %v2830 = vpop.permute.xlu0 %2829
        %2831 = vrot.lane.b32.xlu0 %v2814, 127
        %v2832 = vpop.permute.xlu0 %2831
        %2833 = vrot.lane.b32.xlu0 %v2815, 127
        %v2834 = vpop.permute.xlu0 %2833
        %2835 = vrot.lane.b32.xlu0 %v2816, 127
        %v2836 = vpop.permute.xlu0 %2835
        %2837 = vrot.lane.b32.xlu0 %v2817, 127
        %v2838 = vpop.permute.xlu0 %2837
        %2839 = vrot.lane.b32.xlu0 %v2818, 127
        %v2840 = vpop.permute.xlu0 %2839
        %2841 = vrot.lane.b32.xlu0 %v2819, 127
        %v2842 = vpop.permute.xlu0 %2841
        %2843 = vrot.lane.b32.xlu0 %v2820, 127
        %v2844 = vpop.permute.xlu0 %2843
        %v2845 = vrot.slane %v2830, 4
        %v2846 = vrot.slane %v2832, 4
        %v2847 = vrot.slane %v2834, 4
        %v2848 = vrot.slane %v2836, 4
        %v2849 = vrot.slane %v2838, 4
        %v2850 = vrot.slane %v2840, 4
        %v2851 = vrot.slane %v2842, 4
        %v2852 = vrot.slane %v2844, 4
        %v2853 = vsel %vm441, %v2845, %v2846
        %v2854 = vsel %vm443, %v2830, %v2853
        %v2855 = vsel %vm443, %v2832, %v2846
        %v2856 = vsel %vm441, %v2847, %v2848
        %v2857 = vsel %vm443, %v2834, %v2856
        %v2858 = vsel %vm443, %v2836, %v2848
        %v2859 = vsel %vm441, %v2849, %v2850
        %v2860 = vsel %vm443, %v2838, %v2859
        %v2861 = vsel %vm443, %v2840, %v2850
        %v2862 = vsel %vm441, %v2851, %v2852
        %v2863 = vsel %vm443, %v2842, %v2862
        %v2864 = vsel %vm443, %v2844, %v2852
        %2873 = vst [vmem:[#allocation2 + $0x60] sm:$0xff] %v2854
        %2874 = vst [vmem:[#allocation2 + $0x68] sm:$0xf] %v2855
        %2875 = vst [vmem:[#allocation2 + $0x78] sm:$0xff] %v2857
        %2876 = vst [vmem:[#allocation2 + $0x80] sm:$0xf] %v2858
        %2877 = vst [vmem:[#allocation2 + $0x90] sm:$0xff] %v2860
        %2878 = vst [vmem:[#allocation2 + $0x98] sm:$0xf] %v2861
        %2879 = vst [vmem:[#allocation2 + $0xa8] sm:$0xff] %v2863
        %2880 = vst [vmem:[#allocation2 + $0xb0] sm:$0xf] %v2864
        %v2881 = vld [vmem:[#allocation3] sm:$0xff]
        %v2882 = vld [vmem:[#allocation3 + $0x8] sm:$0xff]
        %v2883 = vld [vmem:[#allocation3 + $0x10] sm:$0xff]
        %v2884 = vld [vmem:[#allocation3 + $0x18] sm:$0xff]
        %v2885 = vld [vmem:[#allocation3 + $0x20] sm:$0xff]
        %v2886 = vld [vmem:[#allocation3 + $0x28] sm:$0xff]
        %v2887 = vld [vmem:[#allocation3 + $0x30] sm:$0xff]
        %v2888 = vld [vmem:[#allocation3 + $0x38] sm:$0xff]
        %2897 = vrot.lane.b32.xlu0 %v2881, 126
        %v2898 = vpop.permute.xlu0 %2897
        %2899 = vrot.lane.b32.xlu0 %v2882, 126
        %v2900 = vpop.permute.xlu0 %2899
        %2901 = vrot.lane.b32.xlu0 %v2883, 126
        %v2902 = vpop.permute.xlu0 %2901
        %2903 = vrot.lane.b32.xlu0 %v2884, 126
        %v2904 = vpop.permute.xlu0 %2903
        %2905 = vrot.lane.b32.xlu0 %v2885, 126
        %v2906 = vpop.permute.xlu0 %2905
        %2907 = vrot.lane.b32.xlu0 %v2886, 126
        %v2908 = vpop.permute.xlu0 %2907
        %2909 = vrot.lane.b32.xlu0 %v2887, 126
        %v2910 = vpop.permute.xlu0 %2909
        %2911 = vrot.lane.b32.xlu0 %v2888, 126
        %v2912 = vpop.permute.xlu0 %2911
        %v2913 = vrot.slane %v2898, 4
        %v2914 = vrot.slane %v2900, 4
        %v2915 = vrot.slane %v2902, 4
        %v2916 = vrot.slane %v2904, 4
        %v2917 = vrot.slane %v2906, 4
        %v2918 = vrot.slane %v2908, 4
        %v2919 = vrot.slane %v2910, 4
        %v2920 = vrot.slane %v2912, 4
        %v2921 = vsel %vm441, %v2913, %v2914
        %v2922 = vsel %vm512, %v2898, %v2921
        %v2923 = vsel %vm512, %v2900, %v2914
        %v2924 = vsel %vm441, %v2915, %v2916
        %v2925 = vsel %vm512, %v2902, %v2924
        %v2926 = vsel %vm512, %v2904, %v2916
        %v2927 = vsel %vm441, %v2917, %v2918
        %v2928 = vsel %vm512, %v2906, %v2927
        %v2929 = vsel %vm512, %v2908, %v2918
        %v2930 = vsel %vm441, %v2919, %v2920
        %v2931 = vsel %vm512, %v2910, %v2930
        %v2932 = vsel %vm512, %v2912, %v2920
        %2941 = vst [vmem:[#allocation2 + $0xc0] sm:$0xff] %v2922
        %2942 = vst [vmem:[#allocation2 + $0xc8] sm:$0xf] %v2923
        %2943 = vst [vmem:[#allocation2 + $0xd8] sm:$0xff] %v2925
        %2944 = vst [vmem:[#allocation2 + $0xe0] sm:$0xf] %v2926
        %2945 = vst [vmem:[#allocation2 + $0xf0] sm:$0xff] %v2928
        %2946 = vst [vmem:[#allocation2 + $0xf8] sm:$0xf] %v2929
        %2947 = vst [vmem:[#allocation2 + $0x108] sm:$0xff] %v2931
        %2948 = vst [vmem:[#allocation2 + $0x110] sm:$0xf] %v2932
        %v2949 = vld [vmem:[#allocation3] sm:$0xff]
        %v2950 = vld [vmem:[#allocation3 + $0x8] sm:$0xff]
        %v2951 = vld [vmem:[#allocation3 + $0x10] sm:$0xff]
        %v2952 = vld [vmem:[#allocation3 + $0x18] sm:$0xff]
        %v2953 = vld [vmem:[#allocation3 + $0x20] sm:$0xff]
        %v2954 = vld [vmem:[#allocation3 + $0x28] sm:$0xff]
        %v2955 = vld [vmem:[#allocation3 + $0x30] sm:$0xff]
        %v2956 = vld [vmem:[#allocation3 + $0x38] sm:$0xff]
        %2965 = vrot.lane.b32.xlu0 %v2949, 110
        %v2966 = vpop.permute.xlu0 %2965
        %2967 = vrot.lane.b32.xlu0 %v2950, 110
        %v2968 = vpop.permute.xlu0 %2967
        %2969 = vrot.lane.b32.xlu0 %v2951, 110
        %v2970 = vpop.permute.xlu0 %2969
        %2971 = vrot.lane.b32.xlu0 %v2952, 110
        %v2972 = vpop.permute.xlu0 %2971
        %2973 = vrot.lane.b32.xlu0 %v2953, 110
        %v2974 = vpop.permute.xlu0 %2973
        %2975 = vrot.lane.b32.xlu0 %v2954, 110
        %v2976 = vpop.permute.xlu0 %2975
        %2977 = vrot.lane.b32.xlu0 %v2955, 110
        %v2978 = vpop.permute.xlu0 %2977
        %2979 = vrot.lane.b32.xlu0 %v2956, 110
        %v2980 = vpop.permute.xlu0 %2979
        %v2981 = vrot.slane %v2966, 4
        %v2982 = vrot.slane %v2968, 4
        %v2983 = vrot.slane %v2970, 4
        %v2984 = vrot.slane %v2972, 4
        %v2985 = vrot.slane %v2974, 4
        %v2986 = vrot.slane %v2976, 4
        %v2987 = vrot.slane %v2978, 4
        %v2988 = vrot.slane %v2980, 4
        %v2989 = vsel %vm441, %v2981, %v2982
        %v2990 = vsel %vm581, %v2966, %v2989
        %v2991 = vsel %vm581, %v2968, %v2982
        %v2992 = vsel %vm441, %v2983, %v2984
        %v2993 = vsel %vm581, %v2970, %v2992
        %v2994 = vsel %vm581, %v2972, %v2984
        %v2995 = vsel %vm441, %v2985, %v2986
        %v2996 = vsel %vm581, %v2974, %v2995
        %v2997 = vsel %vm581, %v2976, %v2986
        %v2998 = vsel %vm441, %v2987, %v2988
        %v2999 = vsel %vm581, %v2978, %v2998
        %v3000 = vsel %vm581, %v2980, %v2988
        %3009 = vst [vmem:[#allocation2 + $0x120] sm:$0xff] %v2990
        %3010 = vst [vmem:[#allocation2 + $0x128] sm:$0xf] %v2991
        %3011 = vst [vmem:[#allocation2 + $0x138] sm:$0xff] %v2993
        %3012 = vst [vmem:[#allocation2 + $0x140] sm:$0xf] %v2994
        %3013 = vst [vmem:[#allocation2 + $0x150] sm:$0xff] %v2996
        %3014 = vst [vmem:[#allocation2 + $0x158] sm:$0xf] %v2997
        %3015 = vst [vmem:[#allocation2 + $0x168] sm:$0xff] %v2999
        %3016 = vst [vmem:[#allocation2 + $0x170] sm:$0xf] %v3000
        %v3017 = vld [vmem:[#allocation3] sm:$0xff]
        %v3018 = vld [vmem:[#allocation3 + $0x8] sm:$0xff]
        %v3019 = vld [vmem:[#allocation3 + $0x10] sm:$0xff]
        %v3020 = vld [vmem:[#allocation3 + $0x18] sm:$0xff]
        %v3021 = vld [vmem:[#allocation3 + $0x20] sm:$0xff]
        %v3022 = vld [vmem:[#allocation3 + $0x28] sm:$0xff]
        %v3023 = vld [vmem:[#allocation3 + $0x30] sm:$0xff]
        %v3024 = vld [vmem:[#allocation3 + $0x38] sm:$0xff]
        %3033 = vrot.lane.b32.xlu0 %v3017, 109
        %v3034 = vpop.permute.xlu0 %3033
        %3035 = vrot.lane.b32.xlu0 %v3018, 109
        %v3036 = vpop.permute.xlu0 %3035
        %3037 = vrot.lane.b32.xlu0 %v3019, 109
        %v3038 = vpop.permute.xlu0 %3037
        %3039 = vrot.lane.b32.xlu0 %v3020, 109
        %v3040 = vpop.permute.xlu0 %3039
        %3041 = vrot.lane.b32.xlu0 %v3021, 109
        %v3042 = vpop.permute.xlu0 %3041
        %3043 = vrot.lane.b32.xlu0 %v3022, 109
        %v3044 = vpop.permute.xlu0 %3043
        %3045 = vrot.lane.b32.xlu0 %v3023, 109
        %v3046 = vpop.permute.xlu0 %3045
        %3047 = vrot.lane.b32.xlu0 %v3024, 109
        %v3048 = vpop.permute.xlu0 %3047
        %v3049 = vrot.slane %v3034, 4
        %v3050 = vrot.slane %v3036, 4
        %v3051 = vrot.slane %v3038, 4
        %v3052 = vrot.slane %v3040, 4
        %v3053 = vrot.slane %v3042, 4
        %v3054 = vrot.slane %v3044, 4
        %v3055 = vrot.slane %v3046, 4
        %v3056 = vrot.slane %v3048, 4
        %v3057 = vsel %vm441, %v3049, %v3050
        %v3058 = vsel %vm650, %v3034, %v3057
        %v3059 = vsel %vm650, %v3036, %v3050
        %v3060 = vsel %vm441, %v3051, %v3052
        %v3061 = vsel %vm650, %v3038, %v3060
        %v3062 = vsel %vm650, %v3040, %v3052
        %v3063 = vsel %vm441, %v3053, %v3054
        %v3064 = vsel %vm650, %v3042, %v3063
        %v3065 = vsel %vm650, %v3044, %v3054
        %v3066 = vsel %vm441, %v3055, %v3056
        %v3067 = vsel %vm650, %v3046, %v3066
        %v3068 = vsel %vm650, %v3048, %v3056
        %3077 = vst [vmem:[#allocation2 + $0x180] sm:$0xff] %v3058
        %3078 = vst [vmem:[#allocation2 + $0x188] sm:$0xf] %v3059
        %3079 = vst [vmem:[#allocation2 + $0x198] sm:$0xff] %v3061
        %3080 = vst [vmem:[#allocation2 + $0x1a0] sm:$0xf] %v3062
        %3081 = vst [vmem:[#allocation2 + $0x1b0] sm:$0xff] %v3064
        %3082 = vst [vmem:[#allocation2 + $0x1b8] sm:$0xf] %v3065
        %3083 = vst [vmem:[#allocation2 + $0x1c8] sm:$0xff] %v3067
        %3084 = vst [vmem:[#allocation2 + $0x1d0] sm:$0xf] %v3068
        %v3085 = vld [vmem:[#allocation3] sm:$0xff]
        %v3086 = vld [vmem:[#allocation3 + $0x8] sm:$0xff]
        %v3087 = vld [vmem:[#allocation3 + $0x10] sm:$0xff]
        %v3088 = vld [vmem:[#allocation3 + $0x18] sm:$0xff]
        %v3089 = vld [vmem:[#allocation3 + $0x20] sm:$0xff]
        %v3090 = vld [vmem:[#allocation3 + $0x28] sm:$0xff]
        %v3091 = vld [vmem:[#allocation3 + $0x30] sm:$0xff]
        %v3092 = vld [vmem:[#allocation3 + $0x38] sm:$0xff]
        %3101 = vrot.lane.b32.xlu0 %v3085, 108
        %v3102 = vpop.permute.xlu0 %3101
        %3103 = vrot.lane.b32.xlu0 %v3086, 108
        %v3104 = vpop.permute.xlu0 %3103
        %3105 = vrot.lane.b32.xlu0 %v3087, 108
        %v3106 = vpop.permute.xlu0 %3105
        %3107 = vrot.lane.b32.xlu0 %v3088, 108
        %v3108 = vpop.permute.xlu0 %3107
        %3109 = vrot.lane.b32.xlu0 %v3089, 108
        %v3110 = vpop.permute.xlu0 %3109
        %3111 = vrot.lane.b32.xlu0 %v3090, 108
        %v3112 = vpop.permute.xlu0 %3111
        %3113 = vrot.lane.b32.xlu0 %v3091, 108
        %v3114 = vpop.permute.xlu0 %3113
        %3115 = vrot.lane.b32.xlu0 %v3092, 108
        %v3116 = vpop.permute.xlu0 %3115
        %v3117 = vrot.slane %v3102, 4
        %v3118 = vrot.slane %v3104, 4
        %v3119 = vrot.slane %v3106, 4
        %v3120 = vrot.slane %v3108, 4
        %v3121 = vrot.slane %v3110, 4
        %v3122 = vrot.slane %v3112, 4
        %v3123 = vrot.slane %v3114, 4
        %v3124 = vrot.slane %v3116, 4
        %v3125 = vsel %vm441, %v3117, %v3118
        %v3126 = vsel %vm719, %v3102, %v3125
        %v3127 = vsel %vm719, %v3104, %v3118
        %v3128 = vsel %vm441, %v3119, %v3120
        %v3129 = vsel %vm719, %v3106, %v3128
        %v3130 = vsel %vm719, %v3108, %v3120
        %v3131 = vsel %vm441, %v3121, %v3122
        %v3132 = vsel %vm719, %v3110, %v3131
        %v3133 = vsel %vm719, %v3112, %v3122
        %v3134 = vsel %vm441, %v3123, %v3124
        %v3135 = vsel %vm719, %v3114, %v3134
        %v3136 = vsel %vm719, %v3116, %v3124
        %3145 = vst [vmem:[#allocation2 + $0x1e0] sm:$0xff] %v3126
        %3146 = vst [vmem:[#allocation2 + $0x1e8] sm:$0xf] %v3127
        %3147 = vst [vmem:[#allocation2 + $0x1f8] sm:$0xff] %v3129
        %3148 = vst [vmem:[#allocation2 + $0x200] sm:$0xf] %v3130
        %3149 = vst [vmem:[#allocation2 + $0x210] sm:$0xff] %v3132
        %3150 = vst [vmem:[#allocation2 + $0x218] sm:$0xf] %v3133
        %3151 = vst [vmem:[#allocation2 + $0x228] sm:$0xff] %v3135
        %3152 = vst [vmem:[#allocation2 + $0x230] sm:$0xf] %v3136
        %v3153 = vld [vmem:[#allocation3] sm:$0xff]
        %v3154 = vld [vmem:[#allocation3 + $0x8] sm:$0xff]
        %v3155 = vld [vmem:[#allocation3 + $0x10] sm:$0xff]
        %v3156 = vld [vmem:[#allocation3 + $0x18] sm:$0xff]
        %v3157 = vld [vmem:[#allocation3 + $0x20] sm:$0xff]
        %v3158 = vld [vmem:[#allocation3 + $0x28] sm:$0xff]
        %v3159 = vld [vmem:[#allocation3 + $0x30] sm:$0xff]
        %v3160 = vld [vmem:[#allocation3 + $0x38] sm:$0xff]
        %3169 = vrot.lane.b32.xlu0 %v3153, 92
        %v3170 = vpop.permute.xlu0 %3169
        %3171 = vrot.lane.b32.xlu0 %v3154, 92
        %v3172 = vpop.permute.xlu0 %3171
        %3173 = vrot.lane.b32.xlu0 %v3155, 92
        %v3174 = vpop.permute.xlu0 %3173
        %3175 = vrot.lane.b32.xlu0 %v3156, 92
        %v3176 = vpop.permute.xlu0 %3175
        %3177 = vrot.lane.b32.xlu0 %v3157, 92
        %v3178 = vpop.permute.xlu0 %3177
        %3179 = vrot.lane.b32.xlu0 %v3158, 92
        %v3180 = vpop.permute.xlu0 %3179
        %3181 = vrot.lane.b32.xlu0 %v3159, 92
        %v3182 = vpop.permute.xlu0 %3181
        %3183 = vrot.lane.b32.xlu0 %v3160, 92
        %v3184 = vpop.permute.xlu0 %3183
        %v3185 = vrot.slane %v3170, 4
        %v3186 = vrot.slane %v3172, 4
        %v3187 = vrot.slane %v3174, 4
        %v3188 = vrot.slane %v3176, 4
        %v3189 = vrot.slane %v3178, 4
        %v3190 = vrot.slane %v3180, 4
        %v3191 = vrot.slane %v3182, 4
        %v3192 = vrot.slane %v3184, 4
        %v3193 = vsel %vm441, %v3185, %v3186
        %v3194 = vsel %vm788, %v3170, %v3193
        %v3195 = vsel %vm788, %v3172, %v3186
        %v3196 = vsel %vm441, %v3187, %v3188
        %v3197 = vsel %vm788, %v3174, %v3196
        %v3198 = vsel %vm788, %v3176, %v3188
        %v3199 = vsel %vm441, %v3189, %v3190
        %v3200 = vsel %vm788, %v3178, %v3199
        %v3201 = vsel %vm788, %v3180, %v3190
        %v3202 = vsel %vm441, %v3191, %v3192
        %v3203 = vsel %vm788, %v3182, %v3202
        %v3204 = vsel %vm788, %v3184, %v3192
        %3213 = vst [vmem:[#allocation2 + $0x240] sm:$0xff] %v3194
        %3214 = vst [vmem:[#allocation2 + $0x248] sm:$0xf] %v3195
        %3215 = vst [vmem:[#allocation2 + $0x258] sm:$0xff] %v3197
        %3216 = vst [vmem:[#allocation2 + $0x260] sm:$0xf] %v3198
        %3217 = vst [vmem:[#allocation2 + $0x270] sm:$0xff] %v3200
        %3218 = vst [vmem:[#allocation2 + $0x278] sm:$0xf] %v3201
        %3219 = vst [vmem:[#allocation2 + $0x288] sm:$0xff] %v3203
        %3220 = vst [vmem:[#allocation2 + $0x290] sm:$0xf] %v3204
        %v3221 = vld [vmem:[#allocation3] sm:$0xff]
        %v3222 = vld [vmem:[#allocation3 + $0x8] sm:$0xff]
        %v3223 = vld [vmem:[#allocation3 + $0x10] sm:$0xff]
        %v3224 = vld [vmem:[#allocation3 + $0x18] sm:$0xff]
        %v3225 = vld [vmem:[#allocation3 + $0x20] sm:$0xff]
        %v3226 = vld [vmem:[#allocation3 + $0x28] sm:$0xff]
        %v3227 = vld [vmem:[#allocation3 + $0x30] sm:$0xff]
        %v3228 = vld [vmem:[#allocation3 + $0x38] sm:$0xff]
        %3237 = vrot.lane.b32.xlu0 %v3221, 91
        %v3238 = vpop.permute.xlu0 %3237
        %3239 = vrot.lane.b32.xlu0 %v3222, 91
        %v3240 = vpop.permute.xlu0 %3239
        %3241 = vrot.lane.b32.xlu0 %v3223, 91
        %v3242 = vpop.permute.xlu0 %3241
        %3243 = vrot.lane.b32.xlu0 %v3224, 91
        %v3244 = vpop.permute.xlu0 %3243
        %3245 = vrot.lane.b32.xlu0 %v3225, 91
        %v3246 = vpop.permute.xlu0 %3245
        %3247 = vrot.lane.b32.xlu0 %v3226, 91
        %v3248 = vpop.permute.xlu0 %3247
        %3249 = vrot.lane.b32.xlu0 %v3227, 91
        %v3250 = vpop.permute.xlu0 %3249
        %3251 = vrot.lane.b32.xlu0 %v3228, 91
        %v3252 = vpop.permute.xlu0 %3251
        %v3253 = vrot.slane %v3238, 4
        %v3254 = vrot.slane %v3240, 4
        %v3255 = vrot.slane %v3242, 4
        %v3256 = vrot.slane %v3244, 4
        %v3257 = vrot.slane %v3246, 4
        %v3258 = vrot.slane %v3248, 4
        %v3259 = vrot.slane %v3250, 4
        %v3260 = vrot.slane %v3252, 4
        %v3261 = vsel %vm441, %v3253, %v3254
        %v3262 = vsel %vm857, %v3238, %v3261
        %v3263 = vsel %vm857, %v3240, %v3254
        %v3264 = vsel %vm441, %v3255, %v3256
        %v3265 = vsel %vm857, %v3242, %v3264
        %v3266 = vsel %vm857, %v3244, %v3256
        %v3267 = vsel %vm441, %v3257, %v3258
        %v3268 = vsel %vm857, %v3246, %v3267
        %v3269 = vsel %vm857, %v3248, %v3258
        %v3270 = vsel %vm441, %v3259, %v3260
        %v3271 = vsel %vm857, %v3250, %v3270
        %v3272 = vsel %vm857, %v3252, %v3260
        %3281 = vst [vmem:[#allocation2 + $0x2a0] sm:$0xff] %v3262
        %3282 = vst [vmem:[#allocation2 + $0x2a8] sm:$0xf] %v3263
        %3283 = vst [vmem:[#allocation2 + $0x2b8] sm:$0xff] %v3265
        %3284 = vst [vmem:[#allocation2 + $0x2c0] sm:$0xf] %v3266
        %3285 = vst [vmem:[#allocation2 + $0x2d0] sm:$0xff] %v3268
        %3286 = vst [vmem:[#allocation2 + $0x2d8] sm:$0xf] %v3269
        %3287 = vst [vmem:[#allocation2 + $0x2e8] sm:$0xff] %v3271
        %3288 = vst [vmem:[#allocation2 + $0x2f0] sm:$0xf] %v3272
        %v3289 = vld [vmem:[#allocation3] sm:$0xff]
        %v3290 = vld [vmem:[#allocation3 + $0x8] sm:$0xff]
        %v3291 = vld [vmem:[#allocation3 + $0x10] sm:$0xff]
        %v3292 = vld [vmem:[#allocation3 + $0x18] sm:$0xff]
        %v3293 = vld [vmem:[#allocation3 + $0x20] sm:$0xff]
        %v3294 = vld [vmem:[#allocation3 + $0x28] sm:$0xff]
        %v3295 = vld [vmem:[#allocation3 + $0x30] sm:$0xff]
        %v3296 = vld [vmem:[#allocation3 + $0x38] sm:$0xff]
        %3305 = vrot.lane.b32.xlu0 %v3289, 90
        %v3306 = vpop.permute.xlu0 %3305
        %3307 = vrot.lane.b32.xlu0 %v3290, 90
        %v3308 = vpop.permute.xlu0 %3307
        %3309 = vrot.lane.b32.xlu0 %v3291, 90
        %v3310 = vpop.permute.xlu0 %3309
        %3311 = vrot.lane.b32.xlu0 %v3292, 90
        %v3312 = vpop.permute.xlu0 %3311
        %3313 = vrot.lane.b32.xlu0 %v3293, 90
        %v3314 = vpop.permute.xlu0 %3313
        %3315 = vrot.lane.b32.xlu0 %v3294, 90
        %v3316 = vpop.permute.xlu0 %3315
        %3317 = vrot.lane.b32.xlu0 %v3295, 90
        %v3318 = vpop.permute.xlu0 %3317
        %3319 = vrot.lane.b32.xlu0 %v3296, 90
        %v3320 = vpop.permute.xlu0 %3319
        %v3321 = vrot.slane %v3306, 4
        %v3322 = vrot.slane %v3308, 4
        %v3323 = vrot.slane %v3310, 4
        %v3324 = vrot.slane %v3312, 4
        %v3325 = vrot.slane %v3314, 4
        %v3326 = vrot.slane %v3316, 4
        %v3327 = vrot.slane %v3318, 4
        %v3328 = vrot.slane %v3320, 4
        %v3329 = vsel %vm441, %v3321, %v3322
        %v3330 = vsel %vm926, %v3306, %v3329
        %v3331 = vsel %vm926, %v3308, %v3322
        %v3332 = vsel %vm441, %v3323, %v3324
        %v3333 = vsel %vm926, %v3310, %v3332
        %v3334 = vsel %vm926, %v3312, %v3324
        %v3335 = vsel %vm441, %v3325, %v3326
        %v3336 = vsel %vm926, %v3314, %v3335
        %v3337 = vsel %vm926, %v3316, %v3326
        %v3338 = vsel %vm441, %v3327, %v3328
        %v3339 = vsel %vm926, %v3318, %v3338
        %v3340 = vsel %vm926, %v3320, %v3328
        %3349 = vst [vmem:[#allocation2 + $0x300] sm:$0xff] %v3330
        %3350 = vst [vmem:[#allocation2 + $0x308] sm:$0xf] %v3331
        %3351 = vst [vmem:[#allocation2 + $0x318] sm:$0xff] %v3333
        %3352 = vst [vmem:[#allocation2 + $0x320] sm:$0xf] %v3334
        %3353 = vst [vmem:[#allocation2 + $0x330] sm:$0xff] %v3336
        %3354 = vst [vmem:[#allocation2 + $0x338] sm:$0xf] %v3337
        %3355 = vst [vmem:[#allocation2 + $0x348] sm:$0xff] %v3339
        %3356 = vst [vmem:[#allocation2 + $0x350] sm:$0xf] %v3340
        %v3357 = vld [vmem:[%s2788] sm:$0xff]
        %v3358 = vld [vmem:[%s2788 + $0x8] sm:$0xf]
        %v3359 = vld [vmem:[%s2788 + $0x10] sm:$0xff]
        %v3360 = vld [vmem:[%s2788 + $0x18] sm:$0xf]
        %v3361 = vld [vmem:[%s2788 + $0x20] sm:$0xff]
        %v3362 = vld [vmem:[%s2788 + $0x28] sm:$0xf]
        %v3363 = vld [vmem:[%s2788 + $0x30] sm:$0xff]
        %v3364 = vld [vmem:[%s2788 + $0x38] sm:$0xf]
        %3365 = vst [vmem:[#allocation2 + $0xc] sm:$0xff] %v3357
        %3366 = vst [vmem:[#allocation2 + $0x14] sm:$0xf] %v3358
        %3367 = vst [vmem:[#allocation2 + $0x24] sm:$0xff] %v3359
        %3368 = vst [vmem:[#allocation2 + $0x2c] sm:$0xf] %v3360
        %3369 = vst [vmem:[#allocation2 + $0x3c] sm:$0xff] %v3361
        %3370 = vst [vmem:[#allocation2 + $0x44] sm:$0xf] %v3362
        %3371 = vst [vmem:[#allocation2 + $0x54] sm:$0xff] %v3363
        %3372 = vst [vmem:[#allocation2 + $0x5c] sm:$0xf] %v3364
        %v3373 = vld [vmem:[%s2788] sm:$0xff]
        %v3374 = vld [vmem:[%s2788 + $0x8] sm:$0xff]
        %v3375 = vld [vmem:[%s2788 + $0x10] sm:$0xff]
        %v3376 = vld [vmem:[%s2788 + $0x18] sm:$0xff]
        %v3377 = vld [vmem:[%s2788 + $0x20] sm:$0xff]
        %v3378 = vld [vmem:[%s2788 + $0x28] sm:$0xff]
        %v3379 = vld [vmem:[%s2788 + $0x30] sm:$0xff]
        %v3380 = vld [vmem:[%s2788 + $0x38] sm:$0xff]
        %3389 = vrot.lane.b32.xlu0 %v3373, 127
        %v3390 = vpop.permute.xlu0 %3389
        %3391 = vrot.lane.b32.xlu0 %v3374, 127
        %v3392 = vpop.permute.xlu0 %3391
        %3393 = vrot.lane.b32.xlu0 %v3375, 127
        %v3394 = vpop.permute.xlu0 %3393
        %3395 = vrot.lane.b32.xlu0 %v3376, 127
        %v3396 = vpop.permute.xlu0 %3395
        %3397 = vrot.lane.b32.xlu0 %v3377, 127
        %v3398 = vpop.permute.xlu0 %3397
        %3399 = vrot.lane.b32.xlu0 %v3378, 127
        %v3400 = vpop.permute.xlu0 %3399
        %3401 = vrot.lane.b32.xlu0 %v3379, 127
        %v3402 = vpop.permute.xlu0 %3401
        %3403 = vrot.lane.b32.xlu0 %v3380, 127
        %v3404 = vpop.permute.xlu0 %3403
        %v3405 = vrot.slane %v3390, 4
        %v3406 = vrot.slane %v3392, 4
        %v3407 = vrot.slane %v3394, 4
        %v3408 = vrot.slane %v3396, 4
        %v3409 = vrot.slane %v3398, 4
        %v3410 = vrot.slane %v3400, 4
        %v3411 = vrot.slane %v3402, 4
        %v3412 = vrot.slane %v3404, 4
        %v3413 = vsel %vm441, %v3405, %v3406
        %v3414 = vsel %vm443, %v3390, %v3413
        %v3415 = vsel %vm443, %v3392, %v3406
        %v3416 = vsel %vm441, %v3407, %v3408
        %v3417 = vsel %vm443, %v3394, %v3416
        %v3418 = vsel %vm443, %v3396, %v3408
        %v3419 = vsel %vm441, %v3409, %v3410
        %v3420 = vsel %vm443, %v3398, %v3419
        %v3421 = vsel %vm443, %v3400, %v3410
        %v3422 = vsel %vm441, %v3411, %v3412
        %v3423 = vsel %vm443, %v3402, %v3422
        %v3424 = vsel %vm443, %v3404, %v3412
        %3433 = vst [vmem:[#allocation2 + $0x6c] sm:$0xff] %v3414
        %3434 = vst [vmem:[#allocation2 + $0x74] sm:$0xf] %v3415
        %3435 = vst [vmem:[#allocation2 + $0x84] sm:$0xff] %v3417
        %3436 = vst [vmem:[#allocation2 + $0x8c] sm:$0xf] %v3418
        %3437 = vst [vmem:[#allocation2 + $0x9c] sm:$0xff] %v3420
        %3438 = vst [vmem:[#allocation2 + $0xa4] sm:$0xf] %v3421
        %3439 = vst [vmem:[#allocation2 + $0xb4] sm:$0xff] %v3423
        %3440 = vst [vmem:[#allocation2 + $0xbc] sm:$0xf] %v3424
        %v3441 = vld [vmem:[%s2788] sm:$0xff]
        %v3442 = vld [vmem:[%s2788 + $0x8] sm:$0xff]
        %v3443 = vld [vmem:[%s2788 + $0x10] sm:$0xff]
        %v3444 = vld [vmem:[%s2788 + $0x18] sm:$0xff]
        %v3445 = vld [vmem:[%s2788 + $0x20] sm:$0xff]
        %v3446 = vld [vmem:[%s2788 + $0x28] sm:$0xff]
        %v3447 = vld [vmem:[%s2788 + $0x30] sm:$0xff]
        %v3448 = vld [vmem:[%s2788 + $0x38] sm:$0xff]
        %3457 = vrot.lane.b32.xlu0 %v3441, 126
        %v3458 = vpop.permute.xlu0 %3457
        %3459 = vrot.lane.b32.xlu0 %v3442, 126
        %v3460 = vpop.permute.xlu0 %3459
        %3461 = vrot.lane.b32.xlu0 %v3443, 126
        %v3462 = vpop.permute.xlu0 %3461
        %3463 = vrot.lane.b32.xlu0 %v3444, 126
        %v3464 = vpop.permute.xlu0 %3463
        %3465 = vrot.lane.b32.xlu0 %v3445, 126
        %v3466 = vpop.permute.xlu0 %3465
        %3467 = vrot.lane.b32.xlu0 %v3446, 126
        %v3468 = vpop.permute.xlu0 %3467
        %3469 = vrot.lane.b32.xlu0 %v3447, 126
        %v3470 = vpop.permute.xlu0 %3469
        %3471 = vrot.lane.b32.xlu0 %v3448, 126
        %v3472 = vpop.permute.xlu0 %3471
        %v3473 = vrot.slane %v3458, 4
        %v3474 = vrot.slane %v3460, 4
        %v3475 = vrot.slane %v3462, 4
        %v3476 = vrot.slane %v3464, 4
        %v3477 = vrot.slane %v3466, 4
        %v3478 = vrot.slane %v3468, 4
        %v3479 = vrot.slane %v3470, 4
        %v3480 = vrot.slane %v3472, 4
        %v3481 = vsel %vm441, %v3473, %v3474
        %v3482 = vsel %vm512, %v3458, %v3481
        %v3483 = vsel %vm512, %v3460, %v3474
        %v3484 = vsel %vm441, %v3475, %v3476
        %v3485 = vsel %vm512, %v3462, %v3484
        %v3486 = vsel %vm512, %v3464, %v3476
        %v3487 = vsel %vm441, %v3477, %v3478
        %v3488 = vsel %vm512, %v3466, %v3487
        %v3489 = vsel %vm512, %v3468, %v3478
        %v3490 = vsel %vm441, %v3479, %v3480
        %v3491 = vsel %vm512, %v3470, %v3490
        %v3492 = vsel %vm512, %v3472, %v3480
        %3501 = vst [vmem:[#allocation2 + $0xcc] sm:$0xff] %v3482
        %3502 = vst [vmem:[#allocation2 + $0xd4] sm:$0xf] %v3483
        %3503 = vst [vmem:[#allocation2 + $0xe4] sm:$0xff] %v3485
        %3504 = vst [vmem:[#allocation2 + $0xec] sm:$0xf] %v3486
        %3505 = vst [vmem:[#allocation2 + $0xfc] sm:$0xff] %v3488
        %3506 = vst [vmem:[#allocation2 + $0x104] sm:$0xf] %v3489
        %3507 = vst [vmem:[#allocation2 + $0x114] sm:$0xff] %v3491
        %3508 = vst [vmem:[#allocation2 + $0x11c] sm:$0xf] %v3492
        %v3509 = vld [vmem:[%s2788] sm:$0xff]
        %v3510 = vld [vmem:[%s2788 + $0x8] sm:$0xff]
        %v3511 = vld [vmem:[%s2788 + $0x10] sm:$0xff]
        %v3512 = vld [vmem:[%s2788 + $0x18] sm:$0xff]
        %v3513 = vld [vmem:[%s2788 + $0x20] sm:$0xff]
        %v3514 = vld [vmem:[%s2788 + $0x28] sm:$0xff]
        %v3515 = vld [vmem:[%s2788 + $0x30] sm:$0xff]
        %v3516 = vld [vmem:[%s2788 + $0x38] sm:$0xff]
        %3525 = vrot.lane.b32.xlu0 %v3509, 110
        %v3526 = vpop.permute.xlu0 %3525
        %3527 = vrot.lane.b32.xlu0 %v3510, 110
        %v3528 = vpop.permute.xlu0 %3527
        %3529 = vrot.lane.b32.xlu0 %v3511, 110
        %v3530 = vpop.permute.xlu0 %3529
        %3531 = vrot.lane.b32.xlu0 %v3512, 110
        %v3532 = vpop.permute.xlu0 %3531
        %3533 = vrot.lane.b32.xlu0 %v3513, 110
        %v3534 = vpop.permute.xlu0 %3533
        %3535 = vrot.lane.b32.xlu0 %v3514, 110
        %v3536 = vpop.permute.xlu0 %3535
        %3537 = vrot.lane.b32.xlu0 %v3515, 110
        %v3538 = vpop.permute.xlu0 %3537
        %3539 = vrot.lane.b32.xlu0 %v3516, 110
        %v3540 = vpop.permute.xlu0 %3539
        %v3541 = vrot.slane %v3526, 4
        %v3542 = vrot.slane %v3528, 4
        %v3543 = vrot.slane %v3530, 4
        %v3544 = vrot.slane %v3532, 4
        %v3545 = vrot.slane %v3534, 4
        %v3546 = vrot.slane %v3536, 4
        %v3547 = vrot.slane %v3538, 4
        %v3548 = vrot.slane %v3540, 4
        %v3549 = vsel %vm441, %v3541, %v3542
        %v3550 = vsel %vm581, %v3526, %v3549
        %v3551 = vsel %vm581, %v3528, %v3542
        %v3552 = vsel %vm441, %v3543, %v3544
        %v3553 = vsel %vm581, %v3530, %v3552
        %v3554 = vsel %vm581, %v3532, %v3544
        %v3555 = vsel %vm441, %v3545, %v3546
        %v3556 = vsel %vm581, %v3534, %v3555
        %v3557 = vsel %vm581, %v3536, %v3546
        %v3558 = vsel %vm441, %v3547, %v3548
        %v3559 = vsel %vm581, %v3538, %v3558
        %v3560 = vsel %vm581, %v3540, %v3548
        %3569 = vst [vmem:[#allocation2 + $0x12c] sm:$0xff] %v3550
        %3570 = vst [vmem:[#allocation2 + $0x134] sm:$0xf] %v3551
        %3571 = vst [vmem:[#allocation2 + $0x144] sm:$0xff] %v3553
        %3572 = vst [vmem:[#allocation2 + $0x14c] sm:$0xf] %v3554
        %3573 = vst [vmem:[#allocation2 + $0x15c] sm:$0xff] %v3556
        %3574 = vst [vmem:[#allocation2 + $0x164] sm:$0xf] %v3557
        %3575 = vst [vmem:[#allocation2 + $0x174] sm:$0xff] %v3559
        %3576 = vst [vmem:[#allocation2 + $0x17c] sm:$0xf] %v3560
        %v3577 = vld [vmem:[%s2788] sm:$0xff]
        %v3578 = vld [vmem:[%s2788 + $0x8] sm:$0xff]
        %v3579 = vld [vmem:[%s2788 + $0x10] sm:$0xff]
        %v3580 = vld [vmem:[%s2788 + $0x18] sm:$0xff]
        %v3581 = vld [vmem:[%s2788 + $0x20] sm:$0xff]
        %v3582 = vld [vmem:[%s2788 + $0x28] sm:$0xff]
        %v3583 = vld [vmem:[%s2788 + $0x30] sm:$0xff]
        %v3584 = vld [vmem:[%s2788 + $0x38] sm:$0xff]
        %3593 = vrot.lane.b32.xlu0 %v3577, 109
        %v3594 = vpop.permute.xlu0 %3593
        %3595 = vrot.lane.b32.xlu0 %v3578, 109
        %v3596 = vpop.permute.xlu0 %3595
        %3597 = vrot.lane.b32.xlu0 %v3579, 109
        %v3598 = vpop.permute.xlu0 %3597
        %3599 = vrot.lane.b32.xlu0 %v3580, 109
        %v3600 = vpop.permute.xlu0 %3599
        %3601 = vrot.lane.b32.xlu0 %v3581, 109
        %v3602 = vpop.permute.xlu0 %3601
        %3603 = vrot.lane.b32.xlu0 %v3582, 109
        %v3604 = vpop.permute.xlu0 %3603
        %3605 = vrot.lane.b32.xlu0 %v3583, 109
        %v3606 = vpop.permute.xlu0 %3605
        %3607 = vrot.lane.b32.xlu0 %v3584, 109
        %v3608 = vpop.permute.xlu0 %3607
        %v3609 = vrot.slane %v3594, 4
        %v3610 = vrot.slane %v3596, 4
        %v3611 = vrot.slane %v3598, 4
        %v3612 = vrot.slane %v3600, 4
        %v3613 = vrot.slane %v3602, 4
        %v3614 = vrot.slane %v3604, 4
        %v3615 = vrot.slane %v3606, 4
        %v3616 = vrot.slane %v3608, 4
        %v3617 = vsel %vm441, %v3609, %v3610
        %v3618 = vsel %vm650, %v3594, %v3617
        %v3619 = vsel %vm650, %v3596, %v3610
        %v3620 = vsel %vm441, %v3611, %v3612
        %v3621 = vsel %vm650, %v3598, %v3620
        %v3622 = vsel %vm650, %v3600, %v3612
        %v3623 = vsel %vm441, %v3613, %v3614
        %v3624 = vsel %vm650, %v3602, %v3623
        %v3625 = vsel %vm650, %v3604, %v3614
        %v3626 = vsel %vm441, %v3615, %v3616
        %v3627 = vsel %vm650, %v3606, %v3626
        %v3628 = vsel %vm650, %v3608, %v3616
        %3637 = vst [vmem:[#allocation2 + $0x18c] sm:$0xff] %v3618
        %3638 = vst [vmem:[#allocation2 + $0x194] sm:$0xf] %v3619
        %3639 = vst [vmem:[#allocation2 + $0x1a4] sm:$0xff] %v3621
        %3640 = vst [vmem:[#allocation2 + $0x1ac] sm:$0xf] %v3622
        %3641 = vst [vmem:[#allocation2 + $0x1bc] sm:$0xff] %v3624
        %3642 = vst [vmem:[#allocation2 + $0x1c4] sm:$0xf] %v3625
        %3643 = vst [vmem:[#allocation2 + $0x1d4] sm:$0xff] %v3627
        %3644 = vst [vmem:[#allocation2 + $0x1dc] sm:$0xf] %v3628
        %v3645 = vld [vmem:[%s2788] sm:$0xff]
        %v3646 = vld [vmem:[%s2788 + $0x8] sm:$0xff]
        %v3647 = vld [vmem:[%s2788 + $0x10] sm:$0xff]
        %v3648 = vld [vmem:[%s2788 + $0x18] sm:$0xff]
        %v3649 = vld [vmem:[%s2788 + $0x20] sm:$0xff]
        %v3650 = vld [vmem:[%s2788 + $0x28] sm:$0xff]
        %v3651 = vld [vmem:[%s2788 + $0x30] sm:$0xff]
        %v3652 = vld [vmem:[%s2788 + $0x38] sm:$0xff]
        %3661 = vrot.lane.b32.xlu0 %v3645, 108
        %v3662 = vpop.permute.xlu0 %3661
        %3663 = vrot.lane.b32.xlu0 %v3646, 108
        %v3664 = vpop.permute.xlu0 %3663
        %3665 = vrot.lane.b32.xlu0 %v3647, 108
        %v3666 = vpop.permute.xlu0 %3665
        %3667 = vrot.lane.b32.xlu0 %v3648, 108
        %v3668 = vpop.permute.xlu0 %3667
        %3669 = vrot.lane.b32.xlu0 %v3649, 108
        %v3670 = vpop.permute.xlu0 %3669
        %3671 = vrot.lane.b32.xlu0 %v3650, 108
        %v3672 = vpop.permute.xlu0 %3671
        %3673 = vrot.lane.b32.xlu0 %v3651, 108
        %v3674 = vpop.permute.xlu0 %3673
        %3675 = vrot.lane.b32.xlu0 %v3652, 108
        %v3676 = vpop.permute.xlu0 %3675
        %v3677 = vrot.slane %v3662, 4
        %v3678 = vrot.slane %v3664, 4
        %v3679 = vrot.slane %v3666, 4
        %v3680 = vrot.slane %v3668, 4
        %v3681 = vrot.slane %v3670, 4
        %v3682 = vrot.slane %v3672, 4
        %v3683 = vrot.slane %v3674, 4
        %v3684 = vrot.slane %v3676, 4
        %v3685 = vsel %vm441, %v3677, %v3678
        %v3686 = vsel %vm719, %v3662, %v3685
        %v3687 = vsel %vm719, %v3664, %v3678
        %v3688 = vsel %vm441, %v3679, %v3680
        %v3689 = vsel %vm719, %v3666, %v3688
        %v3690 = vsel %vm719, %v3668, %v3680
        %v3691 = vsel %vm441, %v3681, %v3682
        %v3692 = vsel %vm719, %v3670, %v3691
        %v3693 = vsel %vm719, %v3672, %v3682
        %v3694 = vsel %vm441, %v3683, %v3684
        %v3695 = vsel %vm719, %v3674, %v3694
        %v3696 = vsel %vm719, %v3676, %v3684
        %3705 = vst [vmem:[#allocation2 + $0x1ec] sm:$0xff] %v3686
        %3706 = vst [vmem:[#allocation2 + $0x1f4] sm:$0xf] %v3687
        %3707 = vst [vmem:[#allocation2 + $0x204] sm:$0xff] %v3689
        %3708 = vst [vmem:[#allocation2 + $0x20c] sm:$0xf] %v3690
        %3709 = vst [vmem:[#allocation2 + $0x21c] sm:$0xff] %v3692
        %3710 = vst [vmem:[#allocation2 + $0x224] sm:$0xf] %v3693
        %3711 = vst [vmem:[#allocation2 + $0x234] sm:$0xff] %v3695
        %3712 = vst [vmem:[#allocation2 + $0x23c] sm:$0xf] %v3696
        %v3713 = vld [vmem:[%s2788] sm:$0xff]
        %v3714 = vld [vmem:[%s2788 + $0x8] sm:$0xff]
        %v3715 = vld [vmem:[%s2788 + $0x10] sm:$0xff]
        %v3716 = vld [vmem:[%s2788 + $0x18] sm:$0xff]
        %v3717 = vld [vmem:[%s2788 + $0x20] sm:$0xff]
        %v3718 = vld [vmem:[%s2788 + $0x28] sm:$0xff]
        %v3719 = vld [vmem:[%s2788 + $0x30] sm:$0xff]
        %v3720 = vld [vmem:[%s2788 + $0x38] sm:$0xff]
        %3729 = vrot.lane.b32.xlu0 %v3713, 92
        %v3730 = vpop.permute.xlu0 %3729
        %3731 = vrot.lane.b32.xlu0 %v3714, 92
        %v3732 = vpop.permute.xlu0 %3731
        %3733 = vrot.lane.b32.xlu0 %v3715, 92
        %v3734 = vpop.permute.xlu0 %3733
        %3735 = vrot.lane.b32.xlu0 %v3716, 92
        %v3736 = vpop.permute.xlu0 %3735
        %3737 = vrot.lane.b32.xlu0 %v3717, 92
        %v3738 = vpop.permute.xlu0 %3737
        %3739 = vrot.lane.b32.xlu0 %v3718, 92
        %v3740 = vpop.permute.xlu0 %3739
        %3741 = vrot.lane.b32.xlu0 %v3719, 92
        %v3742 = vpop.permute.xlu0 %3741
        %3743 = vrot.lane.b32.xlu0 %v3720, 92
        %v3744 = vpop.permute.xlu0 %3743
        %v3745 = vrot.slane %v3730, 4
        %v3746 = vrot.slane %v3732, 4
        %v3747 = vrot.slane %v3734, 4
        %v3748 = vrot.slane %v3736, 4
        %v3749 = vrot.slane %v3738, 4
        %v3750 = vrot.slane %v3740, 4
        %v3751 = vrot.slane %v3742, 4
        %v3752 = vrot.slane %v3744, 4
        %v3753 = vsel %vm441, %v3745, %v3746
        %v3754 = vsel %vm788, %v3730, %v3753
        %v3755 = vsel %vm788, %v3732, %v3746
        %v3756 = vsel %vm441, %v3747, %v3748
        %v3757 = vsel %vm788, %v3734, %v3756
        %v3758 = vsel %vm788, %v3736, %v3748
        %v3759 = vsel %vm441, %v3749, %v3750
        %v3760 = vsel %vm788, %v3738, %v3759
        %v3761 = vsel %vm788, %v3740, %v3750
        %v3762 = vsel %vm441, %v3751, %v3752
        %v3763 = vsel %vm788, %v3742, %v3762
        %v3764 = vsel %vm788, %v3744, %v3752
        %3773 = vst [vmem:[#allocation2 + $0x24c] sm:$0xff] %v3754
        %3774 = vst [vmem:[#allocation2 + $0x254] sm:$0xf] %v3755
        %3775 = vst [vmem:[#allocation2 + $0x264] sm:$0xff] %v3757
        %3776 = vst [vmem:[#allocation2 + $0x26c] sm:$0xf] %v3758
        %3777 = vst [vmem:[#allocation2 + $0x27c] sm:$0xff] %v3760
        %3778 = vst [vmem:[#allocation2 + $0x284] sm:$0xf] %v3761
        %3779 = vst [vmem:[#allocation2 + $0x294] sm:$0xff] %v3763
        %3780 = vst [vmem:[#allocation2 + $0x29c] sm:$0xf] %v3764
        %v3781 = vld [vmem:[%s2788] sm:$0xff]
        %v3782 = vld [vmem:[%s2788 + $0x8] sm:$0xff]
        %v3783 = vld [vmem:[%s2788 + $0x10] sm:$0xff]
        %v3784 = vld [vmem:[%s2788 + $0x18] sm:$0xff]
        %v3785 = vld [vmem:[%s2788 + $0x20] sm:$0xff]
        %v3786 = vld [vmem:[%s2788 + $0x28] sm:$0xff]
        %v3787 = vld [vmem:[%s2788 + $0x30] sm:$0xff]
        %v3788 = vld [vmem:[%s2788 + $0x38] sm:$0xff]
        %3797 = vrot.lane.b32.xlu0 %v3781, 91
        %v3798 = vpop.permute.xlu0 %3797
        %3799 = vrot.lane.b32.xlu0 %v3782, 91
        %v3800 = vpop.permute.xlu0 %3799
        %3801 = vrot.lane.b32.xlu0 %v3783, 91
        %v3802 = vpop.permute.xlu0 %3801
        %3803 = vrot.lane.b32.xlu0 %v3784, 91
        %v3804 = vpop.permute.xlu0 %3803
        %3805 = vrot.lane.b32.xlu0 %v3785, 91
        %v3806 = vpop.permute.xlu0 %3805
        %3807 = vrot.lane.b32.xlu0 %v3786, 91
        %v3808 = vpop.permute.xlu0 %3807
        %3809 = vrot.lane.b32.xlu0 %v3787, 91
        %v3810 = vpop.permute.xlu0 %3809
        %3811 = vrot.lane.b32.xlu0 %v3788, 91
        %v3812 = vpop.permute.xlu0 %3811
        %v3813 = vrot.slane %v3798, 4
        %v3814 = vrot.slane %v3800, 4
        %v3815 = vrot.slane %v3802, 4
        %v3816 = vrot.slane %v3804, 4
        %v3817 = vrot.slane %v3806, 4
        %v3818 = vrot.slane %v3808, 4
        %v3819 = vrot.slane %v3810, 4
        %v3820 = vrot.slane %v3812, 4
        %v3821 = vsel %vm441, %v3813, %v3814
        %v3822 = vsel %vm857, %v3798, %v3821
        %v3823 = vsel %vm857, %v3800, %v3814
        %v3824 = vsel %vm441, %v3815, %v3816
        %v3825 = vsel %vm857, %v3802, %v3824
        %v3826 = vsel %vm857, %v3804, %v3816
        %v3827 = vsel %vm441, %v3817, %v3818
        %v3828 = vsel %vm857, %v3806, %v3827
        %v3829 = vsel %vm857, %v3808, %v3818
        %v3830 = vsel %vm441, %v3819, %v3820
        %v3831 = vsel %vm857, %v3810, %v3830
        %v3832 = vsel %vm857, %v3812, %v3820
        %3841 = vst [vmem:[#allocation2 + $0x2ac] sm:$0xff] %v3822
        %3842 = vst [vmem:[#allocation2 + $0x2b4] sm:$0xf] %v3823
        %3843 = vst [vmem:[#allocation2 + $0x2c4] sm:$0xff] %v3825
        %3844 = vst [vmem:[#allocation2 + $0x2cc] sm:$0xf] %v3826
        %3845 = vst [vmem:[#allocation2 + $0x2dc] sm:$0xff] %v3828
        %3846 = vst [vmem:[#allocation2 + $0x2e4] sm:$0xf] %v3829
        %3847 = vst [vmem:[#allocation2 + $0x2f4] sm:$0xff] %v3831
        %3848 = vst [vmem:[#allocation2 + $0x2fc] sm:$0xf] %v3832
        %v3849 = vld [vmem:[%s2788] sm:$0xff]
        %v3850 = vld [vmem:[%s2788 + $0x8] sm:$0xff]
        %v3851 = vld [vmem:[%s2788 + $0x10] sm:$0xff]
        %v3852 = vld [vmem:[%s2788 + $0x18] sm:$0xff]
        %v3853 = vld [vmem:[%s2788 + $0x20] sm:$0xff]
        %v3854 = vld [vmem:[%s2788 + $0x28] sm:$0xff]
        %v3855 = vld [vmem:[%s2788 + $0x30] sm:$0xff]
        %v3856 = vld [vmem:[%s2788 + $0x38] sm:$0xff]
        %3865 = vrot.lane.b32.xlu0 %v3849, 90
        %v3866 = vpop.permute.xlu0 %3865
        %3867 = vrot.lane.b32.xlu0 %v3850, 90
        %v3868 = vpop.permute.xlu0 %3867
        %3869 = vrot.lane.b32.xlu0 %v3851, 90
        %v3870 = vpop.permute.xlu0 %3869
        %3871 = vrot.lane.b32.xlu0 %v3852, 90
        %v3872 = vpop.permute.xlu0 %3871
        %3873 = vrot.lane.b32.xlu0 %v3853, 90
        %v3874 = vpop.permute.xlu0 %3873
        %3875 = vrot.lane.b32.xlu0 %v3854, 90
        %v3876 = vpop.permute.xlu0 %3875
        %3877 = vrot.lane.b32.xlu0 %v3855, 90
        %v3878 = vpop.permute.xlu0 %3877
        %3879 = vrot.lane.b32.xlu0 %v3856, 90
        %v3880 = vpop.permute.xlu0 %3879
        %v3881 = vrot.slane %v3866, 4
        %v3882 = vrot.slane %v3868, 4
        %v3883 = vrot.slane %v3870, 4
        %v3884 = vrot.slane %v3872, 4
        %v3885 = vrot.slane %v3874, 4
        %v3886 = vrot.slane %v3876, 4
        %v3887 = vrot.slane %v3878, 4
        %v3888 = vrot.slane %v3880, 4
        %v3889 = vsel %vm441, %v3881, %v3882
        %v3890 = vsel %vm926, %v3866, %v3889
        %v3891 = vsel %vm926, %v3868, %v3882
        %v3892 = vsel %vm441, %v3883, %v3884
        %v3893 = vsel %vm926, %v3870, %v3892
        %v3894 = vsel %vm926, %v3872, %v3884
        %v3895 = vsel %vm441, %v3885, %v3886
        %v3896 = vsel %vm926, %v3874, %v3895
        %v3897 = vsel %vm926, %v3876, %v3886
        %v3898 = vsel %vm441, %v3887, %v3888
        %v3899 = vsel %vm926, %v3878, %v3898
        %v3900 = vsel %vm926, %v3880, %v3888
        %3909 = vst [vmem:[#allocation2 + $0x30c] sm:$0xff] %v3890
        %3910 = vst [vmem:[#allocation2 + $0x314] sm:$0xf] %v3891
        %3911 = vst [vmem:[#allocation2 + $0x324] sm:$0xff] %v3893
        %3912 = vst [vmem:[#allocation2 + $0x32c] sm:$0xf] %v3894
        %3913 = vst [vmem:[#allocation2 + $0x33c] sm:$0xff] %v3896
        %3914 = vst [vmem:[#allocation2 + $0x344] sm:$0xf] %v3897
        %3915 = vst [vmem:[#allocation2 + $0x354] sm:$0xff] %v3899
        %3916 = vst [vmem:[#allocation2 + $0x35c] sm:$0xf] %v3900
        %v3917 = vld [vmem:[%s4] sm:$0xff]
        %v3918 = vld [vmem:[%s4 + $0x8] sm:$0xf]
        %v3919 = vld [vmem:[%s4 + $0xc] sm:$0xff]
        %v3920 = vld [vmem:[%s4 + $0x14] sm:$0xf]
        %v3921 = vld [vmem:[%s4 + $0x18] sm:$0xff]
        %v3922 = vld [vmem:[%s4 + $0x20] sm:$0xf]
        %v3923 = vld [vmem:[%s4 + $0x24] sm:$0xff]
        %v3924 = vld [vmem:[%s4 + $0x2c] sm:$0xf]
        %v3925 = vld [vmem:[#allocation2] sm:$0xff]
        %v3926 = vld [vmem:[#allocation2 + $0x8] sm:$0xff]
        %v3927 = vld [vmem:[#allocation2 + $0x10] sm:$0xff]
        %v3928 = vld [vmem:[#allocation2 + $0x18] sm:$0xff]
        %v3929 = vld [vmem:[#allocation2 + $0x20] sm:$0xff]
        %v3930 = vld [vmem:[#allocation2 + $0x28] sm:$0xff]
        %v3931 = vld [vmem:[#allocation2 + $0x30] sm:$0xff]
        %v3932 = vld [vmem:[#allocation2 + $0x38] sm:$0xff]
        %v3933 = vld [vmem:[#allocation2 + $0x40] sm:$0xff]
        %v3934 = vld [vmem:[#allocation2 + $0x48] sm:$0xff]
        %v3935 = vld [vmem:[#allocation2 + $0x50] sm:$0xff]
        %v3936 = vld [vmem:[#allocation2 + $0x58] sm:$0xff]
        %v3937 = vld [vmem:[#allocation2 + $0x60] sm:$0xff]
        %v3938 = vld [vmem:[#allocation2 + $0x68] sm:$0xff]
        %v3939 = vld [vmem:[#allocation2 + $0x70] sm:$0xff]
        %v3940 = vld [vmem:[#allocation2 + $0x78] sm:$0xff]
        %v3941 = vld [vmem:[#allocation2 + $0x80] sm:$0xff]
        %v3942 = vld [vmem:[#allocation2 + $0x88] sm:$0xff]
        %v3943 = vld [vmem:[#allocation2 + $0x90] sm:$0xff]
        %v3944 = vld [vmem:[#allocation2 + $0x98] sm:$0xff]
        %v3945 = vld [vmem:[#allocation2 + $0xa0] sm:$0xff]
        %v3946 = vld [vmem:[#allocation2 + $0xa8] sm:$0xff]
        %v3947 = vld [vmem:[#allocation2 + $0xb0] sm:$0xff]
        %v3948 = vld [vmem:[#allocation2 + $0xb8] sm:$0xff]
        %v3949 = vld [vmem:[#allocation2 + $0xc0] sm:$0xff]
        %v3950 = vld [vmem:[#allocation2 + $0xc8] sm:$0xff]
        %v3951 = vld [vmem:[#allocation2 + $0xd0] sm:$0xff]
        %v3952 = vld [vmem:[#allocation2 + $0xd8] sm:$0xff]
        %v3953 = vld [vmem:[#allocation2 + $0xe0] sm:$0xff]
        %v3954 = vld [vmem:[#allocation2 + $0xe8] sm:$0xff]
        %v3955 = vld [vmem:[#allocation2 + $0xf0] sm:$0xff]
        %v3956 = vld [vmem:[#allocation2 + $0xf8] sm:$0xff]
        %v3957 = vld [vmem:[#allocation2 + $0x100] sm:$0xff]
        %v3958 = vld [vmem:[#allocation2 + $0x108] sm:$0xff]
        %v3959 = vld [vmem:[#allocation2 + $0x110] sm:$0xff]
        %v3960 = vld [vmem:[#allocation2 + $0x118] sm:$0xff]
        %v3961 = vld [vmem:[#allocation2 + $0x120] sm:$0xff]
        %v3962 = vld [vmem:[#allocation2 + $0x128] sm:$0xff]
        %v3963 = vld [vmem:[#allocation2 + $0x130] sm:$0xff]
        %v3964 = vld [vmem:[#allocation2 + $0x138] sm:$0xff]
        %v3965 = vld [vmem:[#allocation2 + $0x140] sm:$0xff]
        %v3966 = vld [vmem:[#allocation2 + $0x148] sm:$0xff]
        %v3967 = vld [vmem:[#allocation2 + $0x150] sm:$0xff]
        %v3968 = vld [vmem:[#allocation2 + $0x158] sm:$0xff]
        %v3969 = vld [vmem:[#allocation2 + $0x160] sm:$0xff]
        %v3970 = vld [vmem:[#allocation2 + $0x168] sm:$0xff]
        %v3971 = vld [vmem:[#allocation2 + $0x170] sm:$0xff]
        %v3972 = vld [vmem:[#allocation2 + $0x178] sm:$0xff]
        %v3973 = vld [vmem:[#allocation2 + $0x180] sm:$0xff]
        %v3974 = vld [vmem:[#allocation2 + $0x188] sm:$0xff]
        %v3975 = vld [vmem:[#allocation2 + $0x190] sm:$0xff]
        %v3976 = vld [vmem:[#allocation2 + $0x198] sm:$0xff]
        %v3977 = vld [vmem:[#allocation2 + $0x1a0] sm:$0xff]
        %v3978 = vld [vmem:[#allocation2 + $0x1a8] sm:$0xff]
        %v3979 = vld [vmem:[#allocation2 + $0x1b0] sm:$0xff]
        %v3980 = vld [vmem:[#allocation2 + $0x1b8] sm:$0xff]
        %v3981 = vld [vmem:[#allocation2 + $0x1c0] sm:$0xff]
        %v3982 = vld [vmem:[#allocation2 + $0x1c8] sm:$0xff]
        %v3983 = vld [vmem:[#allocation2 + $0x1d0] sm:$0xff]
        %v3984 = vld [vmem:[#allocation2 + $0x1d8] sm:$0xff]
        %v3985 = vld [vmem:[#allocation2 + $0x1e0] sm:$0xff]
        %v3986 = vld [vmem:[#allocation2 + $0x1e8] sm:$0xff]
        %v3987 = vld [vmem:[#allocation2 + $0x1f0] sm:$0xff]
        %v3988 = vld [vmem:[#allocation2 + $0x1f8] sm:$0xff]
        %v3989 = vld [vmem:[#allocation2 + $0x200] sm:$0xff]
        %v3990 = vld [vmem:[#allocation2 + $0x208] sm:$0xff]
        %v3991 = vld [vmem:[#allocation2 + $0x210] sm:$0xff]
        %v3992 = vld [vmem:[#allocation2 + $0x218] sm:$0xff]
        %v3993 = vld [vmem:[#allocation2 + $0x220] sm:$0xff]
        %v3994 = vld [vmem:[#allocation2 + $0x228] sm:$0xff]
        %v3995 = vld [vmem:[#allocation2 + $0x230] sm:$0xff]
        %v3996 = vld [vmem:[#allocation2 + $0x238] sm:$0xff]
        %v3997 = vld [vmem:[#allocation2 + $0x240] sm:$0xff]
        %v3998 = vld [vmem:[#allocation2 + $0x248] sm:$0xff]
        %v3999 = vld [vmem:[#allocation2 + $0x250] sm:$0xff]
        %v4000 = vld [vmem:[#allocation2 + $0x258] sm:$0xff]
        %v4001 = vld [vmem:[#allocation2 + $0x260] sm:$0xff]
        %v4002 = vld [vmem:[#allocation2 + $0x268] sm:$0xff]
        %v4003 = vld [vmem:[#allocation2 + $0x270] sm:$0xff]
        %v4004 = vld [vmem:[#allocation2 + $0x278] sm:$0xff]
        %v4005 = vld [vmem:[#allocation2 + $0x280] sm:$0xff]
        %v4006 = vld [vmem:[#allocation2 + $0x288] sm:$0xff]
        %v4007 = vld [vmem:[#allocation2 + $0x290] sm:$0xff]
        %v4008 = vld [vmem:[#allocation2 + $0x298] sm:$0xff]
        %v4009 = vld [vmem:[#allocation2 + $0x2a0] sm:$0xff]
        %v4010 = vld [vmem:[#allocation2 + $0x2a8] sm:$0xff]
        %v4011 = vld [vmem:[#allocation2 + $0x2b0] sm:$0xff]
        %v4012 = vld [vmem:[#allocation2 + $0x2b8] sm:$0xff]
        %v4013 = vld [vmem:[#allocation2 + $0x2c0] sm:$0xff]
        %v4014 = vld [vmem:[#allocation2 + $0x2c8] sm:$0xff]
        %v4015 = vld [vmem:[#allocation2 + $0x2d0] sm:$0xff]
        %v4016 = vld [vmem:[#allocation2 + $0x2d8] sm:$0xff]
        %v4017 = vld [vmem:[#allocation2 + $0x2e0] sm:$0xff]
        %v4018 = vld [vmem:[#allocation2 + $0x2e8] sm:$0xff]
        %v4019 = vld [vmem:[#allocation2 + $0x2f0] sm:$0xff]
        %v4020 = vld [vmem:[#allocation2 + $0x2f8] sm:$0xff]
        %v4021 = vld [vmem:[#allocation2 + $0x300] sm:$0xff]
        %v4022 = vld [vmem:[#allocation2 + $0x308] sm:$0xff]
        %v4023 = vld [vmem:[#allocation2 + $0x310] sm:$0xff]
        %v4024 = vld [vmem:[#allocation2 + $0x318] sm:$0xff]
        %v4025 = vld [vmem:[#allocation2 + $0x320] sm:$0xff]
        %v4026 = vld [vmem:[#allocation2 + $0x328] sm:$0xff]
        %v4027 = vld [vmem:[#allocation2 + $0x330] sm:$0xff]
        %v4028 = vld [vmem:[#allocation2 + $0x338] sm:$0xff]
        %v4029 = vld [vmem:[#allocation2 + $0x340] sm:$0xff]
        %v4030 = vld [vmem:[#allocation2 + $0x348] sm:$0xff]
        %v4031 = vld [vmem:[#allocation2 + $0x350] sm:$0xff]
        %v4032 = vld [vmem:[#allocation2 + $0x358] sm:$0xff]
        %v4033 = vld [vmem:[%s5] sm:$0xff]
        %v4034 = vld [vmem:[%s5 + $0x8] sm:$0xff]
        %v4035 = vld [vmem:[%s5 + $0x10] sm:$0xff]
        %v4036 = vld [vmem:[%s5 + $0x18] sm:$0xff]
        %4038 = vset.pattern.permute.xlu0 0
        %4039 = vperm.xlu0 %4038, %v4033
        %v4040 = vpop.permute.xlu0 %4039
        %4043 = vset.pattern.permute.xlu0 0
        %4044 = vperm.xlu0 %4043, %v4034
        %v4045 = vpop.permute.xlu0 %4044
        %4048 = vset.pattern.permute.xlu0 0
        %4049 = vperm.xlu0 %4048, %v4035
        %v4050 = vpop.permute.xlu0 %4049
        %4053 = vset.pattern.permute.xlu0 0
        %4054 = vperm.xlu0 %4053, %v4036
        %v4055 = vpop.permute.xlu0 %4054
        %v4065 = vunpack.c.l.b16 %v3917
        %v4066 = vunpack.c.h.b16 %v3917
        %v4067 = vunpack.c.l.b16 %v3918
        %v4068 = vunpack.c.l.b16 %v3919
        %v4069 = vunpack.c.h.b16 %v3919
        %v4070 = vunpack.c.l.b16 %v3920
        %v4071 = vunpack.c.l.b16 %v3921
        %v4072 = vunpack.c.h.b16 %v3921
        %v4073 = vunpack.c.l.b16 %v3922
        %v4074 = vunpack.c.l.b16 %v3923
        %v4075 = vunpack.c.h.b16 %v3923
        %v4076 = vunpack.c.l.b16 %v3924
        %v4077 = vpack.c.b16 %v4068, %v4065
        %v4078 = vpack.c.b16 %v4069, %v4066
        %v4079 = vpack.c.b16 %v4070, %v4067
        %v4080 = vpack.c.b16 %v4074, %v4071
        %v4081 = vpack.c.b16 %v4075, %v4072
        %v4082 = vpack.c.b16 %v4076, %v4073
        %v4195 = vunpack.c.l.b16 %v3925
        %v4196 = vunpack.c.h.b16 %v3925
        %v4197 = vunpack.c.l.b16 %v3926
        %v4198 = vunpack.c.h.b16 %v3926
        %v4199 = vunpack.c.l.b16 %v3927
        %v4200 = vunpack.c.h.b16 %v3927
        %v4201 = vunpack.c.l.b16 %v3928
        %v4202 = vunpack.c.h.b16 %v3928
        %v4203 = vunpack.c.l.b16 %v3929
        %v4204 = vunpack.c.h.b16 %v3929
        %v4205 = vunpack.c.l.b16 %v3930
        %v4206 = vunpack.c.h.b16 %v3930
        %v4207 = vunpack.c.l.b16 %v3931
        %v4208 = vunpack.c.h.b16 %v3931
        %v4209 = vunpack.c.l.b16 %v3932
        %v4210 = vunpack.c.h.b16 %v3932
        %v4211 = vunpack.c.l.b16 %v3933
        %v4212 = vunpack.c.h.b16 %v3933
        %v4213 = vunpack.c.l.b16 %v3934
        %v4214 = vunpack.c.h.b16 %v3934
        %v4215 = vunpack.c.l.b16 %v3935
        %v4216 = vunpack.c.h.b16 %v3935
        %v4217 = vunpack.c.l.b16 %v3936
        %v4218 = vunpack.c.h.b16 %v3936
        %v4219 = vunpack.c.l.b16 %v3937
        %v4220 = vunpack.c.h.b16 %v3937
        %v4221 = vunpack.c.l.b16 %v3938
        %v4222 = vunpack.c.h.b16 %v3938
        %v4223 = vunpack.c.l.b16 %v3939
        %v4224 = vunpack.c.h.b16 %v3939
        %v4225 = vunpack.c.l.b16 %v3940
        %v4226 = vunpack.c.h.b16 %v3940
        %v4227 = vunpack.c.l.b16 %v3941
        %v4228 = vunpack.c.h.b16 %v3941
        %v4229 = vunpack.c.l.b16 %v3942
        %v4230 = vunpack.c.h.b16 %v3942
        %v4231 = vunpack.c.l.b16 %v3943
        %v4232 = vunpack.c.h.b16 %v3943
        %v4233 = vunpack.c.l.b16 %v3944
        %v4234 = vunpack.c.h.b16 %v3944
        %v4235 = vunpack.c.l.b16 %v3945
        %v4236 = vunpack.c.h.b16 %v3945
        %v4237 = vunpack.c.l.b16 %v3946
        %v4238 = vunpack.c.h.b16 %v3946
        %v4239 = vunpack.c.l.b16 %v3947
        %v4240 = vunpack.c.h.b16 %v3947
        %v4241 = vunpack.c.l.b16 %v3948
        %v4242 = vunpack.c.h.b16 %v3948
        %v4243 = vunpack.c.l.b16 %v3949
        %v4244 = vunpack.c.h.b16 %v3949
        %v4245 = vunpack.c.l.b16 %v3950
        %v4246 = vunpack.c.h.b16 %v3950
        %v4247 = vunpack.c.l.b16 %v3951
        %v4248 = vunpack.c.h.b16 %v3951
        %v4249 = vunpack.c.l.b16 %v3952
        %v4250 = vunpack.c.h.b16 %v3952
        %v4251 = vunpack.c.l.b16 %v3953
        %v4252 = vunpack.c.h.b16 %v3953
        %v4253 = vunpack.c.l.b16 %v3954
        %v4254 = vunpack.c.h.b16 %v3954
        %v4255 = vunpack.c.l.b16 %v3955
        %v4256 = vunpack.c.h.b16 %v3955
        %v4257 = vunpack.c.l.b16 %v3956
        %v4258 = vunpack.c.h.b16 %v3956
        %v4259 = vunpack.c.l.b16 %v3957
        %v4260 = vunpack.c.h.b16 %v3957
        %v4261 = vunpack.c.l.b16 %v3958
        %v4262 = vunpack.c.h.b16 %v3958
        %v4263 = vunpack.c.l.b16 %v3959
        %v4264 = vunpack.c.h.b16 %v3959
        %v4265 = vunpack.c.l.b16 %v3960
        %v4266 = vunpack.c.h.b16 %v3960
        %v4267 = vunpack.c.l.b16 %v3961
        %v4268 = vunpack.c.h.b16 %v3961
        %v4269 = vunpack.c.l.b16 %v3962
        %v4270 = vunpack.c.h.b16 %v3962
        %v4271 = vunpack.c.l.b16 %v3963
        %v4272 = vunpack.c.h.b16 %v3963
        %v4273 = vunpack.c.l.b16 %v3964
        %v4274 = vunpack.c.h.b16 %v3964
        %v4275 = vunpack.c.l.b16 %v3965
        %v4276 = vunpack.c.h.b16 %v3965
        %v4277 = vunpack.c.l.b16 %v3966
        %v4278 = vunpack.c.h.b16 %v3966
        %v4279 = vunpack.c.l.b16 %v3967
        %v4280 = vunpack.c.h.b16 %v3967
        %v4281 = vunpack.c.l.b16 %v3968
        %v4282 = vunpack.c.h.b16 %v3968
        %v4283 = vunpack.c.l.b16 %v3969
        %v4284 = vunpack.c.h.b16 %v3969
        %v4285 = vunpack.c.l.b16 %v3970
        %v4286 = vunpack.c.h.b16 %v3970
        %v4287 = vunpack.c.l.b16 %v3971
        %v4288 = vunpack.c.h.b16 %v3971
        %v4289 = vunpack.c.l.b16 %v3972
        %v4290 = vunpack.c.h.b16 %v3972
        %v4291 = vunpack.c.l.b16 %v3973
        %v4292 = vunpack.c.h.b16 %v3973
        %v4293 = vunpack.c.l.b16 %v3974
        %v4294 = vunpack.c.h.b16 %v3974
        %v4295 = vunpack.c.l.b16 %v3975
        %v4296 = vunpack.c.h.b16 %v3975
        %v4297 = vunpack.c.l.b16 %v3976
        %v4298 = vunpack.c.h.b16 %v3976
        %v4299 = vunpack.c.l.b16 %v3977
        %v4300 = vunpack.c.h.b16 %v3977
        %v4301 = vunpack.c.l.b16 %v3978
        %v4302 = vunpack.c.h.b16 %v3978
        %v4303 = vunpack.c.l.b16 %v3979
        %v4304 = vunpack.c.h.b16 %v3979
        %v4305 = vunpack.c.l.b16 %v3980
        %v4306 = vunpack.c.h.b16 %v3980
        %v4307 = vunpack.c.l.b16 %v3981
        %v4308 = vunpack.c.h.b16 %v3981
        %v4309 = vunpack.c.l.b16 %v3982
        %v4310 = vunpack.c.h.b16 %v3982
        %v4311 = vunpack.c.l.b16 %v3983
        %v4312 = vunpack.c.h.b16 %v3983
        %v4313 = vunpack.c.l.b16 %v3984
        %v4314 = vunpack.c.h.b16 %v3984
        %v4315 = vunpack.c.l.b16 %v3985
        %v4316 = vunpack.c.h.b16 %v3985
        %v4317 = vunpack.c.l.b16 %v3986
        %v4318 = vunpack.c.h.b16 %v3986
        %v4319 = vunpack.c.l.b16 %v3987
        %v4320 = vunpack.c.h.b16 %v3987
        %v4321 = vunpack.c.l.b16 %v3988
        %v4322 = vunpack.c.h.b16 %v3988
        %v4323 = vunpack.c.l.b16 %v3989
        %v4324 = vunpack.c.h.b16 %v3989
        %v4325 = vunpack.c.l.b16 %v3990
        %v4326 = vunpack.c.h.b16 %v3990
        %v4327 = vunpack.c.l.b16 %v3991
        %v4328 = vunpack.c.h.b16 %v3991
        %v4329 = vunpack.c.l.b16 %v3992
        %v4330 = vunpack.c.h.b16 %v3992
        %v4331 = vunpack.c.l.b16 %v3993
        %v4332 = vunpack.c.h.b16 %v3993
        %v4333 = vunpack.c.l.b16 %v3994
        %v4334 = vunpack.c.h.b16 %v3994
        %v4335 = vunpack.c.l.b16 %v3995
        %v4336 = vunpack.c.h.b16 %v3995
        %v4337 = vunpack.c.l.b16 %v3996
        %v4338 = vunpack.c.h.b16 %v3996
        %v4339 = vunpack.c.l.b16 %v3997
        %v4340 = vunpack.c.h.b16 %v3997
        %v4341 = vunpack.c.l.b16 %v3998
        %v4342 = vunpack.c.h.b16 %v3998
        %v4343 = vunpack.c.l.b16 %v3999
        %v4344 = vunpack.c.h.b16 %v3999
        %v4345 = vunpack.c.l.b16 %v4000
        %v4346 = vunpack.c.h.b16 %v4000
        %v4347 = vunpack.c.l.b16 %v4001
        %v4348 = vunpack.c.h.b16 %v4001
        %v4349 = vunpack.c.l.b16 %v4002
        %v4350 = vunpack.c.h.b16 %v4002
        %v4351 = vunpack.c.l.b16 %v4003
        %v4352 = vunpack.c.h.b16 %v4003
        %v4353 = vunpack.c.l.b16 %v4004
        %v4354 = vunpack.c.h.b16 %v4004
        %v4355 = vunpack.c.l.b16 %v4005
        %v4356 = vunpack.c.h.b16 %v4005
        %v4357 = vunpack.c.l.b16 %v4006
        %v4358 = vunpack.c.h.b16 %v4006
        %v4359 = vunpack.c.l.b16 %v4007
        %v4360 = vunpack.c.h.b16 %v4007
        %v4361 = vunpack.c.l.b16 %v4008
        %v4362 = vunpack.c.h.b16 %v4008
        %v4363 = vunpack.c.l.b16 %v4009
        %v4364 = vunpack.c.h.b16 %v4009
        %v4365 = vunpack.c.l.b16 %v4010
        %v4366 = vunpack.c.h.b16 %v4010
        %v4367 = vunpack.c.l.b16 %v4011
        %v4368 = vunpack.c.h.b16 %v4011
        %v4369 = vunpack.c.l.b16 %v4012
        %v4370 = vunpack.c.h.b16 %v4012
        %v4371 = vunpack.c.l.b16 %v4013
        %v4372 = vunpack.c.h.b16 %v4013
        %v4373 = vunpack.c.l.b16 %v4014
        %v4374 = vunpack.c.h.b16 %v4014
        %v4375 = vunpack.c.l.b16 %v4015
        %v4376 = vunpack.c.h.b16 %v4015
        %v4377 = vunpack.c.l.b16 %v4016
        %v4378 = vunpack.c.h.b16 %v4016
        %v4379 = vunpack.c.l.b16 %v4017
        %v4380 = vunpack.c.h.b16 %v4017
        %v4381 = vunpack.c.l.b16 %v4018
        %v4382 = vunpack.c.h.b16 %v4018
        %v4383 = vunpack.c.l.b16 %v4019
        %v4384 = vunpack.c.h.b16 %v4019
        %v4385 = vunpack.c.l.b16 %v4020
        %v4386 = vunpack.c.h.b16 %v4020
        %v4387 = vunpack.c.l.b16 %v4021
        %v4388 = vunpack.c.h.b16 %v4021
        %v4389 = vunpack.c.l.b16 %v4022
        %v4390 = vunpack.c.h.b16 %v4022
        %v4391 = vunpack.c.l.b16 %v4023
        %v4392 = vunpack.c.h.b16 %v4023
        %v4393 = vunpack.c.l.b16 %v4024
        %v4394 = vunpack.c.h.b16 %v4024
        %v4395 = vunpack.c.l.b16 %v4025
        %v4396 = vunpack.c.h.b16 %v4025
        %v4397 = vunpack.c.l.b16 %v4026
        %v4398 = vunpack.c.h.b16 %v4026
        %v4399 = vunpack.c.l.b16 %v4027
        %v4400 = vunpack.c.h.b16 %v4027
        %v4401 = vunpack.c.l.b16 %v4028
        %v4402 = vunpack.c.h.b16 %v4028
        %v4403 = vunpack.c.l.b16 %v4029
        %v4404 = vunpack.c.h.b16 %v4029
        %v4405 = vunpack.c.l.b16 %v4030
        %v4406 = vunpack.c.h.b16 %v4030
        %v4407 = vunpack.c.l.b16 %v4031
        %v4408 = vunpack.c.h.b16 %v4031
        %v4409 = vunpack.c.l.b16 %v4032
        %v4410 = vunpack.c.h.b16 %v4032
        %v4411 = vpack.c.b16 %v4201, %v4195
        %v4412 = vpack.c.b16 %v4202, %v4196
        %v4413 = vpack.c.b16 %v4203, %v4197
        %v4414 = vpack.c.b16 %v4204, %v4198
        %v4415 = vpack.c.b16 %v4205, %v4199
        %v4416 = vpack.c.b16 %v4206, %v4200
        %v4417 = vpack.c.b16 %v4213, %v4207
        %v4418 = vpack.c.b16 %v4214, %v4208
        %v4419 = vpack.c.b16 %v4215, %v4209
        %v4420 = vpack.c.b16 %v4216, %v4210
        %v4421 = vpack.c.b16 %v4217, %v4211
        %v4422 = vpack.c.b16 %v4218, %v4212
        %v4423 = vpack.c.b16 %v4225, %v4219
        %v4424 = vpack.c.b16 %v4226, %v4220
        %v4425 = vpack.c.b16 %v4227, %v4221
        %v4426 = vpack.c.b16 %v4228, %v4222
        %v4427 = vpack.c.b16 %v4229, %v4223
        %v4428 = vpack.c.b16 %v4230, %v4224
        %v4429 = vpack.c.b16 %v4237, %v4231
        %v4430 = vpack.c.b16 %v4238, %v4232
        %v4431 = vpack.c.b16 %v4239, %v4233
        %v4432 = vpack.c.b16 %v4240, %v4234
        %v4433 = vpack.c.b16 %v4241, %v4235
        %v4434 = vpack.c.b16 %v4242, %v4236
        %v4435 = vpack.c.b16 %v4249, %v4243
        %v4436 = vpack.c.b16 %v4250, %v4244
        %v4437 = vpack.c.b16 %v4251, %v4245
        %v4438 = vpack.c.b16 %v4252, %v4246
        %v4439 = vpack.c.b16 %v4253, %v4247
        %v4440 = vpack.c.b16 %v4254, %v4248
        %v4441 = vpack.c.b16 %v4261, %v4255
        %v4442 = vpack.c.b16 %v4262, %v4256
        %v4443 = vpack.c.b16 %v4263, %v4257
        %v4444 = vpack.c.b16 %v4264, %v4258
        %v4445 = vpack.c.b16 %v4265, %v4259
        %v4446 = vpack.c.b16 %v4266, %v4260
        %v4447 = vpack.c.b16 %v4273, %v4267
        %v4448 = vpack.c.b16 %v4274, %v4268
        %v4449 = vpack.c.b16 %v4275, %v4269
        %v4450 = vpack.c.b16 %v4276, %v4270
        %v4451 = vpack.c.b16 %v4277, %v4271
        %v4452 = vpack.c.b16 %v4278, %v4272
        %v4453 = vpack.c.b16 %v4285, %v4279
        %v4454 = vpack.c.b16 %v4286, %v4280
        %v4455 = vpack.c.b16 %v4287, %v4281
        %v4456 = vpack.c.b16 %v4288, %v4282
        %v4457 = vpack.c.b16 %v4289, %v4283
        %v4458 = vpack.c.b16 %v4290, %v4284
        %v4459 = vpack.c.b16 %v4297, %v4291
        %v4460 = vpack.c.b16 %v4298, %v4292
        %v4461 = vpack.c.b16 %v4299, %v4293
        %v4462 = vpack.c.b16 %v4300, %v4294
        %v4463 = vpack.c.b16 %v4301, %v4295
        %v4464 = vpack.c.b16 %v4302, %v4296
        %v4465 = vpack.c.b16 %v4309, %v4303
        %v4466 = vpack.c.b16 %v4310, %v4304
        %v4467 = vpack.c.b16 %v4311, %v4305
        %v4468 = vpack.c.b16 %v4312, %v4306
        %v4469 = vpack.c.b16 %v4313, %v4307
        %v4470 = vpack.c.b16 %v4314, %v4308
        %v4471 = vpack.c.b16 %v4321, %v4315
        %v4472 = vpack.c.b16 %v4322, %v4316
        %v4473 = vpack.c.b16 %v4323, %v4317
        %v4474 = vpack.c.b16 %v4324, %v4318
        %v4475 = vpack.c.b16 %v4325, %v4319
        %v4476 = vpack.c.b16 %v4326, %v4320
        %v4477 = vpack.c.b16 %v4333, %v4327
        %v4478 = vpack.c.b16 %v4334, %v4328
        %v4479 = vpack.c.b16 %v4335, %v4329
        %v4480 = vpack.c.b16 %v4336, %v4330
        %v4481 = vpack.c.b16 %v4337, %v4331
        %v4482 = vpack.c.b16 %v4338, %v4332
        %v4483 = vpack.c.b16 %v4345, %v4339
        %v4484 = vpack.c.b16 %v4346, %v4340
        %v4485 = vpack.c.b16 %v4347, %v4341
        %v4486 = vpack.c.b16 %v4348, %v4342
        %v4487 = vpack.c.b16 %v4349, %v4343
        %v4488 = vpack.c.b16 %v4350, %v4344
        %v4489 = vpack.c.b16 %v4357, %v4351
        %v4490 = vpack.c.b16 %v4358, %v4352
        %v4491 = vpack.c.b16 %v4359, %v4353
        %v4492 = vpack.c.b16 %v4360, %v4354
        %v4493 = vpack.c.b16 %v4361, %v4355
        %v4494 = vpack.c.b16 %v4362, %v4356
        %v4495 = vpack.c.b16 %v4369, %v4363
        %v4496 = vpack.c.b16 %v4370, %v4364
        %v4497 = vpack.c.b16 %v4371, %v4365
        %v4498 = vpack.c.b16 %v4372, %v4366
        %v4499 = vpack.c.b16 %v4373, %v4367
        %v4500 = vpack.c.b16 %v4374, %v4368
        %v4501 = vpack.c.b16 %v4381, %v4375
        %v4502 = vpack.c.b16 %v4382, %v4376
        %v4503 = vpack.c.b16 %v4383, %v4377
        %v4504 = vpack.c.b16 %v4384, %v4378
        %v4505 = vpack.c.b16 %v4385, %v4379
        %v4506 = vpack.c.b16 %v4386, %v4380
        %v4507 = vpack.c.b16 %v4393, %v4387
        %v4508 = vpack.c.b16 %v4394, %v4388
        %v4509 = vpack.c.b16 %v4395, %v4389
        %v4510 = vpack.c.b16 %v4396, %v4390
        %v4511 = vpack.c.b16 %v4397, %v4391
        %v4512 = vpack.c.b16 %v4398, %v4392
        %v4513 = vpack.c.b16 %v4405, %v4399
        %v4514 = vpack.c.b16 %v4406, %v4400
        %v4515 = vpack.c.b16 %v4407, %v4401
        %v4516 = vpack.c.b16 %v4408, %v4402
        %v4517 = vpack.c.b16 %v4409, %v4403
        %v4518 = vpack.c.b16 %v4410, %v4404
        %v4628 = vsel %vm2225, %v4079, 0
        %v4631 = vsel %vm2225, %v4082, 0
        %4633 = vmatpush.bf16.msra.mxu0 %v4453
        %4634 = vmatpush.bf16.msra.mxu0 %v4447
        %4635 = vmatpush.bf16.msra.mxu0 %v4441
        %4636 = vmatpush.bf16.msra.mxu0 %v4435
        %4637 = vmatpush.bf16.msra.mxu0 %v4429
        %4638 = vmatpush.bf16.msra.mxu0 %v4423
        %4639 = vmatpush.bf16.msra.mxu0 %v4417
        %4640 = vmatpush.bf16.msra.mxu0 %v4411
        %4641 = vmatmul.bf16.gmra.mxu0 %v4077
        %v4642 = vpop.f32.mrf.mxu0
        %v4643 = vadd.f32 %v4040, %v4642
        %v4644 = vpop.f32.mrf.mxu0
        %v4645 = vadd.f32 %v4045, %v4644
        %4646 = vmatmul.bf16.gmra.mxu0 %v4080
        %v4647 = vpop.f32.mrf.mxu0
        %v4648 = vadd.f32 %v4050, %v4647
        %v4649 = vpop.f32.mrf.mxu0
        %v4650 = vadd.f32 %v4055, %v4649
        %4651 = vdwg.mxu0
        %4652 = vmatpush.bf16.msra.mxu0 %v4501
        %4653 = vmatpush.bf16.msra.mxu0 %v4495
        %4654 = vmatpush.bf16.msra.mxu0 %v4489
        %4655 = vmatpush.bf16.msra.mxu0 %v4483
        %4656 = vmatpush.bf16.msra.mxu0 %v4477
        %4657 = vmatpush.bf16.msra.mxu0 %v4471
        %4658 = vmatpush.bf16.msra.mxu0 %v4465
        %4659 = vmatpush.bf16.msra.mxu0 %v4459
        %4660 = vmatmul.bf16.gmra.mxu0 %v4078
        %v4661 = vpop.f32.mrf.mxu0
        %v4662 = vadd.f32 %v4643, %v4661
        %v4663 = vpop.f32.mrf.mxu0
        %v4664 = vadd.f32 %v4645, %v4663
        %4665 = vmatmul.bf16.gmra.mxu0 %v4081
        %v4666 = vpop.f32.mrf.mxu0
        %v4667 = vadd.f32 %v4648, %v4666
        %v4668 = vpop.f32.mrf.mxu0
        %v4669 = vadd.f32 %v4650, %v4668
        %4670 = vdwg.mxu0
        %4671 = vmatpush.bf16.msra.mxu0 0
        %4672 = vmatpush.bf16.msra.mxu0 0
        %4673 = vmatpush.bf16.msra.mxu0 0
        %4674 = vmatpush.bf16.msra.mxu0 0
        %4675 = vmatpush.bf16.msra.mxu0 0
        %4676 = vmatpush.bf16.msra.mxu0 0
        %4677 = vmatpush.bf16.msra.mxu0 %v4513
        %4678 = vmatpush.bf16.msra.mxu0 %v4507
        %4679 = vmatmul.bf16.gmra.mxu0 %v4628
        %v4680 = vpop.f32.mrf.mxu0
        %v4681 = vadd.f32 %v4662, %v4680
        %v4682 = vpop.f32.mrf.mxu0
        %v4683 = vadd.f32 %v4664, %v4682
        %4684 = vmatmul.bf16.gmra.mxu0 %v4631
        %v4685 = vpop.f32.mrf.mxu0
        %v4686 = vadd.f32 %v4667, %v4685
        %v4687 = vpop.f32.mrf.mxu0
        %v4688 = vadd.f32 %v4669, %v4687
        %4689 = vdwg.mxu0
        %4690 = vmatpush.bf16.msra.mxu0 %v4454
        %4691 = vmatpush.bf16.msra.mxu0 %v4448
        %4692 = vmatpush.bf16.msra.mxu0 %v4442
        %4693 = vmatpush.bf16.msra.mxu0 %v4436
        %4694 = vmatpush.bf16.msra.mxu0 %v4430
        %4695 = vmatpush.bf16.msra.mxu0 %v4424
        %4696 = vmatpush.bf16.msra.mxu0 %v4418
        %4697 = vmatpush.bf16.msra.mxu0 %v4412
        %4698 = vmatmul.bf16.gmra.mxu0 %v4077
        %v4699 = vpop.f32.mrf.mxu0
        %v4700 = vadd.f32 %v4040, %v4699
        %v4701 = vpop.f32.mrf.mxu0
        %v4702 = vadd.f32 %v4045, %v4701
        %4703 = vmatmul.bf16.gmra.mxu0 %v4080
        %v4704 = vpop.f32.mrf.mxu0
        %v4705 = vadd.f32 %v4050, %v4704
        %v4706 = vpop.f32.mrf.mxu0
        %v4707 = vadd.f32 %v4055, %v4706
        %4708 = vdwg.mxu0
        %4709 = vmatpush.bf16.msra.mxu0 %v4502
        %4710 = vmatpush.bf16.msra.mxu0 %v4496
        %4711 = vmatpush.bf16.msra.mxu0 %v4490
        %4712 = vmatpush.bf16.msra.mxu0 %v4484
        %4713 = vmatpush.bf16.msra.mxu0 %v4478
        %4714 = vmatpush.bf16.msra.mxu0 %v4472
        %4715 = vmatpush.bf16.msra.mxu0 %v4466
        %4716 = vmatpush.bf16.msra.mxu0 %v4460
        %4717 = vmatmul.bf16.gmra.mxu0 %v4078
        %v4718 = vpop.f32.mrf.mxu0
        %v4719 = vadd.f32 %v4700, %v4718
        %v4720 = vpop.f32.mrf.mxu0
        %v4721 = vadd.f32 %v4702, %v4720
        %4722 = vmatmul.bf16.gmra.mxu0 %v4081
        %v4723 = vpop.f32.mrf.mxu0
        %v4724 = vadd.f32 %v4705, %v4723
        %v4725 = vpop.f32.mrf.mxu0
        %v4726 = vadd.f32 %v4707, %v4725
        %4727 = vdwg.mxu0
        %4728 = vmatpush.bf16.msra.mxu0 0
        %4729 = vmatpush.bf16.msra.mxu0 0
        %4730 = vmatpush.bf16.msra.mxu0 0
        %4731 = vmatpush.bf16.msra.mxu0 0
        %4732 = vmatpush.bf16.msra.mxu0 0
        %4733 = vmatpush.bf16.msra.mxu0 0
        %4734 = vmatpush.bf16.msra.mxu0 %v4514
        %4735 = vmatpush.bf16.msra.mxu0 %v4508
        %4736 = vmatmul.bf16.gmra.mxu0 %v4628
        %v4737 = vpop.f32.mrf.mxu0
        %v4738 = vadd.f32 %v4719, %v4737
        %v4739 = vpop.f32.mrf.mxu0
        %v4740 = vadd.f32 %v4721, %v4739
        %4741 = vmatmul.bf16.gmra.mxu0 %v4631
        %v4742 = vpop.f32.mrf.mxu0
        %v4743 = vadd.f32 %v4724, %v4742
        %v4744 = vpop.f32.mrf.mxu0
        %v4745 = vadd.f32 %v4726, %v4744
        %4746 = vdwg.mxu0
        %4747 = vmatpush.bf16.msra.mxu0 %v4455
        %4748 = vmatpush.bf16.msra.mxu0 %v4449
        %4749 = vmatpush.bf16.msra.mxu0 %v4443
        %4750 = vmatpush.bf16.msra.mxu0 %v4437
        %4751 = vmatpush.bf16.msra.mxu0 %v4431
        %4752 = vmatpush.bf16.msra.mxu0 %v4425
        %4753 = vmatpush.bf16.msra.mxu0 %v4419
        %4754 = vmatpush.bf16.msra.mxu0 %v4413
        %4755 = vmatmul.bf16.gmra.mxu0 %v4077
        %v4756 = vpop.f32.mrf.mxu0
        %v4757 = vadd.f32 %v4040, %v4756
        %v4758 = vpop.f32.mrf.mxu0
        %v4759 = vadd.f32 %v4045, %v4758
        %4760 = vmatmul.bf16.gmra.mxu0 %v4080
        %v4761 = vpop.f32.mrf.mxu0
        %v4762 = vadd.f32 %v4050, %v4761
        %v4763 = vpop.f32.mrf.mxu0
        %v4764 = vadd.f32 %v4055, %v4763
        %4765 = vdwg.mxu0
        %4766 = vmatpush.bf16.msra.mxu0 %v4503
        %4767 = vmatpush.bf16.msra.mxu0 %v4497
        %4768 = vmatpush.bf16.msra.mxu0 %v4491
        %4769 = vmatpush.bf16.msra.mxu0 %v4485
        %4770 = vmatpush.bf16.msra.mxu0 %v4479
        %4771 = vmatpush.bf16.msra.mxu0 %v4473
        %4772 = vmatpush.bf16.msra.mxu0 %v4467
        %4773 = vmatpush.bf16.msra.mxu0 %v4461
        %4774 = vmatmul.bf16.gmra.mxu0 %v4078
        %v4775 = vpop.f32.mrf.mxu0
        %v4776 = vadd.f32 %v4757, %v4775
        %v4777 = vpop.f32.mrf.mxu0
        %v4778 = vadd.f32 %v4759, %v4777
        %4779 = vmatmul.bf16.gmra.mxu0 %v4081
        %v4780 = vpop.f32.mrf.mxu0
        %v4781 = vadd.f32 %v4762, %v4780
        %v4782 = vpop.f32.mrf.mxu0
        %v4783 = vadd.f32 %v4764, %v4782
        %4784 = vdwg.mxu0
        %4785 = vmatpush.bf16.msra.mxu0 0
        %4786 = vmatpush.bf16.msra.mxu0 0
        %4787 = vmatpush.bf16.msra.mxu0 0
        %4788 = vmatpush.bf16.msra.mxu0 0
        %4789 = vmatpush.bf16.msra.mxu0 0
        %4790 = vmatpush.bf16.msra.mxu0 0
        %4791 = vmatpush.bf16.msra.mxu0 %v4515
        %4792 = vmatpush.bf16.msra.mxu0 %v4509
        %4793 = vmatmul.bf16.gmra.mxu0 %v4628
        %v4794 = vpop.f32.mrf.mxu0
        %v4795 = vadd.f32 %v4776, %v4794
        %v4796 = vpop.f32.mrf.mxu0
        %v4797 = vadd.f32 %v4778, %v4796
        %4798 = vmatmul.bf16.gmra.mxu0 %v4631
        %v4799 = vpop.f32.mrf.mxu0
        %v4800 = vadd.f32 %v4781, %v4799
        %v4801 = vpop.f32.mrf.mxu0
        %v4802 = vadd.f32 %v4783, %v4801
        %4803 = vdwg.mxu0
        %4804 = vmatpush.bf16.msra.mxu0 %v4456
        %4805 = vmatpush.bf16.msra.mxu0 %v4450
        %4806 = vmatpush.bf16.msra.mxu0 %v4444
        %4807 = vmatpush.bf16.msra.mxu0 %v4438
        %4808 = vmatpush.bf16.msra.mxu0 %v4432
        %4809 = vmatpush.bf16.msra.mxu0 %v4426
        %4810 = vmatpush.bf16.msra.mxu0 %v4420
        %4811 = vmatpush.bf16.msra.mxu0 %v4414
        %4812 = vmatmul.bf16.gmra.mxu0 %v4077
        %v4813 = vpop.f32.mrf.mxu0
        %v4814 = vadd.f32 %v4040, %v4813
        %v4815 = vpop.f32.mrf.mxu0
        %v4816 = vadd.f32 %v4045, %v4815
        %4817 = vmatmul.bf16.gmra.mxu0 %v4080
        %v4818 = vpop.f32.mrf.mxu0
        %v4819 = vadd.f32 %v4050, %v4818
        %v4820 = vpop.f32.mrf.mxu0
        %v4821 = vadd.f32 %v4055, %v4820
        %4822 = vdwg.mxu0
        %4823 = vmatpush.bf16.msra.mxu0 %v4504
        %4824 = vmatpush.bf16.msra.mxu0 %v4498
        %4825 = vmatpush.bf16.msra.mxu0 %v4492
        %4826 = vmatpush.bf16.msra.mxu0 %v4486
        %4827 = vmatpush.bf16.msra.mxu0 %v4480
        %4828 = vmatpush.bf16.msra.mxu0 %v4474
        %4829 = vmatpush.bf16.msra.mxu0 %v4468
        %4830 = vmatpush.bf16.msra.mxu0 %v4462
        %4831 = vmatmul.bf16.gmra.mxu0 %v4078
        %v4832 = vpop.f32.mrf.mxu0
        %v4833 = vadd.f32 %v4814, %v4832
        %v4834 = vpop.f32.mrf.mxu0
        %v4835 = vadd.f32 %v4816, %v4834
        %4836 = vmatmul.bf16.gmra.mxu0 %v4081
        %v4837 = vpop.f32.mrf.mxu0
        %v4838 = vadd.f32 %v4819, %v4837
        %v4839 = vpop.f32.mrf.mxu0
        %v4840 = vadd.f32 %v4821, %v4839
        %4841 = vdwg.mxu0
        %4842 = vmatpush.bf16.msra.mxu0 0
        %4843 = vmatpush.bf16.msra.mxu0 0
        %4844 = vmatpush.bf16.msra.mxu0 0
        %4845 = vmatpush.bf16.msra.mxu0 0
        %4846 = vmatpush.bf16.msra.mxu0 0
        %4847 = vmatpush.bf16.msra.mxu0 0
        %4848 = vmatpush.bf16.msra.mxu0 %v4516
        %4849 = vmatpush.bf16.msra.mxu0 %v4510
        %4850 = vmatmul.bf16.gmra.mxu0 %v4628
        %v4851 = vpop.f32.mrf.mxu0
        %v4852 = vadd.f32 %v4833, %v4851
        %v4853 = vpop.f32.mrf.mxu0
        %v4854 = vadd.f32 %v4835, %v4853
        %4855 = vmatmul.bf16.gmra.mxu0 %v4631
        %v4856 = vpop.f32.mrf.mxu0
        %v4857 = vadd.f32 %v4838, %v4856
        %v4858 = vpop.f32.mrf.mxu0
        %v4859 = vadd.f32 %v4840, %v4858
        %4860 = vdwg.mxu0
        %4861 = vmatpush.bf16.msra.mxu0 %v4457
        %4862 = vmatpush.bf16.msra.mxu0 %v4451
        %4863 = vmatpush.bf16.msra.mxu0 %v4445
        %4864 = vmatpush.bf16.msra.mxu0 %v4439
        %4865 = vmatpush.bf16.msra.mxu0 %v4433
        %4866 = vmatpush.bf16.msra.mxu0 %v4427
        %4867 = vmatpush.bf16.msra.mxu0 %v4421
        %4868 = vmatpush.bf16.msra.mxu0 %v4415
        %4869 = vmatmul.bf16.gmra.mxu0 %v4077
        %v4870 = vpop.f32.mrf.mxu0
        %v4871 = vadd.f32 %v4040, %v4870
        %v4872 = vpop.f32.mrf.mxu0
        %v4873 = vadd.f32 %v4045, %v4872
        %4874 = vmatmul.bf16.gmra.mxu0 %v4080
        %v4875 = vpop.f32.mrf.mxu0
        %v4876 = vadd.f32 %v4050, %v4875
        %v4877 = vpop.f32.mrf.mxu0
        %v4878 = vadd.f32 %v4055, %v4877
        %4879 = vdwg.mxu0
        %4880 = vmatpush.bf16.msra.mxu0 %v4505
        %4881 = vmatpush.bf16.msra.mxu0 %v4499
        %4882 = vmatpush.bf16.msra.mxu0 %v4493
        %4883 = vmatpush.bf16.msra.mxu0 %v4487
        %4884 = vmatpush.bf16.msra.mxu0 %v4481
        %4885 = vmatpush.bf16.msra.mxu0 %v4475
        %4886 = vmatpush.bf16.msra.mxu0 %v4469
        %4887 = vmatpush.bf16.msra.mxu0 %v4463
        %4888 = vmatmul.bf16.gmra.mxu0 %v4078
        %v4889 = vpop.f32.mrf.mxu0
        %v4890 = vadd.f32 %v4871, %v4889
        %v4891 = vpop.f32.mrf.mxu0
        %v4892 = vadd.f32 %v4873, %v4891
        %4893 = vmatmul.bf16.gmra.mxu0 %v4081
        %v4894 = vpop.f32.mrf.mxu0
        %v4895 = vadd.f32 %v4876, %v4894
        %v4896 = vpop.f32.mrf.mxu0
        %v4897 = vadd.f32 %v4878, %v4896
        %4898 = vdwg.mxu0
        %4899 = vmatpush.bf16.msra.mxu0 0
        %4900 = vmatpush.bf16.msra.mxu0 0
        %4901 = vmatpush.bf16.msra.mxu0 0
        %4902 = vmatpush.bf16.msra.mxu0 0
        %4903 = vmatpush.bf16.msra.mxu0 0
        %4904 = vmatpush.bf16.msra.mxu0 0
        %4905 = vmatpush.bf16.msra.mxu0 %v4517
        %4906 = vmatpush.bf16.msra.mxu0 %v4511
        %4907 = vmatmul.bf16.gmra.mxu0 %v4628
        %v4908 = vpop.f32.mrf.mxu0
        %v4909 = vadd.f32 %v4890, %v4908
        %v4910 = vpop.f32.mrf.mxu0
        %v4911 = vadd.f32 %v4892, %v4910
        %4912 = vmatmul.bf16.gmra.mxu0 %v4631
        %v4913 = vpop.f32.mrf.mxu0
        %v4914 = vadd.f32 %v4895, %v4913
        %v4915 = vpop.f32.mrf.mxu0
        %v4916 = vadd.f32 %v4897, %v4915
        %4917 = vdwg.mxu0
        %4918 = vmatpush.bf16.msra.mxu0 %v4458
        %4919 = vmatpush.bf16.msra.mxu0 %v4452
        %4920 = vmatpush.bf16.msra.mxu0 %v4446
        %4921 = vmatpush.bf16.msra.mxu0 %v4440
        %4922 = vmatpush.bf16.msra.mxu0 %v4434
        %4923 = vmatpush.bf16.msra.mxu0 %v4428
        %4924 = vmatpush.bf16.msra.mxu0 %v4422
        %4925 = vmatpush.bf16.msra.mxu0 %v4416
        %4926 = vmatmul.bf16.gmra.mxu0 %v4077
        %v4927 = vpop.f32.mrf.mxu0
        %v4928 = vadd.f32 %v4040, %v4927
        %v4929 = vpop.f32.mrf.mxu0
        %v4930 = vadd.f32 %v4045, %v4929
        %4931 = vmatmul.bf16.gmra.mxu0 %v4080
        %v4932 = vpop.f32.mrf.mxu0
        %v4933 = vadd.f32 %v4050, %v4932
        %v4934 = vpop.f32.mrf.mxu0
        %v4935 = vadd.f32 %v4055, %v4934
        %4936 = vdwg.mxu0
        %4937 = vmatpush.bf16.msra.mxu0 %v4506
        %4938 = vmatpush.bf16.msra.mxu0 %v4500
        %4939 = vmatpush.bf16.msra.mxu0 %v4494
        %4940 = vmatpush.bf16.msra.mxu0 %v4488
        %4941 = vmatpush.bf16.msra.mxu0 %v4482
        %4942 = vmatpush.bf16.msra.mxu0 %v4476
        %4943 = vmatpush.bf16.msra.mxu0 %v4470
        %4944 = vmatpush.bf16.msra.mxu0 %v4464
        %4945 = vmatmul.bf16.gmra.mxu0 %v4078
        %v4946 = vpop.f32.mrf.mxu0
        %v4947 = vadd.f32 %v4928, %v4946
        %v4948 = vpop.f32.mrf.mxu0
        %v4949 = vadd.f32 %v4930, %v4948
        %4950 = vmatmul.bf16.gmra.mxu0 %v4081
        %v4951 = vpop.f32.mrf.mxu0
        %v4952 = vadd.f32 %v4933, %v4951
        %v4953 = vpop.f32.mrf.mxu0
        %v4954 = vadd.f32 %v4935, %v4953
        %4955 = vdwg.mxu0
        %4956 = vmatpush.bf16.msra.mxu0 0
        %4957 = vmatpush.bf16.msra.mxu0 0
        %4958 = vmatpush.bf16.msra.mxu0 0
        %4959 = vmatpush.bf16.msra.mxu0 0
        %4960 = vmatpush.bf16.msra.mxu0 0
        %4961 = vmatpush.bf16.msra.mxu0 0
        %4962 = vmatpush.bf16.msra.mxu0 %v4518
        %4963 = vmatpush.bf16.msra.mxu0 %v4512
        %4964 = vmatmul.bf16.gmra.mxu0 %v4628
        %v4965 = vpop.f32.mrf.mxu0
        %v4966 = vadd.f32 %v4947, %v4965
        %v4967 = vpop.f32.mrf.mxu0
        %v4968 = vadd.f32 %v4949, %v4967
        %4969 = vmatmul.bf16.gmra.mxu0 %v4631
        %v4970 = vpop.f32.mrf.mxu0
        %v4971 = vadd.f32 %v4952, %v4970
        %v4972 = vpop.f32.mrf.mxu0
        %v4973 = vadd.f32 %v4954, %v4972
        %4974 = vdwg.mxu0
        %v4975 = vmul.f32 %v4681, %v2599
        %v4976 = vmul.f32 %v4738, %v2600
        %v4977 = vmul.f32 %v4795, %v2601
        %v4978 = vmul.f32 %v4852, %v2602
        %v4979 = vmul.f32 %v4909, %v2603
        %v4980 = vmul.f32 %v4966, %v2604
        %v4981 = vmul.f32 %v4683, %v2599
        %v4982 = vmul.f32 %v4740, %v2600
        %v4983 = vmul.f32 %v4797, %v2601
        %v4984 = vmul.f32 %v4854, %v2602
        %v4985 = vmul.f32 %v4911, %v2603
        %v4986 = vmul.f32 %v4968, %v2604
        %v4987 = vmul.f32 %v4686, %v2599
        %v4988 = vmul.f32 %v4743, %v2600
        %v4989 = vmul.f32 %v4800, %v2601
        %v4990 = vmul.f32 %v4857, %v2602
        %v4991 = vmul.f32 %v4914, %v2603
        %v4992 = vmul.f32 %v4971, %v2604
        %v4993 = vmul.f32 %v4688, %v2599
        %v4994 = vmul.f32 %v4745, %v2600
        %v4995 = vmul.f32 %v4802, %v2601
        %v4996 = vmul.f32 %v4859, %v2602
        %v4997 = vmul.f32 %v4916, %v2603
        %v4998 = vmul.f32 %v4973, %v2604
        %v4999 = vadd.f32 %v4975, %v4976
        %v5000 = vadd.f32 %v4999, %v4977
        %5001 = vadd.xlane.f32.xlu0 %v5000
        %v5002 = vpop.xlane.xlu0 %5001
        %v5003 = vadd.f32 %v4981, %v4982
        %v5004 = vadd.f32 %v5003, %v4983
        %5005 = vadd.xlane.f32.xlu0 %v5004
        %v5006 = vpop.xlane.xlu0 %5005
        %v5007 = vadd.f32 %v4987, %v4988
        %v5008 = vadd.f32 %v5007, %v4989
        %5009 = vadd.xlane.f32.xlu0 %v5008
        %v5010 = vpop.xlane.xlu0 %5009
        %v5011 = vadd.f32 %v4993, %v4994
        %v5012 = vadd.f32 %v5011, %v4995
        %5013 = vadd.xlane.f32.xlu0 %v5012
        %v5014 = vpop.xlane.xlu0 %5013
        %v5015 = vmul.f32 %v5002, 0.00390625
        %v5016 = vmul.f32 %v5006, 0.00390625
        %v5017 = vmul.f32 %v5010, 0.00390625
        %v5018 = vmul.f32 %v5014, 0.00390625
        %v5019 = vld [vmem:[%s6] sm:$0xff]
        %v5020 = vld [vmem:[%s6 + $0x8] sm:$0xff]
        %v5021 = vld [vmem:[%s6 + $0x10] sm:$0xff]
        %v5022 = vld [vmem:[%s6 + $0x18] sm:$0xff]
        %v5023 = vmul.f32 %v5019, %v5015
        %v5024 = vmul.f32 %v5020, %v5016
        %v5025 = vmul.f32 %v5021, %v5017
        %v5026 = vmul.f32 %v5022, %v5018
        %vm5027 = vcmask 15360
        %v5028 = vsel %vm5027, %v5023, 0.0
        %v5029 = vsel %vm5027, %v5024, 0.0
        %v5030 = vadd.f32 %v5028, %v5029
        %v5031 = vsel %vm5027, %v5025, 0.0
        %v5032 = vadd.f32 %v5030, %v5031
        %v5033 = vsel %vm5027, %v5026, 0.0
        %v5034 = vadd.f32 %v5032, %v5033
        %v5035 = vrot.slane %v5034, 4
        %v5036 = vadd.f32 %v5034, %v5035
        %v5037 = vrot.slane %v5036, 2
        %v5038 = vadd.f32 %v5036, %v5037
        %v5039 = vrot.slane %v5038, 1
        %v5040 = vadd.f32 %v5038, %v5039
        %v5041 = vld [vmem:[%s7] sm:$0x1]
        %v5042 = vadd.f32 %v5040, %v5041
        %v5043 = vmax.f32 %v5042, 0.0
        %v5044 = vld [vmem:[%s8] sm:$0xff]
        %v5045 = vld [vmem:[%s8 + $0x8] sm:$0xff]
        %v5046 = vld [vmem:[%s8 + $0x10] sm:$0xff]
        %v5047 = vld [vmem:[%s8 + $0x18] sm:$0xff]
        %v5048 = vperm.slane %v5043, 0
        %v5049 = vmul.f32 %v5044, %v5048
        %v5050 = vmul.f32 %v5045, %v5048
        %v5051 = vmul.f32 %v5046, %v5048
        %v5052 = vmul.f32 %v5047, %v5048
        %v5053 = vsel %vm5027, %v5049, 0.0
        %5054 = vadd.xlane.f32.xlu0 %v5053
        %v5055 = vpop.xlane.xlu0 %5054
        %v5056 = vsel %vm5027, %v5050, 0.0
        %5057 = vadd.xlane.f32.xlu0 %v5056
        %v5058 = vpop.xlane.xlu0 %5057
        %v5059 = vsel %vm5027, %v5051, 0.0
        %5060 = vadd.xlane.f32.xlu0 %v5059
        %v5061 = vpop.xlane.xlu0 %5060
        %v5062 = vsel %vm5027, %v5052, 0.0
        %5063 = vadd.xlane.f32.xlu0 %v5062
        %v5064 = vpop.xlane.xlu0 %5063
        %v5065 = vld [vmem:[%s9] sm:$0xff]
        %v5066 = vld [vmem:[%s9 + $0x8] sm:$0xff]
        %v5067 = vld [vmem:[%s9 + $0x10] sm:$0xff]
        %v5068 = vld [vmem:[%s9 + $0x18] sm:$0xff]
        %v5069 = vadd.f32 %v5055, %v5065
        %v5070 = vadd.f32 %v5058, %v5066
        %v5071 = vadd.f32 %v5061, %v5067
        %v5072 = vadd.f32 %v5064, %v5068
        %v5073 = vsub.f32 0.0, %v5069
        %v5074 = vsub.f32 0.0, %v5070
        %v5075 = vsub.f32 0.0, %v5071
        %v5076 = vsub.f32 0.0, %v5072
        %v5077 = vmul.f32 %v5073, 1.442695
        %v5078 = vpow.pop %v5077
        %v5079 = vmul.f32 %v5074, 1.442695
        %v5080 = vpow.pop %v5079
        %v5081 = vmul.f32 %v5075, 1.442695
        %v5082 = vpow.pop %v5081
        %v5083 = vmul.f32 %v5076, 1.442695
        %v5084 = vpow.pop %v5083
        %v5085 = vadd.f32 %v5078, 1.0
        %v5086 = vadd.f32 %v5080, 1.0
        %v5087 = vadd.f32 %v5082, 1.0
        %v5088 = vadd.f32 %v5084, 1.0
        %v5089 = vrcp.pop %v5085
        %v5090 = vmul.f32 %v5085, %v5089
        %v5091 = vsub.f32 1.0, %v5090
        %v5092 = vmul.f32 %v5089, %v5091
        %v5093 = vadd.f32 %v5089, %v5092
        %vm5094 = vweird.f32 %v5085
        %vm5095 = vweird.f32 %v5089
        %vm5096 = vmor %vm5094, %vm5095
        %v5097 = vsel %vm5096, %v5089, %v5093
        %v5098 = vand.u32 2147483647, %v5085
        %vm5099 = vcmp.eq.f32.partialorder %v5098, 8.507059e+37
        %v5100 = vand.u32 %v5085, 2147483648
        %v5101 = vor.u32 1.1754944e-38, %v5100
        %v5102 = vsel %vm5099, %v5101, %v5097
        %v5103 = vmul.f32 1.0, %v5102
        %v5104 = vrcp.pop %v5086
        %v5105 = vmul.f32 %v5086, %v5104
        %v5106 = vsub.f32 1.0, %v5105
        %v5107 = vmul.f32 %v5104, %v5106
        %v5108 = vadd.f32 %v5104, %v5107
        %vm5109 = vweird.f32 %v5086
        %vm5110 = vweird.f32 %v5104
        %vm5111 = vmor %vm5109, %vm5110
        %v5112 = vsel %vm5111, %v5104, %v5108
        %v5113 = vand.u32 2147483647, %v5086
        %vm5114 = vcmp.eq.f32.partialorder %v5113, 8.507059e+37
        %v5115 = vand.u32 %v5086, 2147483648
        %v5116 = vor.u32 1.1754944e-38, %v5115
        %v5117 = vsel %vm5114, %v5116, %v5112
        %v5118 = vmul.f32 1.0, %v5117
        %v5119 = vrcp.pop %v5087
        %v5120 = vmul.f32 %v5087, %v5119
        %v5121 = vsub.f32 1.0, %v5120
        %v5122 = vmul.f32 %v5119, %v5121
        %v5123 = vadd.f32 %v5119, %v5122
        %vm5124 = vweird.f32 %v5087
        %vm5125 = vweird.f32 %v5119
        %vm5126 = vmor %vm5124, %vm5125
        %v5127 = vsel %vm5126, %v5119, %v5123
        %v5128 = vand.u32 2147483647, %v5087
        %vm5129 = vcmp.eq.f32.partialorder %v5128, 8.507059e+37
        %v5130 = vand.u32 %v5087, 2147483648
        %v5131 = vor.u32 1.1754944e-38, %v5130
        %v5132 = vsel %vm5129, %v5131, %v5127
        %v5133 = vmul.f32 1.0, %v5132
        %v5134 = vrcp.pop %v5088
        %v5135 = vmul.f32 %v5088, %v5134
        %v5136 = vsub.f32 1.0, %v5135
        %v5137 = vmul.f32 %v5134, %v5136
        %v5138 = vadd.f32 %v5134, %v5137
        %vm5139 = vweird.f32 %v5088
        %vm5140 = vweird.f32 %v5134
        %vm5141 = vmor %vm5139, %vm5140
        %v5142 = vsel %vm5141, %v5134, %v5138
        %v5143 = vand.u32 2147483647, %v5088
        %vm5144 = vcmp.eq.f32.partialorder %v5143, 8.507059e+37
        %v5145 = vand.u32 %v5088, 2147483648
        %v5146 = vor.u32 1.1754944e-38, %v5145
        %v5147 = vsel %vm5144, %v5146, %v5142
        %v5148 = vmul.f32 1.0, %v5147
        %v5149 = vld [vmem:[%s343] sm:$0xff]
        %v5150 = vld [vmem:[%s343 + $0x8] sm:$0xff]
        %v5151 = vld [vmem:[%s343 + $0x10] sm:$0xff]
        %v5152 = vld [vmem:[%s343 + $0x18] sm:$0xff]
        %v5153 = vld [vmem:[%s343 + $0x20] sm:$0xff]
        %v5154 = vld [vmem:[%s343 + $0x28] sm:$0xff]
        %v5155 = vld [vmem:[%s343 + $0x30] sm:$0xff]
        %v5156 = vld [vmem:[%s343 + $0x38] sm:$0xff]
        %v5157 = vunpack.c.l.bf16 %v5149
        %v5158 = vunpack.c.h.bf16 %v5149
        %v5159 = vunpack.c.l.bf16 %v5150
        %v5160 = vunpack.c.h.bf16 %v5150
        %v5161 = vunpack.c.l.bf16 %v5151
        %v5162 = vunpack.c.h.bf16 %v5151
        %v5163 = vunpack.c.l.bf16 %v5152
        %v5164 = vunpack.c.h.bf16 %v5152
        %v5165 = vunpack.c.l.bf16 %v5153
        %v5166 = vunpack.c.h.bf16 %v5153
        %v5167 = vunpack.c.l.bf16 %v5154
        %v5168 = vunpack.c.h.bf16 %v5154
        %v5169 = vunpack.c.l.bf16 %v5155
        %v5170 = vunpack.c.h.bf16 %v5155
        %v5171 = vunpack.c.l.bf16 %v5156
        %v5172 = vunpack.c.h.bf16 %v5156
        %5174 = vset.pattern.permute.xlu0 0
        %5175 = vperm.xlu0 %5174, %v5103
        %v5176 = vpop.permute.xlu0 %5175
        %5179 = vset.pattern.permute.xlu0 0
        %5180 = vperm.xlu0 %5179, %v5118
        %v5181 = vpop.permute.xlu0 %5180
        %5184 = vset.pattern.permute.xlu0 0
        %5185 = vperm.xlu0 %5184, %v5133
        %v5186 = vpop.permute.xlu0 %5185
        %5189 = vset.pattern.permute.xlu0 0
        %5190 = vperm.xlu0 %5189, %v5148
        %v5191 = vpop.permute.xlu0 %5190
        %v5193 = vmul.f32 %v4975, %v5176
        %v5194 = vmul.f32 %v4976, %v5176
        %v5195 = vmul.f32 %v4977, %v5176
        %v5196 = vmul.f32 %v4981, %v5181
        %v5197 = vmul.f32 %v4982, %v5181
        %v5198 = vmul.f32 %v4983, %v5181
        %v5199 = vmul.f32 %v4987, %v5186
        %v5200 = vmul.f32 %v4988, %v5186
        %v5201 = vmul.f32 %v4989, %v5186
        %v5202 = vmul.f32 %v4993, %v5191
        %v5203 = vmul.f32 %v4994, %v5191
        %v5204 = vmul.f32 %v4995, %v5191
        %5221 = vrot.lane.b32.xlu0 %v5157, 109
        %v5222 = vpop.permute.xlu0 %5221
        %5223 = vrot.lane.b32.xlu0 %v5158, 109
        %v5224 = vpop.permute.xlu0 %5223
        %5225 = vrot.lane.b32.xlu0 %v5159, 109
        %v5226 = vpop.permute.xlu0 %5225
        %5227 = vrot.lane.b32.xlu0 %v5160, 109
        %v5228 = vpop.permute.xlu0 %5227
        %5229 = vrot.lane.b32.xlu0 %v5161, 109
        %v5230 = vpop.permute.xlu0 %5229
        %5231 = vrot.lane.b32.xlu0 %v5162, 109
        %v5232 = vpop.permute.xlu0 %5231
        %5233 = vrot.lane.b32.xlu0 %v5163, 109
        %v5234 = vpop.permute.xlu0 %5233
        %5235 = vrot.lane.b32.xlu0 %v5164, 109
        %v5236 = vpop.permute.xlu0 %5235
        %5237 = vrot.lane.b32.xlu0 %v5165, 109
        %v5238 = vpop.permute.xlu0 %5237
        %5239 = vrot.lane.b32.xlu0 %v5166, 109
        %v5240 = vpop.permute.xlu0 %5239
        %5241 = vrot.lane.b32.xlu0 %v5167, 109
        %v5242 = vpop.permute.xlu0 %5241
        %5243 = vrot.lane.b32.xlu0 %v5168, 109
        %v5244 = vpop.permute.xlu0 %5243
        %5245 = vrot.lane.b32.xlu0 %v5169, 109
        %v5246 = vpop.permute.xlu0 %5245
        %5247 = vrot.lane.b32.xlu0 %v5170, 109
        %v5248 = vpop.permute.xlu0 %5247
        %5249 = vrot.lane.b32.xlu0 %v5171, 109
        %v5250 = vpop.permute.xlu0 %5249
        %5251 = vrot.lane.b32.xlu0 %v5172, 109
        %v5252 = vpop.permute.xlu0 %5251
        %vm5253 = vcmask 891904
        %v5254 = vsel %vm5253, %v5222, %v5224
        %v5255 = vsel %vm5253, %v5224, %v5226
        %v5256 = vsel %vm5253, %v5226, %v5228
        %v5257 = vsel %vm5253, %v5230, %v5232
        %v5258 = vsel %vm5253, %v5232, %v5234
        %v5259 = vsel %vm5253, %v5234, %v5236
        %v5260 = vsel %vm5253, %v5238, %v5240
        %v5261 = vsel %vm5253, %v5240, %v5242
        %v5262 = vsel %vm5253, %v5242, %v5244
        %v5263 = vsel %vm5253, %v5246, %v5248
        %v5264 = vsel %vm5253, %v5248, %v5250
        %v5265 = vsel %vm5253, %v5250, %v5252
        %v5278 = vadd.f32 %v5193, %v5254
        %v5279 = vadd.f32 %v5194, %v5255
        %v5280 = vadd.f32 %v5195, %v5256
        %v5281 = vadd.f32 %v5196, %v5257
        %v5282 = vadd.f32 %v5197, %v5258
        %v5283 = vadd.f32 %v5198, %v5259
        %v5284 = vadd.f32 %v5199, %v5260
        %v5285 = vadd.f32 %v5200, %v5261
        %v5286 = vadd.f32 %v5201, %v5262
        %v5287 = vadd.f32 %v5202, %v5263
        %v5288 = vadd.f32 %v5203, %v5264
        %v5289 = vadd.f32 %v5204, %v5265
        %5290 = vst [vmem:[%s380] sm:$0xff] %v5278
        %5291 = vst [vmem:[%s380 + $0x8] sm:$0xff] %v5279
        %5292 = vst [vmem:[%s380 + $0x10] sm:$0xff] %v5280
        %5293 = vst [vmem:[%s380 + $0x18] sm:$0xff] %v5281
        %5294 = vst [vmem:[%s380 + $0x20] sm:$0xff] %v5282
        %5295 = vst [vmem:[%s380 + $0x28] sm:$0xff] %v5283
        %5296 = vst [vmem:[%s380 + $0x30] sm:$0xff] %v5284
        %5297 = vst [vmem:[%s380 + $0x38] sm:$0xff] %v5285
        %5298 = vst [vmem:[%s380 + $0x40] sm:$0xff] %v5286
        %5299 = vst [vmem:[%s380 + $0x48] sm:$0xff] %v5287
        %5300 = vst [vmem:[%s380 + $0x50] sm:$0xff] %v5288
        %5301 = vst [vmem:[%s380 + $0x58] sm:$0xff] %v5289
        %v5302 = vadd.f32 %v4978, %v4979
        %v5303 = vadd.f32 %v5302, %v4980
        %5304 = vadd.xlane.f32.xlu0 %v5303
        %v5305 = vpop.xlane.xlu0 %5304
        %v5306 = vadd.f32 %v4984, %v4985
        %v5307 = vadd.f32 %v5306, %v4986
        %5308 = vadd.xlane.f32.xlu0 %v5307
        %v5309 = vpop.xlane.xlu0 %5308
        %v5310 = vadd.f32 %v4990, %v4991
        %v5311 = vadd.f32 %v5310, %v4992
        %5312 = vadd.xlane.f32.xlu0 %v5311
        %v5313 = vpop.xlane.xlu0 %5312
        %v5314 = vadd.f32 %v4996, %v4997
        %v5315 = vadd.f32 %v5314, %v4998
        %5316 = vadd.xlane.f32.xlu0 %v5315
        %v5317 = vpop.xlane.xlu0 %5316
        %v5318 = vmul.f32 %v5305, 0.00390625
        %v5319 = vmul.f32 %v5309, 0.00390625
        %v5320 = vmul.f32 %v5313, 0.00390625
        %v5321 = vmul.f32 %v5317, 0.00390625
        %v5322 = vld [vmem:[%s6] sm:$0xff]
        %v5323 = vld [vmem:[%s6 + $0x8] sm:$0xff]
        %v5324 = vld [vmem:[%s6 + $0x10] sm:$0xff]
        %v5325 = vld [vmem:[%s6 + $0x18] sm:$0xff]
        %v5326 = vmul.f32 %v5322, %v5318
        %v5327 = vmul.f32 %v5323, %v5319
        %v5328 = vmul.f32 %v5324, %v5320
        %v5329 = vmul.f32 %v5325, %v5321
        %v5330 = vsel %vm5027, %v5326, 0.0
        %v5331 = vsel %vm5027, %v5327, 0.0
        %v5332 = vadd.f32 %v5330, %v5331
        %v5333 = vsel %vm5027, %v5328, 0.0
        %v5334 = vadd.f32 %v5332, %v5333
        %v5335 = vsel %vm5027, %v5329, 0.0
        %v5336 = vadd.f32 %v5334, %v5335
        %v5337 = vrot.slane %v5336, 4
        %v5338 = vadd.f32 %v5336, %v5337
        %v5339 = vrot.slane %v5338, 2
        %v5340 = vadd.f32 %v5338, %v5339
        %v5341 = vrot.slane %v5340, 1
        %v5342 = vadd.f32 %v5340, %v5341
        %v5343 = vld [vmem:[%s7] sm:$0x1]
        %v5344 = vadd.f32 %v5342, %v5343
        %v5345 = vmax.f32 %v5344, 0.0
        %v5346 = vld [vmem:[%s8] sm:$0xff]
        %v5347 = vld [vmem:[%s8 + $0x8] sm:$0xff]
        %v5348 = vld [vmem:[%s8 + $0x10] sm:$0xff]
        %v5349 = vld [vmem:[%s8 + $0x18] sm:$0xff]
        %v5350 = vperm.slane %v5345, 0
        %v5351 = vmul.f32 %v5346, %v5350
        %v5352 = vmul.f32 %v5347, %v5350
        %v5353 = vmul.f32 %v5348, %v5350
        %v5354 = vmul.f32 %v5349, %v5350
        %v5355 = vsel %vm5027, %v5351, 0.0
        %5356 = vadd.xlane.f32.xlu0 %v5355
        %v5357 = vpop.xlane.xlu0 %5356
        %v5358 = vsel %vm5027, %v5352, 0.0
        %5359 = vadd.xlane.f32.xlu0 %v5358
        %v5360 = vpop.xlane.xlu0 %5359
        %v5361 = vsel %vm5027, %v5353, 0.0
        %5362 = vadd.xlane.f32.xlu0 %v5361
        %v5363 = vpop.xlane.xlu0 %5362
        %v5364 = vsel %vm5027, %v5354, 0.0
        %5365 = vadd.xlane.f32.xlu0 %v5364
        %v5366 = vpop.xlane.xlu0 %5365
        %v5367 = vld [vmem:[%s9] sm:$0xff]
        %v5368 = vld [vmem:[%s9 + $0x8] sm:$0xff]
        %v5369 = vld [vmem:[%s9 + $0x10] sm:$0xff]
        %v5370 = vld [vmem:[%s9 + $0x18] sm:$0xff]
        %v5371 = vadd.f32 %v5357, %v5367
        %v5372 = vadd.f32 %v5360, %v5368
        %v5373 = vadd.f32 %v5363, %v5369
        %v5374 = vadd.f32 %v5366, %v5370
        %v5375 = vsub.f32 0.0, %v5371
        %v5376 = vsub.f32 0.0, %v5372
        %v5377 = vsub.f32 0.0, %v5373
        %v5378 = vsub.f32 0.0, %v5374
        %v5379 = vmul.f32 %v5375, 1.442695
        %v5380 = vpow.pop %v5379
        %v5381 = vmul.f32 %v5376, 1.442695
        %v5382 = vpow.pop %v5381
        %v5383 = vmul.f32 %v5377, 1.442695
        %v5384 = vpow.pop %v5383
        %v5385 = vmul.f32 %v5378, 1.442695
        %v5386 = vpow.pop %v5385
        %v5387 = vadd.f32 %v5380, 1.0
        %v5388 = vadd.f32 %v5382, 1.0
        %v5389 = vadd.f32 %v5384, 1.0
        %v5390 = vadd.f32 %v5386, 1.0
        %v5391 = vrcp.pop %v5387
        %v5392 = vmul.f32 %v5387, %v5391
        %v5393 = vsub.f32 1.0, %v5392
        %v5394 = vmul.f32 %v5391, %v5393
        %v5395 = vadd.f32 %v5391, %v5394
        %vm5396 = vweird.f32 %v5387
        %vm5397 = vweird.f32 %v5391
        %vm5398 = vmor %vm5396, %vm5397
        %v5399 = vsel %vm5398, %v5391, %v5395
        %v5400 = vand.u32 2147483647, %v5387
        %vm5401 = vcmp.eq.f32.partialorder %v5400, 8.507059e+37
        %v5402 = vand.u32 %v5387, 2147483648
        %v5403 = vor.u32 1.1754944e-38, %v5402
        %v5404 = vsel %vm5401, %v5403, %v5399
        %v5405 = vmul.f32 1.0, %v5404
        %v5406 = vrcp.pop %v5388
        %v5407 = vmul.f32 %v5388, %v5406
        %v5408 = vsub.f32 1.0, %v5407
        %v5409 = vmul.f32 %v5406, %v5408
        %v5410 = vadd.f32 %v5406, %v5409
        %vm5411 = vweird.f32 %v5388
        %vm5412 = vweird.f32 %v5406
        %vm5413 = vmor %vm5411, %vm5412
        %v5414 = vsel %vm5413, %v5406, %v5410
        %v5415 = vand.u32 2147483647, %v5388
        %vm5416 = vcmp.eq.f32.partialorder %v5415, 8.507059e+37
        %v5417 = vand.u32 %v5388, 2147483648
        %v5418 = vor.u32 1.1754944e-38, %v5417
        %v5419 = vsel %vm5416, %v5418, %v5414
        %v5420 = vmul.f32 1.0, %v5419
        %v5421 = vrcp.pop %v5389
        %v5422 = vmul.f32 %v5389, %v5421
        %v5423 = vsub.f32 1.0, %v5422
        %v5424 = vmul.f32 %v5421, %v5423
        %v5425 = vadd.f32 %v5421, %v5424
        %vm5426 = vweird.f32 %v5389
        %vm5427 = vweird.f32 %v5421
        %vm5428 = vmor %vm5426, %vm5427
        %v5429 = vsel %vm5428, %v5421, %v5425
        %v5430 = vand.u32 2147483647, %v5389
        %vm5431 = vcmp.eq.f32.partialorder %v5430, 8.507059e+37
        %v5432 = vand.u32 %v5389, 2147483648
        %v5433 = vor.u32 1.1754944e-38, %v5432
        %v5434 = vsel %vm5431, %v5433, %v5429
        %v5435 = vmul.f32 1.0, %v5434
        %v5436 = vrcp.pop %v5390
        %v5437 = vmul.f32 %v5390, %v5436
        %v5438 = vsub.f32 1.0, %v5437
        %v5439 = vmul.f32 %v5436, %v5438
        %v5440 = vadd.f32 %v5436, %v5439
        %vm5441 = vweird.f32 %v5390
        %vm5442 = vweird.f32 %v5436
        %vm5443 = vmor %vm5441, %vm5442
        %v5444 = vsel %vm5443, %v5436, %v5440
        %v5445 = vand.u32 2147483647, %v5390
        %vm5446 = vcmp.eq.f32.partialorder %v5445, 8.507059e+37
        %v5447 = vand.u32 %v5390, 2147483648
        %v5448 = vor.u32 1.1754944e-38, %v5447
        %v5449 = vsel %vm5446, %v5448, %v5444
        %v5450 = vmul.f32 1.0, %v5449
        %v5451 = vld [vmem:[%s954] sm:$0xff]
        %v5452 = vld [vmem:[%s954 + $0x8] sm:$0xff]
        %v5453 = vld [vmem:[%s954 + $0x10] sm:$0xff]
        %v5454 = vld [vmem:[%s954 + $0x18] sm:$0xff]
        %v5455 = vld [vmem:[%s954 + $0x20] sm:$0xff]
        %v5456 = vld [vmem:[%s954 + $0x28] sm:$0xff]
        %v5457 = vld [vmem:[%s954 + $0x30] sm:$0xff]
        %v5458 = vld [vmem:[%s954 + $0x38] sm:$0xff]
        %v5459 = vunpack.c.l.bf16 %v5451
        %v5460 = vunpack.c.h.bf16 %v5451
        %v5461 = vunpack.c.l.bf16 %v5452
        %v5462 = vunpack.c.h.bf16 %v5452
        %v5463 = vunpack.c.l.bf16 %v5453
        %v5464 = vunpack.c.h.bf16 %v5453
        %v5465 = vunpack.c.l.bf16 %v5454
        %v5466 = vunpack.c.h.bf16 %v5454
        %v5467 = vunpack.c.l.bf16 %v5455
        %v5468 = vunpack.c.h.bf16 %v5455
        %v5469 = vunpack.c.l.bf16 %v5456
        %v5470 = vunpack.c.h.bf16 %v5456
        %v5471 = vunpack.c.l.bf16 %v5457
        %v5472 = vunpack.c.h.bf16 %v5457
        %v5473 = vunpack.c.l.bf16 %v5458
        %v5474 = vunpack.c.h.bf16 %v5458
        %5476 = vset.pattern.permute.xlu0 0
        %5477 = vperm.xlu0 %5476, %v5405
        %v5478 = vpop.permute.xlu0 %5477
        %5481 = vset.pattern.permute.xlu0 0
        %5482 = vperm.xlu0 %5481, %v5420
        %v5483 = vpop.permute.xlu0 %5482
        %5486 = vset.pattern.permute.xlu0 0
        %5487 = vperm.xlu0 %5486, %v5435
        %v5488 = vpop.permute.xlu0 %5487
        %5491 = vset.pattern.permute.xlu0 0
        %5492 = vperm.xlu0 %5491, %v5450
        %v5493 = vpop.permute.xlu0 %5492
        %v5495 = vmul.f32 %v4978, %v5478
        %v5496 = vmul.f32 %v4979, %v5478
        %v5497 = vmul.f32 %v4980, %v5478
        %v5498 = vmul.f32 %v4984, %v5483
        %v5499 = vmul.f32 %v4985, %v5483
        %v5500 = vmul.f32 %v4986, %v5483
        %v5501 = vmul.f32 %v4990, %v5488
        %v5502 = vmul.f32 %v4991, %v5488
        %v5503 = vmul.f32 %v4992, %v5488
        %v5504 = vmul.f32 %v4996, %v5493
        %v5505 = vmul.f32 %v4997, %v5493
        %v5506 = vmul.f32 %v4998, %v5493
        %5523 = vrot.lane.b32.xlu0 %v5459, 109
        %v5524 = vpop.permute.xlu0 %5523
        %5525 = vrot.lane.b32.xlu0 %v5460, 109
        %v5526 = vpop.permute.xlu0 %5525
        %5527 = vrot.lane.b32.xlu0 %v5461, 109
        %v5528 = vpop.permute.xlu0 %5527
        %5529 = vrot.lane.b32.xlu0 %v5462, 109
        %v5530 = vpop.permute.xlu0 %5529
        %5531 = vrot.lane.b32.xlu0 %v5463, 109
        %v5532 = vpop.permute.xlu0 %5531
        %5533 = vrot.lane.b32.xlu0 %v5464, 109
        %v5534 = vpop.permute.xlu0 %5533
        %5535 = vrot.lane.b32.xlu0 %v5465, 109
        %v5536 = vpop.permute.xlu0 %5535
        %5537 = vrot.lane.b32.xlu0 %v5466, 109
        %v5538 = vpop.permute.xlu0 %5537
        %5539 = vrot.lane.b32.xlu0 %v5467, 109
        %v5540 = vpop.permute.xlu0 %5539
        %5541 = vrot.lane.b32.xlu0 %v5468, 109
        %v5542 = vpop.permute.xlu0 %5541
        %5543 = vrot.lane.b32.xlu0 %v5469, 109
        %v5544 = vpop.permute.xlu0 %5543
        %5545 = vrot.lane.b32.xlu0 %v5470, 109
        %v5546 = vpop.permute.xlu0 %5545
        %5547 = vrot.lane.b32.xlu0 %v5471, 109
        %v5548 = vpop.permute.xlu0 %5547
        %5549 = vrot.lane.b32.xlu0 %v5472, 109
        %v5550 = vpop.permute.xlu0 %5549
        %5551 = vrot.lane.b32.xlu0 %v5473, 109
        %v5552 = vpop.permute.xlu0 %5551
        %5553 = vrot.lane.b32.xlu0 %v5474, 109
        %v5554 = vpop.permute.xlu0 %5553
        %v5555 = vsel %vm5253, %v5524, %v5526
        %v5556 = vsel %vm5253, %v5526, %v5528
        %v5557 = vsel %vm5253, %v5528, %v5530
        %v5558 = vsel %vm5253, %v5532, %v5534
        %v5559 = vsel %vm5253, %v5534, %v5536
        %v5560 = vsel %vm5253, %v5536, %v5538
        %v5561 = vsel %vm5253, %v5540, %v5542
        %v5562 = vsel %vm5253, %v5542, %v5544
        %v5563 = vsel %vm5253, %v5544, %v5546
        %v5564 = vsel %vm5253, %v5548, %v5550
        %v5565 = vsel %vm5253, %v5550, %v5552
        %v5566 = vsel %vm5253, %v5552, %v5554
        %v5579 = vadd.f32 %v5495, %v5555
        %v5580 = vadd.f32 %v5496, %v5556
        %v5581 = vadd.f32 %v5497, %v5557
        %v5582 = vadd.f32 %v5498, %v5558
        %v5583 = vadd.f32 %v5499, %v5559
        %v5584 = vadd.f32 %v5500, %v5560
        %v5585 = vadd.f32 %v5501, %v5561
        %v5586 = vadd.f32 %v5502, %v5562
        %v5587 = vadd.f32 %v5503, %v5563
        %v5588 = vadd.f32 %v5504, %v5564
        %v5589 = vadd.f32 %v5505, %v5565
        %v5590 = vadd.f32 %v5506, %v5566
        %s5591 = scalar_lea.vmem %s380, 96 [#allocation7]
        %5592 = vst [vmem:[%s5591] sm:$0xff] %v5579
        %5593 = vst [vmem:[%s5591 + $0x8] sm:$0xff] %v5580
        %5594 = vst [vmem:[%s5591 + $0x10] sm:$0xff] %v5581
        %5595 = vst [vmem:[%s5591 + $0x18] sm:$0xff] %v5582
        %5596 = vst [vmem:[%s5591 + $0x20] sm:$0xff] %v5583
        %5597 = vst [vmem:[%s5591 + $0x28] sm:$0xff] %v5584
        %5598 = vst [vmem:[%s5591 + $0x30] sm:$0xff] %v5585
        %5599 = vst [vmem:[%s5591 + $0x38] sm:$0xff] %v5586
        %5600 = vst [vmem:[%s5591 + $0x40] sm:$0xff] %v5587
        %5601 = vst [vmem:[%s5591 + $0x48] sm:$0xff] %v5588
        %5602 = vst [vmem:[%s5591 + $0x50] sm:$0xff] %v5589
        %5603 = vst [vmem:[%s5591 + $0x58] sm:$0xff] %v5590
        %s5604 = sand.u32 %s250, 1
        %s5605 = scalar_lea.sflag [#allocation6], %s5604
        %s5606 = sand.u32 %s250, 1
        %s5607 = smul.addr %s5606, 192
        %s5608 = scalar_lea.vmem [#allocation7], %s5607
        // Predicated region
        $region65: #{tpu_custom_call.1} parent=59 // pred_check
          %p5609 = pneg %p260
        $region66: #{tpu_custom_call.1} parent=59 // pred_check_branch
          %5611 = sbr.rel (%p5609) target = $region68
        $region67: #{tpu_custom_call.1} parent=59 // pred_region
          %s5612 = smul.u32 2, %s27
          %5614 = vsyncadd %s5605, 0
          %s5615 = smul.addr %s5612, 12
          %s5616 = smul.addr %s5615, 8
          %s5617 = scalar_lea.hbm %s10, %s5616
          %s5618 = sshll.u32 %s5608, 4
          %s5619 = int_to_ptr.vmem [resolvable:$true] %s5618
          %s5620 = sshll.u32 %s5617, 4
          %s5621 = int_to_ptr.hbm [resolvable:$true] %s5620
          %5626 = dma.vmem_to_hbm [thread:$0]  %s5619, 3072, %s5621, %s5605, 384, 384, 24
        $region68: #{tpu_custom_call.1} parent=59 // pred_fallthru
          _
      $region60: #{tpu_custom_call.1} parent=5 // pred_fallthru
        _
      %p5627 = scmp.le.s32.totalorder 2, %s22
      // Predicated region
      $region69: #{tpu_custom_call.1} parent=5 // pred_check
        %p5628 = pneg %p5627
      $region70: #{tpu_custom_call.1} parent=5 // pred_check_branch
        %5630 = sbr.rel (%p5628) target = $region72
      $region71: #{tpu_custom_call.1} parent=5 // pred_region
        %s5631 = ssub.s32 %s22, 2
        // Predicated region
        $region73: #{tpu_custom_call.1} parent=71 // pred_check
          %p5632 = pneg %p266
        $region74: #{tpu_custom_call.1} parent=71 // pred_check_branch
          %5634 = sbr.rel (%p5632) target = $region76
        $region75: #{tpu_custom_call.1} parent=71 // pred_region
          %s5635 = sand.u32 %s251, 1
          %s5636 = scalar_lea.sflag [#allocation6], %s5635
          %s5637 = sand.u32 %s251, 1
          %s5638 = smul.addr %s5637, 192
          %s5639 = scalar_lea.vmem [#allocation7], %s5638
          %5641 = dma.done %s5636, 3072
        $region76: #{tpu_custom_call.1} parent=71 // pred_fallthru
          _
      $region72: #{tpu_custom_call.1} parent=5 // pred_fallthru
        _
    $region6: #{tpu_custom_call.1} parent=1 // loop_footer
      %s26 = sadd.s32 1, %s22
    $region7: #{tpu_custom_call.1} parent=1 // loop_footer_branch
      %21 = sbr.rel target = $region3
    $region8: #{tpu_custom_call.1} parent=1 // loop_exit
      _
    %5642 = vsyncpa [#allocation5], 1
    %s5643 = scalar_lea.sflag [#allocation5], 1
    %5644 = vsyncpa %s5643, 1
    %5645 = vsyncpa [#allocation6], 1
    %s5646 = scalar_lea.sflag [#allocation6], 1
    %5647 = vsyncpa %s5646, 1

</llo_original>
